<compile_context>
chip_gen: v5e
topology: v5e:2x2
jax: 0.10.0
libtpu: 0.0.40
codegen_flags: <defaults>
</compile_context>

<pallas_src>
import math

import jax
import jax.numpy as jnp
from jax.experimental import pallas as pl
from jax.experimental.pallas import tpu as pltpu

# ---------------- small synthetic config -----------------------------------
B = 2            # batch
S = 8            # sequence length (epitope & MHC)
H = 32           # BERT hidden size
NHEAD = 2        # attention heads
DH = H // NHEAD
G = NHEAD * B    # flattened (head, batch) attention batch axis, head-major
FFN = 64         # BERT intermediate size
LAYERS = 2       # transformer layers per BERT
NL = 2 * LAYERS  # total stacked layers: [epitope layers | MHC layers]
VOCAB = 25
MAXPOS = 40
D_BA = 32        # ba_relu_output features
D_AP = 32        # ap_relu_output features
EMB_DIM = 64     # decoder emb_dim: concat dim = D_BA + D_AP + 2*H = 2*EMB_DIM
LN_EPS = 1e-12
MASK_BIAS = -10000.0   # HF-BERT-style additive attention-mask value


# ---------------- in-kernel helpers -----------------------------------------
def _layernorm(x, g, b):
    mu = jnp.mean(x, axis=-1, keepdims=True)
    var = jnp.mean((x - mu) ** 2, axis=-1, keepdims=True)
    return (x - mu) * jax.lax.rsqrt(var + LN_EPS) * g + b


def _gelu(x):
    # TODO(synk): HF BERT default act is exact erf-GELU; tanh approximation used here.
    c = math.sqrt(2.0 / math.pi)
    return 0.5 * x * (1.0 + jnp.tanh(c * (x + 0.044715 * x * x * x)))


def _softmax_lastdim(s):
    s = s - jnp.max(s, axis=-1, keepdims=True)
    p = jnp.exp(s)
    return p * pl.reciprocal(jnp.sum(p, axis=-1, keepdims=True), approx=True)


# ---------------- the single fused kernel ------------------------------------
def fused_forward_kernel(
        x_epi_ref, x_mhc_ref, bias_epi_ref, bias_mhc_ref, ba_ref, ap_ref,
        wqkv_ref, bqkv_ref, wo_ref, bo_ref, g1_ref, b1_ref,
        wi_ref, bi_ref, wo2_ref, bo2_ref, g2_ref, b2_ref,
        dw1_ref, db1_ref, dw2_ref, db2_ref,
        out_ref):
    scale = 1.0 / math.sqrt(DH)

    def layer(x, bias, idx):
        # x: (B*S, H) flattened activations, bias: (G, 1, S) additive key mask.
        x3 = x.reshape(B, S, H)
        # Replicate each sample over heads -> one batched dot_general over G.
        xg = jnp.broadcast_to(x3[None], (NHEAD, B, S, H)).reshape(G, S, H)
        # Fused QKV projection (weights pre-packed per (head,batch) slot).
        qkv = jnp.einsum('gsc,gcf->gsf', xg, wqkv_ref[idx],
                         preferred_element_type=jnp.float32) + bqkv_ref[idx]
        q = qkv[:, :, 0:DH]
        k = qkv[:, :, DH:2 * DH]
        v = qkv[:, :, 2 * DH:3 * DH]
        s = jnp.einsum('gqd,gkd->gqk', q, k,
                       preferred_element_type=jnp.float32) * scale + bias
        p = _softmax_lastdim(s)
        ctx = jnp.einsum('gqk,gkd->gqd', p, v,
                         preferred_element_type=jnp.float32)       # (G, S, DH)
        # Per-head output projection, summed over heads == concat(heads) @ Wo.
        og = jnp.einsum('gsd,gdh->gsh', ctx, wo_ref[idx],
                        preferred_element_type=jnp.float32)        # (G, S, H)
        og4 = og.reshape(NHEAD, B, S, H)
        attn3 = og4[0]
        for h in range(1, NHEAD):
            attn3 = attn3 + og4[h]
        attn = attn3.reshape(B * S, H) + bo_ref[idx]
        x1 = _layernorm(x + attn, g1_ref[idx], b1_ref[idx])
        hmid = _gelu(jnp.dot(x1, wi_ref[idx],
                             preferred_element_type=jnp.float32) + bi_ref[idx])
        ffn = jnp.dot(hmid, wo2_ref[idx],
                      preferred_element_type=jnp.float32) + bo2_ref[idx]
        return _layernorm(x1 + ffn, g2_ref[idx], b2_ref[idx])

    def encode(x, bias, base):
        for l in range(LAYERS):
            x = layer(x, bias, base + l)
        # CLS token (row b*S for each sample) -> (B, H)
        return jnp.concatenate([x[b * S:b * S + 1, :] for b in range(B)], axis=0)

    cls_epi = encode(x_epi_ref[...], bias_epi_ref[...], 0)
    cls_mhc = encode(x_mhc_ref[...], bias_mhc_ref[...], LAYERS)

    # decoder: concat(ba, ap, cls_epi, cls_mhc) @ W1 + b1, done as block-split
    # matmuls (avoids the lane-dim concat), then ReLU, Linear, Sigmoid.
    parts = (ba_ref[...], ap_ref[...], cls_epi, cls_mhc)
    hdec = db1_ref[...]
    for j, part in enumerate(parts):
        hdec = hdec + jnp.dot(part, dw1_ref[j], preferred_element_type=jnp.float32)
    hdec = jnp.maximum(hdec, 0.0)
    logit = jnp.dot(hdec, dw2_ref[...],
                    preferred_element_type=jnp.float32) + db2_ref[...]
    # exact division for the 2-element sigmoid keeps the output strictly in (0,1)
    out_ref[...] = 1.0 / (1.0 + jnp.exp(-logit))


# ---------------- host glue: embeddings + fused call --------------------------
def _embed(p, input_ids, token_type_ids, attention_mask):
    emb = (p['word_emb'][input_ids]
           + p['pos_emb'][jnp.arange(S)][None, :, :]
           + p['type_emb'][token_type_ids])
    mu = jnp.mean(emb, axis=-1, keepdims=True)
    var = jnp.mean((emb - mu) ** 2, axis=-1, keepdims=True)
    x = (emb - mu) * jax.lax.rsqrt(var + LN_EPS) * p['emb_ln_g'] + p['emb_ln_b']
    bias = ((1.0 - attention_mask.astype(jnp.float32)) * MASK_BIAS).reshape(B, 1, S)
    bias = jnp.tile(bias, (NHEAD, 1, 1))          # head-major (G, 1, S)
    return x.reshape(B * S, H), bias


@jax.jit
def epitope_mhc_bert_forward(ba_relu_output, ap_relu_output, epitope, MHC, params):
    x_epi, bias_epi = _embed(params['epi'], **epitope)
    x_mhc, bias_mhc = _embed(params['mhc'], **MHC)

    args = (x_epi, x_mhc, bias_epi, bias_mhc, ba_relu_output, ap_relu_output,
            *params['enc_stacked'], *params['dec'])
    out = pl.pallas_call(
        fused_forward_kernel,
        out_shape=jax.ShapeDtypeStruct((B, 1), jnp.float32),
        in_specs=[pl.BlockSpec(memory_space=pltpu.MemorySpace.VMEM)] * len(args),
        out_specs=pl.BlockSpec(memory_space=pltpu.MemorySpace.VMEM),
    )(*args)
    return jnp.squeeze(out)


# ---------------- deterministic parameter init & packing ---------------------
def _dense(key, fan_in, fan_out):
    kw, kb = jax.random.split(key)
    w = 0.02 * jax.random.normal(kw, (fan_in, fan_out), jnp.float32)
    b = 0.02 * jax.random.normal(kb, (1, fan_out), jnp.float32)
    return w, b


def init_bert_embeddings(key):
    k = jax.random.split(key, 3)
    return {
        'word_emb': 0.02 * jax.random.normal(k[0], (VOCAB, H), jnp.float32),
        'pos_emb': 0.02 * jax.random.normal(k[1], (MAXPOS, H), jnp.float32),
        'type_emb': 0.02 * jax.random.normal(k[2], (2, H), jnp.float32),
        'emb_ln_g': jnp.ones((H,), jnp.float32),
        'emb_ln_b': jnp.zeros((H,), jnp.float32),
    }


def init_bert_layers(key):
    """Standard BERT-style dense weights per layer (as a checkpoint would provide)."""
    layers = []
    for lk in jax.random.split(key, LAYERS):
        k = jax.random.split(lk, 6)
        wq, bq = _dense(k[0], H, H)
        wk, bk = _dense(k[1], H, H)
        wv, bv = _dense(k[2], H, H)
        wo, bo = _dense(k[3], H, H)
        wi, bi = _dense(k[4], H, FFN)
        wo2, bo2 = _dense(k[5], FFN, H)
        layers.append(dict(wq=wq, bq=bq, wk=wk, bk=bk, wv=wv, bv=bv, wo=wo, bo=bo,
                           wi=wi, bi=bi, wo2=wo2, bo2=bo2,
                           g1=jnp.ones((1, H), jnp.float32),
                           b1=jnp.zeros((1, H), jnp.float32),
                           g2=jnp.ones((1, H), jnp.float32),
                           b2=jnp.zeros((1, H), jnp.float32)))
    return layers


def pack_encoder_weights(epi_layers, mhc_layers):
    """Pack per-layer weights into stacked, head-split, batch-replicated arrays."""
    def rep(t):  # (NHEAD, ...) -> (G, ...) replicated over batch, head-major
        return jnp.broadcast_to(t[:, None], (NHEAD, B) + t.shape[1:]).reshape(
            (G,) + t.shape[1:])

    def pack_attn(lp):
        wq = lp['wq'].reshape(H, NHEAD, DH)
        wk = lp['wk'].reshape(H, NHEAD, DH)
        wv = lp['wv'].reshape(H, NHEAD, DH)
        w = jnp.stack([jnp.concatenate([wq[:, h], wk[:, h], wv[:, h]], axis=-1)
                       for h in range(NHEAD)], axis=0)           # (NHEAD, H, 3*DH)
        bq = lp['bq'].reshape(NHEAD, DH)
        bk = lp['bk'].reshape(NHEAD, DH)
        bv = lp['bv'].reshape(NHEAD, DH)
        b = jnp.concatenate([bq, bk, bv], axis=-1)[:, None, :]   # (NHEAD, 1, 3*DH)
        wo = lp['wo'].reshape(NHEAD, DH, H)                      # (NHEAD, DH, H)
        return rep(w), rep(b), rep(wo)

    all_layers = epi_layers + mhc_layers
    wqkv, bqkv, woh = [], [], []
    for lp in all_layers:
        w, b, wo = pack_attn(lp)
        wqkv.append(w); bqkv.append(b); woh.append(wo)

    return (
        jnp.stack(wqkv),                                   # (NL, G, H, 3*DH)
        jnp.stack(bqkv),                                   # (NL, G, 1, 3*DH)
        jnp.stack(woh),                                    # (NL, G, DH, H)
        jnp.stack([lp['bo'] for lp in all_layers]),        # (NL, 1, H)
        jnp.stack([lp['g1'] for lp in all_layers]),        # (NL, 1, H)
        jnp.stack([lp['b1'] for lp in all_layers]),        # (NL, 1, H)
        jnp.stack([lp['wi'] for lp in all_layers]),        # (NL, H, FFN)
        jnp.stack([lp['bi'] for lp in all_layers]),        # (NL, 1, FFN)
        jnp.stack([lp['wo2'] for lp in all_layers]),       # (NL, FFN, H)
        jnp.stack([lp['bo2'] for lp in all_layers]),       # (NL, 1, H)
        jnp.stack([lp['g2'] for lp in all_layers]),        # (NL, 1, H)
        jnp.stack([lp['b2'] for lp in all_layers]),        # (NL, 1, H)
    )


if __name__ == "__main__":
    key = jax.random.PRNGKey(0)
    k1, k2, k3, k4, k5, k6, k7, k8, k9 = jax.random.split(key, 9)

    params = {
        'epi': init_bert_embeddings(k1),
        'mhc': init_bert_embeddings(k2),
    }
    params['enc_stacked'] = pack_encoder_weights(init_bert_layers(k3),
                                                 init_bert_layers(k4))
    dw1, db1 = _dense(k5, 2 * EMB_DIM, EMB_DIM)
    dw2, db2 = _dense(k6, EMB_DIM, 1)
    # split decoder W1 rows into the 4 concat blocks [ba | ap | epi_cls | mhc_cls]
    params['dec'] = (dw1.reshape(4, 2 * EMB_DIM // 4, EMB_DIM), db1, dw2, db2)

    ba_relu_output = jnp.maximum(jax.random.normal(k7, (B, D_BA), jnp.float32), 0.0)
    ap_relu_output = jnp.maximum(jax.random.normal(k8, (B, D_AP), jnp.float32), 0.0)

    ke, km = jax.random.split(k9)
    epitope = dict(
        input_ids=jax.random.randint(ke, (B, S), 0, VOCAB),
        token_type_ids=jnp.zeros((B, S), jnp.int32),
        attention_mask=jnp.ones((B, S), jnp.int32).at[1, S - 2:].set(0),
    )
    MHC = dict(
        input_ids=jax.random.randint(km, (B, S), 0, VOCAB),
        token_type_ids=jnp.zeros((B, S), jnp.int32),
        attention_mask=jnp.ones((B, S), jnp.int32).at[1, S - 1:].set(0),
    )

    out = epitope_mhc_bert_forward(ba_relu_output, ap_relu_output, epitope, MHC,
                                   params)
    out = jax.block_until_ready(out)
    assert out.shape == (B,)
    assert bool(jnp.all((out > 0.0) & (out < 1.0)))
    print("KERNEL_OK")
</pallas_src>

<mosaic_0001>
module attributes {stable_mosaic.version = 11 : i64} {
  func.func @fused_forward_kernel(%arg0: memref<16x32xf32, #tpu.memory_space<vmem>>, %arg1: memref<16x32xf32, #tpu.memory_space<vmem>>, %arg2: memref<4x1x8xf32, #tpu.memory_space<vmem>>, %arg3: memref<4x1x8xf32, #tpu.memory_space<vmem>>, %arg4: memref<2x32xf32, #tpu.memory_space<vmem>>, %arg5: memref<2x32xf32, #tpu.memory_space<vmem>>, %arg6: memref<4x4x32x48xf32, #tpu.memory_space<vmem>>, %arg7: memref<4x4x1x48xf32, #tpu.memory_space<vmem>>, %arg8: memref<4x4x16x32xf32, #tpu.memory_space<vmem>>, %arg9: memref<4x1x32xf32, #tpu.memory_space<vmem>>, %arg10: memref<4x1x32xf32, #tpu.memory_space<vmem>>, %arg11: memref<4x1x32xf32, #tpu.memory_space<vmem>>, %arg12: memref<4x32x64xf32, #tpu.memory_space<vmem>>, %arg13: memref<4x1x64xf32, #tpu.memory_space<vmem>>, %arg14: memref<4x64x32xf32, #tpu.memory_space<vmem>>, %arg15: memref<4x1x32xf32, #tpu.memory_space<vmem>>, %arg16: memref<4x1x32xf32, #tpu.memory_space<vmem>>, %arg17: memref<4x1x32xf32, #tpu.memory_space<vmem>>, %arg18: memref<4x32x64xf32, #tpu.memory_space<vmem>>, %arg19: memref<1x64xf32, #tpu.memory_space<vmem>>, %arg20: memref<64x1xf32, #tpu.memory_space<vmem>>, %arg21: memref<1x1xf32, #tpu.memory_space<vmem>>, %arg22: memref<2x1xf32, #tpu.memory_space<vmem>>) attributes {dimension_semantics = [], scalar_prefetch = 0 : i64, scratch_operands = 0 : i64, tpu.core_type = #tpu.core_type<tc>} {
    %c0 = arith.constant 0 : index
    %c0_0 = arith.constant 0 : index
    %0 = vector.load %arg0[%c0, %c0_0] : memref<16x32xf32, #tpu.memory_space<vmem>>, vector<16x32xf32>
    %c0_1 = arith.constant 0 : index
    %c0_2 = arith.constant 0 : index
    %c0_3 = arith.constant 0 : index
    %1 = vector.load %arg2[%c0_1, %c0_2, %c0_3] : memref<4x1x8xf32, #tpu.memory_space<vmem>>, vector<4x1x8xf32>
    %2 = vector.shape_cast %0 : vector<16x32xf32> to vector<2x8x32xf32>
    %3 = vector.shape_cast %2 : vector<2x8x32xf32> to vector<1x2x8x32xf32>
    %4 = vector.shape_cast %3 : vector<1x2x8x32xf32> to vector<1x2x8x32xf32>
    %5 = vector.broadcast %4 : vector<1x2x8x32xf32> to vector<2x2x8x32xf32>
    %6 = vector.shape_cast %5 : vector<2x2x8x32xf32> to vector<4x8x32xf32>
    %c0_4 = arith.constant 0 : index
    %c0_5 = arith.constant 0 : index
    %c0_6 = arith.constant 0 : index
    %c0_7 = arith.constant 0 : index
    %7 = vector.load %arg6[%c0_4, %c0_5, %c0_6, %c0_7] : memref<4x4x32x48xf32, #tpu.memory_space<vmem>>, vector<1x4x32x48xf32>
    %8 = vector.shape_cast %7 : vector<1x4x32x48xf32> to vector<4x32x48xf32>
    "tpu.trace_start"() <{level = 10 : i32, message = "gsc,gcf->gsf"}> : () -> ()
    %cst = arith.constant dense<0.000000e+00> : vector<4x8x48xf32>
    %9 = tpu.matmul %6, %8, %cst {dimension_numbers = #tpu.dot_dimension_numbers<[2], [1], [1], [2], [0, 0, 0, 1, 1, 2], [0], [0]>} : vector<4x8x32xf32>, vector<4x32x48xf32>, vector<4x8x48xf32> -> vector<4x8x48xf32>
    "tpu.trace_stop"() : () -> ()
    %c0_8 = arith.constant 0 : index
    %c0_9 = arith.constant 0 : index
    %c0_10 = arith.constant 0 : index
    %c0_11 = arith.constant 0 : index
    %10 = vector.load %arg7[%c0_8, %c0_9, %c0_10, %c0_11] : memref<4x4x1x48xf32, #tpu.memory_space<vmem>>, vector<1x4x1x48xf32>
    %11 = vector.shape_cast %10 : vector<1x4x1x48xf32> to vector<4x1x48xf32>
    %12 = vector.broadcast %11 : vector<4x1x48xf32> to vector<4x8x48xf32>
    %13 = arith.addf %9, %12 : vector<4x8x48xf32>
    %14 = vector.extract_strided_slice %13 {offsets = [0, 0, 0], sizes = [4, 8, 16], strides = [1, 1, 1]} : vector<4x8x48xf32> to vector<4x8x16xf32>
    %15 = vector.extract_strided_slice %13 {offsets = [0, 0, 16], sizes = [4, 8, 16], strides = [1, 1, 1]} : vector<4x8x48xf32> to vector<4x8x16xf32>
    %16 = vector.extract_strided_slice %13 {offsets = [0, 0, 32], sizes = [4, 8, 16], strides = [1, 1, 1]} : vector<4x8x48xf32> to vector<4x8x16xf32>
    "tpu.trace_start"() <{level = 10 : i32, message = "gqd,gkd->gqk"}> : () -> ()
    %cst_12 = arith.constant dense<0.000000e+00> : vector<4x8x8xf32>
    %17 = tpu.matmul %14, %15, %cst_12 {dimension_numbers = #tpu.dot_dimension_numbers<[2], [2], [1], [1], [0, 0, 0, 1, 1, 1], [0], [0]>} : vector<4x8x16xf32>, vector<4x8x16xf32>, vector<4x8x8xf32> -> vector<4x8x8xf32>
    "tpu.trace_stop"() : () -> ()
    %cst_13 = arith.constant 2.500000e-01 : f32
    %18 = vector.broadcast %cst_13 : f32 to vector<4x8x8xf32>
    %19 = arith.mulf %17, %18 : vector<4x8x8xf32>
    %20 = vector.broadcast %1 : vector<4x1x8xf32> to vector<4x8x8xf32>
    %21 = arith.addf %19, %20 : vector<4x8x8xf32>
    %cst_14 = arith.constant dense<0xFF800000> : vector<4x8xf32>
    %22 = vector.multi_reduction <maximumf>, %21, %cst_14 [2] : vector<4x8x8xf32> to vector<4x8xf32>
    %23 = vector.shape_cast %22 : vector<4x8xf32> to vector<4x8x1xf32>
    %24 = vector.broadcast %23 : vector<4x8x1xf32> to vector<4x8x8xf32>
    %25 = arith.subf %21, %24 : vector<4x8x8xf32>
    %26 = math.exp %25 : vector<4x8x8xf32>
    %cst_15 = arith.constant dense<0.000000e+00> : vector<4x8xf32>
    %27 = vector.multi_reduction <add>, %26, %cst_15 [2] : vector<4x8x8xf32> to vector<4x8xf32>
    %28 = vector.shape_cast %27 : vector<4x8xf32> to vector<4x8x1xf32>
    %29 = tpu.reciprocal %28 {approx = true} : vector<4x8x1xf32> -> vector<4x8x1xf32>
    %30 = vector.broadcast %29 : vector<4x8x1xf32> to vector<4x8x8xf32>
    %31 = arith.mulf %26, %30 : vector<4x8x8xf32>
    "tpu.trace_start"() <{level = 10 : i32, message = "gqk,gkd->gqd"}> : () -> ()
    %cst_16 = arith.constant dense<0.000000e+00> : vector<4x8x16xf32>
    %32 = tpu.matmul %31, %16, %cst_16 {dimension_numbers = #tpu.dot_dimension_numbers<[2], [1], [1], [2], [0, 0, 0, 1, 1, 2], [0], [0]>} : vector<4x8x8xf32>, vector<4x8x16xf32>, vector<4x8x16xf32> -> vector<4x8x16xf32>
    "tpu.trace_stop"() : () -> ()
    %c0_17 = arith.constant 0 : index
    %c0_18 = arith.constant 0 : index
    %c0_19 = arith.constant 0 : index
    %c0_20 = arith.constant 0 : index
    %33 = vector.load %arg8[%c0_17, %c0_18, %c0_19, %c0_20] : memref<4x4x16x32xf32, #tpu.memory_space<vmem>>, vector<1x4x16x32xf32>
    %34 = vector.shape_cast %33 : vector<1x4x16x32xf32> to vector<4x16x32xf32>
    "tpu.trace_start"() <{level = 10 : i32, message = "gsd,gdh->gsh"}> : () -> ()
    %cst_21 = arith.constant dense<0.000000e+00> : vector<4x8x32xf32>
    %35 = tpu.matmul %32, %34, %cst_21 {dimension_numbers = #tpu.dot_dimension_numbers<[2], [1], [1], [2], [0, 0, 0, 1, 1, 2], [0], [0]>} : vector<4x8x16xf32>, vector<4x16x32xf32>, vector<4x8x32xf32> -> vector<4x8x32xf32>
    "tpu.trace_stop"() : () -> ()
    %36 = vector.shape_cast %35 : vector<4x8x32xf32> to vector<2x2x8x32xf32>
    %37 = vector.extract_strided_slice %36 {offsets = [0, 0, 0, 0], sizes = [1, 2, 8, 32], strides = [1, 1, 1, 1]} : vector<2x2x8x32xf32> to vector<1x2x8x32xf32>
    %38 = vector.shape_cast %37 : vector<1x2x8x32xf32> to vector<2x8x32xf32>
    %39 = vector.extract_strided_slice %36 {offsets = [1, 0, 0, 0], sizes = [1, 2, 8, 32], strides = [1, 1, 1, 1]} : vector<2x2x8x32xf32> to vector<1x2x8x32xf32>
    %40 = vector.shape_cast %39 : vector<1x2x8x32xf32> to vector<2x8x32xf32>
    %41 = arith.addf %38, %40 : vector<2x8x32xf32>
    %42 = vector.shape_cast %41 : vector<2x8x32xf32> to vector<16x32xf32>
    %c0_22 = arith.constant 0 : index
    %c0_23 = arith.constant 0 : index
    %c0_24 = arith.constant 0 : index
    %43 = vector.load %arg9[%c0_22, %c0_23, %c0_24] : memref<4x1x32xf32, #tpu.memory_space<vmem>>, vector<1x1x32xf32>
    %44 = vector.shape_cast %43 : vector<1x1x32xf32> to vector<1x32xf32>
    %45 = vector.broadcast %44 : vector<1x32xf32> to vector<16x32xf32>
    %46 = arith.addf %42, %45 : vector<16x32xf32>
    %47 = arith.addf %0, %46 : vector<16x32xf32>
    %c0_25 = arith.constant 0 : index
    %c0_26 = arith.constant 0 : index
    %c0_27 = arith.constant 0 : index
    %48 = vector.load %arg10[%c0_25, %c0_26, %c0_27] : memref<4x1x32xf32, #tpu.memory_space<vmem>>, vector<1x1x32xf32>
    %49 = vector.shape_cast %48 : vector<1x1x32xf32> to vector<1x32xf32>
    %c0_28 = arith.constant 0 : index
    %c0_29 = arith.constant 0 : index
    %c0_30 = arith.constant 0 : index
    %50 = vector.load %arg11[%c0_28, %c0_29, %c0_30] : memref<4x1x32xf32, #tpu.memory_space<vmem>>, vector<1x1x32xf32>
    %51 = vector.shape_cast %50 : vector<1x1x32xf32> to vector<1x32xf32>
    %cst_31 = arith.constant dense<0.000000e+00> : vector<16xf32>
    %52 = vector.multi_reduction <add>, %47, %cst_31 [1] : vector<16x32xf32> to vector<16xf32>
    %53 = vector.shape_cast %52 : vector<16xf32> to vector<16x1xf32>
    %cst_32 = arith.constant 3.200000e+01 : f32
    %54 = vector.broadcast %cst_32 : f32 to vector<16x1xf32>
    %55 = arith.divf %53, %54 : vector<16x1xf32>
    %56 = vector.broadcast %55 : vector<16x1xf32> to vector<16x32xf32>
    %57 = arith.subf %47, %56 : vector<16x32xf32>
    %58 = arith.mulf %57, %57 : vector<16x32xf32>
    %cst_33 = arith.constant dense<0.000000e+00> : vector<16xf32>
    %59 = vector.multi_reduction <add>, %58, %cst_33 [1] : vector<16x32xf32> to vector<16xf32>
    %60 = vector.shape_cast %59 : vector<16xf32> to vector<16x1xf32>
    %cst_34 = arith.constant 3.200000e+01 : f32
    %61 = vector.broadcast %cst_34 : f32 to vector<16x1xf32>
    %62 = arith.divf %60, %61 : vector<16x1xf32>
    %63 = vector.broadcast %55 : vector<16x1xf32> to vector<16x32xf32>
    %64 = arith.subf %47, %63 : vector<16x32xf32>
    %cst_35 = arith.constant 9.99999996E-13 : f32
    %65 = vector.broadcast %cst_35 : f32 to vector<16x1xf32>
    %66 = arith.addf %62, %65 : vector<16x1xf32>
    %67 = math.rsqrt %66 : vector<16x1xf32>
    %68 = vector.broadcast %67 : vector<16x1xf32> to vector<16x32xf32>
    %69 = arith.mulf %64, %68 : vector<16x32xf32>
    %70 = vector.broadcast %49 : vector<1x32xf32> to vector<16x32xf32>
    %71 = arith.mulf %69, %70 : vector<16x32xf32>
    %72 = vector.broadcast %51 : vector<1x32xf32> to vector<16x32xf32>
    %73 = arith.addf %71, %72 : vector<16x32xf32>
    %c0_36 = arith.constant 0 : index
    %c0_37 = arith.constant 0 : index
    %c0_38 = arith.constant 0 : index
    %74 = vector.load %arg12[%c0_36, %c0_37, %c0_38] : memref<4x32x64xf32, #tpu.memory_space<vmem>>, vector<1x32x64xf32>
    %75 = vector.shape_cast %74 : vector<1x32x64xf32> to vector<32x64xf32>
    %cst_39 = arith.constant dense<0.000000e+00> : vector<16x64xf32>
    %76 = tpu.matmul %73, %75, %cst_39 {dimension_numbers = #tpu.dot_dimension_numbers<[1], [0], [0], [1], [0, 0, 1, 1], [], []>} : vector<16x32xf32>, vector<32x64xf32>, vector<16x64xf32> -> vector<16x64xf32>
    %c0_40 = arith.constant 0 : index
    %c0_41 = arith.constant 0 : index
    %c0_42 = arith.constant 0 : index
    %77 = vector.load %arg13[%c0_40, %c0_41, %c0_42] : memref<4x1x64xf32, #tpu.memory_space<vmem>>, vector<1x1x64xf32>
    %78 = vector.shape_cast %77 : vector<1x1x64xf32> to vector<1x64xf32>
    %79 = vector.broadcast %78 : vector<1x64xf32> to vector<16x64xf32>
    %80 = arith.addf %76, %79 : vector<16x64xf32>
    %cst_43 = arith.constant 5.000000e-01 : f32
    %81 = vector.broadcast %cst_43 : f32 to vector<16x64xf32>
    %82 = arith.mulf %81, %80 : vector<16x64xf32>
    %cst_44 = arith.constant 4.471500e-02 : f32
    %83 = vector.broadcast %cst_44 : f32 to vector<16x64xf32>
    %84 = arith.mulf %83, %80 : vector<16x64xf32>
    %85 = arith.mulf %84, %80 : vector<16x64xf32>
    %86 = arith.mulf %85, %80 : vector<16x64xf32>
    %87 = arith.addf %80, %86 : vector<16x64xf32>
    %cst_45 = arith.constant 0.797884583 : f32
    %88 = vector.broadcast %cst_45 : f32 to vector<16x64xf32>
    %89 = arith.mulf %88, %87 : vector<16x64xf32>
    %90 = math.tanh %89 : vector<16x64xf32>
    %cst_46 = arith.constant 1.000000e+00 : f32
    %91 = vector.broadcast %cst_46 : f32 to vector<16x64xf32>
    %92 = arith.addf %91, %90 : vector<16x64xf32>
    %93 = arith.mulf %82, %92 : vector<16x64xf32>
    %c0_47 = arith.constant 0 : index
    %c0_48 = arith.constant 0 : index
    %c0_49 = arith.constant 0 : index
    %94 = vector.load %arg14[%c0_47, %c0_48, %c0_49] : memref<4x64x32xf32, #tpu.memory_space<vmem>>, vector<1x64x32xf32>
    %95 = vector.shape_cast %94 : vector<1x64x32xf32> to vector<64x32xf32>
    %cst_50 = arith.constant dense<0.000000e+00> : vector<16x32xf32>
    %96 = tpu.matmul %93, %95, %cst_50 {dimension_numbers = #tpu.dot_dimension_numbers<[1], [0], [0], [1], [0, 0, 1, 1], [], []>} : vector<16x64xf32>, vector<64x32xf32>, vector<16x32xf32> -> vector<16x32xf32>
    %c0_51 = arith.constant 0 : index
    %c0_52 = arith.constant 0 : index
    %c0_53 = arith.constant 0 : index
    %97 = vector.load %arg15[%c0_51, %c0_52, %c0_53] : memref<4x1x32xf32, #tpu.memory_space<vmem>>, vector<1x1x32xf32>
    %98 = vector.shape_cast %97 : vector<1x1x32xf32> to vector<1x32xf32>
    %99 = vector.broadcast %98 : vector<1x32xf32> to vector<16x32xf32>
    %100 = arith.addf %96, %99 : vector<16x32xf32>
    %101 = arith.addf %73, %100 : vector<16x32xf32>
    %c0_54 = arith.constant 0 : index
    %c0_55 = arith.constant 0 : index
    %c0_56 = arith.constant 0 : index
    %102 = vector.load %arg16[%c0_54, %c0_55, %c0_56] : memref<4x1x32xf32, #tpu.memory_space<vmem>>, vector<1x1x32xf32>
    %103 = vector.shape_cast %102 : vector<1x1x32xf32> to vector<1x32xf32>
    %c0_57 = arith.constant 0 : index
    %c0_58 = arith.constant 0 : index
    %c0_59 = arith.constant 0 : index
    %104 = vector.load %arg17[%c0_57, %c0_58, %c0_59] : memref<4x1x32xf32, #tpu.memory_space<vmem>>, vector<1x1x32xf32>
    %105 = vector.shape_cast %104 : vector<1x1x32xf32> to vector<1x32xf32>
    %cst_60 = arith.constant dense<0.000000e+00> : vector<16xf32>
    %106 = vector.multi_reduction <add>, %101, %cst_60 [1] : vector<16x32xf32> to vector<16xf32>
    %107 = vector.shape_cast %106 : vector<16xf32> to vector<16x1xf32>
    %cst_61 = arith.constant 3.200000e+01 : f32
    %108 = vector.broadcast %cst_61 : f32 to vector<16x1xf32>
    %109 = arith.divf %107, %108 : vector<16x1xf32>
    %110 = vector.broadcast %109 : vector<16x1xf32> to vector<16x32xf32>
    %111 = arith.subf %101, %110 : vector<16x32xf32>
    %112 = arith.mulf %111, %111 : vector<16x32xf32>
    %cst_62 = arith.constant dense<0.000000e+00> : vector<16xf32>
    %113 = vector.multi_reduction <add>, %112, %cst_62 [1] : vector<16x32xf32> to vector<16xf32>
    %114 = vector.shape_cast %113 : vector<16xf32> to vector<16x1xf32>
    %cst_63 = arith.constant 3.200000e+01 : f32
    %115 = vector.broadcast %cst_63 : f32 to vector<16x1xf32>
    %116 = arith.divf %114, %115 : vector<16x1xf32>
    %117 = vector.broadcast %109 : vector<16x1xf32> to vector<16x32xf32>
    %118 = arith.subf %101, %117 : vector<16x32xf32>
    %cst_64 = arith.constant 9.99999996E-13 : f32
    %119 = vector.broadcast %cst_64 : f32 to vector<16x1xf32>
    %120 = arith.addf %116, %119 : vector<16x1xf32>
    %121 = math.rsqrt %120 : vector<16x1xf32>
    %122 = vector.broadcast %121 : vector<16x1xf32> to vector<16x32xf32>
    %123 = arith.mulf %118, %122 : vector<16x32xf32>
    %124 = vector.broadcast %103 : vector<1x32xf32> to vector<16x32xf32>
    %125 = arith.mulf %123, %124 : vector<16x32xf32>
    %126 = vector.broadcast %105 : vector<1x32xf32> to vector<16x32xf32>
    %127 = arith.addf %125, %126 : vector<16x32xf32>
    %128 = vector.shape_cast %127 : vector<16x32xf32> to vector<2x8x32xf32>
    %129 = vector.shape_cast %128 : vector<2x8x32xf32> to vector<1x2x8x32xf32>
    %130 = vector.shape_cast %129 : vector<1x2x8x32xf32> to vector<1x2x8x32xf32>
    %131 = vector.broadcast %130 : vector<1x2x8x32xf32> to vector<2x2x8x32xf32>
    %132 = vector.shape_cast %131 : vector<2x2x8x32xf32> to vector<4x8x32xf32>
    %c1 = arith.constant 1 : index
    %c0_65 = arith.constant 0 : index
    %c0_66 = arith.constant 0 : index
    %c0_67 = arith.constant 0 : index
    %133 = vector.load %arg6[%c1, %c0_65, %c0_66, %c0_67] : memref<4x4x32x48xf32, #tpu.memory_space<vmem>>, vector<1x4x32x48xf32>
    %134 = vector.shape_cast %133 : vector<1x4x32x48xf32> to vector<4x32x48xf32>
    "tpu.trace_start"() <{level = 10 : i32, message = "gsc,gcf->gsf"}> : () -> ()
    %cst_68 = arith.constant dense<0.000000e+00> : vector<4x8x48xf32>
    %135 = tpu.matmul %132, %134, %cst_68 {dimension_numbers = #tpu.dot_dimension_numbers<[2], [1], [1], [2], [0, 0, 0, 1, 1, 2], [0], [0]>} : vector<4x8x32xf32>, vector<4x32x48xf32>, vector<4x8x48xf32> -> vector<4x8x48xf32>
    "tpu.trace_stop"() : () -> ()
    %c1_69 = arith.constant 1 : index
    %c0_70 = arith.constant 0 : index
    %c0_71 = arith.constant 0 : index
    %c0_72 = arith.constant 0 : index
    %136 = vector.load %arg7[%c1_69, %c0_70, %c0_71, %c0_72] : memref<4x4x1x48xf32, #tpu.memory_space<vmem>>, vector<1x4x1x48xf32>
    %137 = vector.shape_cast %136 : vector<1x4x1x48xf32> to vector<4x1x48xf32>
    %138 = vector.broadcast %137 : vector<4x1x48xf32> to vector<4x8x48xf32>
    %139 = arith.addf %135, %138 : vector<4x8x48xf32>
    %140 = vector.extract_strided_slice %139 {offsets = [0, 0, 0], sizes = [4, 8, 16], strides = [1, 1, 1]} : vector<4x8x48xf32> to vector<4x8x16xf32>
    %141 = vector.extract_strided_slice %139 {offsets = [0, 0, 16], sizes = [4, 8, 16], strides = [1, 1, 1]} : vector<4x8x48xf32> to vector<4x8x16xf32>
    %142 = vector.extract_strided_slice %139 {offsets = [0, 0, 32], sizes = [4, 8, 16], strides = [1, 1, 1]} : vector<4x8x48xf32> to vector<4x8x16xf32>
    "tpu.trace_start"() <{level = 10 : i32, message = "gqd,gkd->gqk"}> : () -> ()
    %cst_73 = arith.constant dense<0.000000e+00> : vector<4x8x8xf32>
    %143 = tpu.matmul %140, %141, %cst_73 {dimension_numbers = #tpu.dot_dimension_numbers<[2], [2], [1], [1], [0, 0, 0, 1, 1, 1], [0], [0]>} : vector<4x8x16xf32>, vector<4x8x16xf32>, vector<4x8x8xf32> -> vector<4x8x8xf32>
    "tpu.trace_stop"() : () -> ()
    %cst_74 = arith.constant 2.500000e-01 : f32
    %144 = vector.broadcast %cst_74 : f32 to vector<4x8x8xf32>
    %145 = arith.mulf %143, %144 : vector<4x8x8xf32>
    %146 = vector.broadcast %1 : vector<4x1x8xf32> to vector<4x8x8xf32>
    %147 = arith.addf %145, %146 : vector<4x8x8xf32>
    %cst_75 = arith.constant dense<0xFF800000> : vector<4x8xf32>
    %148 = vector.multi_reduction <maximumf>, %147, %cst_75 [2] : vector<4x8x8xf32> to vector<4x8xf32>
    %149 = vector.shape_cast %148 : vector<4x8xf32> to vector<4x8x1xf32>
    %150 = vector.broadcast %149 : vector<4x8x1xf32> to vector<4x8x8xf32>
    %151 = arith.subf %147, %150 : vector<4x8x8xf32>
    %152 = math.exp %151 : vector<4x8x8xf32>
    %cst_76 = arith.constant dense<0.000000e+00> : vector<4x8xf32>
    %153 = vector.multi_reduction <add>, %152, %cst_76 [2] : vector<4x8x8xf32> to vector<4x8xf32>
    %154 = vector.shape_cast %153 : vector<4x8xf32> to vector<4x8x1xf32>
    %155 = tpu.reciprocal %154 {approx = true} : vector<4x8x1xf32> -> vector<4x8x1xf32>
    %156 = vector.broadcast %155 : vector<4x8x1xf32> to vector<4x8x8xf32>
    %157 = arith.mulf %152, %156 : vector<4x8x8xf32>
    "tpu.trace_start"() <{level = 10 : i32, message = "gqk,gkd->gqd"}> : () -> ()
    %cst_77 = arith.constant dense<0.000000e+00> : vector<4x8x16xf32>
    %158 = tpu.matmul %157, %142, %cst_77 {dimension_numbers = #tpu.dot_dimension_numbers<[2], [1], [1], [2], [0, 0, 0, 1, 1, 2], [0], [0]>} : vector<4x8x8xf32>, vector<4x8x16xf32>, vector<4x8x16xf32> -> vector<4x8x16xf32>
    "tpu.trace_stop"() : () -> ()
    %c1_78 = arith.constant 1 : index
    %c0_79 = arith.constant 0 : index
    %c0_80 = arith.constant 0 : index
    %c0_81 = arith.constant 0 : index
    %159 = vector.load %arg8[%c1_78, %c0_79, %c0_80, %c0_81] : memref<4x4x16x32xf32, #tpu.memory_space<vmem>>, vector<1x4x16x32xf32>
    %160 = vector.shape_cast %159 : vector<1x4x16x32xf32> to vector<4x16x32xf32>
    "tpu.trace_start"() <{level = 10 : i32, message = "gsd,gdh->gsh"}> : () -> ()
    %cst_82 = arith.constant dense<0.000000e+00> : vector<4x8x32xf32>
    %161 = tpu.matmul %158, %160, %cst_82 {dimension_numbers = #tpu.dot_dimension_numbers<[2], [1], [1], [2], [0, 0, 0, 1, 1, 2], [0], [0]>} : vector<4x8x16xf32>, vector<4x16x32xf32>, vector<4x8x32xf32> -> vector<4x8x32xf32>
    "tpu.trace_stop"() : () -> ()
    %162 = vector.shape_cast %161 : vector<4x8x32xf32> to vector<2x2x8x32xf32>
    %163 = vector.extract_strided_slice %162 {offsets = [0, 0, 0, 0], sizes = [1, 2, 8, 32], strides = [1, 1, 1, 1]} : vector<2x2x8x32xf32> to vector<1x2x8x32xf32>
    %164 = vector.shape_cast %163 : vector<1x2x8x32xf32> to vector<2x8x32xf32>
    %165 = vector.extract_strided_slice %162 {offsets = [1, 0, 0, 0], sizes = [1, 2, 8, 32], strides = [1, 1, 1, 1]} : vector<2x2x8x32xf32> to vector<1x2x8x32xf32>
    %166 = vector.shape_cast %165 : vector<1x2x8x32xf32> to vector<2x8x32xf32>
    %167 = arith.addf %164, %166 : vector<2x8x32xf32>
    %168 = vector.shape_cast %167 : vector<2x8x32xf32> to vector<16x32xf32>
    %c1_83 = arith.constant 1 : index
    %c0_84 = arith.constant 0 : index
    %c0_85 = arith.constant 0 : index
    %169 = vector.load %arg9[%c1_83, %c0_84, %c0_85] : memref<4x1x32xf32, #tpu.memory_space<vmem>>, vector<1x1x32xf32>
    %170 = vector.shape_cast %169 : vector<1x1x32xf32> to vector<1x32xf32>
    %171 = vector.broadcast %170 : vector<1x32xf32> to vector<16x32xf32>
    %172 = arith.addf %168, %171 : vector<16x32xf32>
    %173 = arith.addf %127, %172 : vector<16x32xf32>
    %c1_86 = arith.constant 1 : index
    %c0_87 = arith.constant 0 : index
    %c0_88 = arith.constant 0 : index
    %174 = vector.load %arg10[%c1_86, %c0_87, %c0_88] : memref<4x1x32xf32, #tpu.memory_space<vmem>>, vector<1x1x32xf32>
    %175 = vector.shape_cast %174 : vector<1x1x32xf32> to vector<1x32xf32>
    %c1_89 = arith.constant 1 : index
    %c0_90 = arith.constant 0 : index
    %c0_91 = arith.constant 0 : index
    %176 = vector.load %arg11[%c1_89, %c0_90, %c0_91] : memref<4x1x32xf32, #tpu.memory_space<vmem>>, vector<1x1x32xf32>
    %177 = vector.shape_cast %176 : vector<1x1x32xf32> to vector<1x32xf32>
    %cst_92 = arith.constant dense<0.000000e+00> : vector<16xf32>
    %178 = vector.multi_reduction <add>, %173, %cst_92 [1] : vector<16x32xf32> to vector<16xf32>
    %179 = vector.shape_cast %178 : vector<16xf32> to vector<16x1xf32>
    %cst_93 = arith.constant 3.200000e+01 : f32
    %180 = vector.broadcast %cst_93 : f32 to vector<16x1xf32>
    %181 = arith.divf %179, %180 : vector<16x1xf32>
    %182 = vector.broadcast %181 : vector<16x1xf32> to vector<16x32xf32>
    %183 = arith.subf %173, %182 : vector<16x32xf32>
    %184 = arith.mulf %183, %183 : vector<16x32xf32>
    %cst_94 = arith.constant dense<0.000000e+00> : vector<16xf32>
    %185 = vector.multi_reduction <add>, %184, %cst_94 [1] : vector<16x32xf32> to vector<16xf32>
    %186 = vector.shape_cast %185 : vector<16xf32> to vector<16x1xf32>
    %cst_95 = arith.constant 3.200000e+01 : f32
    %187 = vector.broadcast %cst_95 : f32 to vector<16x1xf32>
    %188 = arith.divf %186, %187 : vector<16x1xf32>
    %189 = vector.broadcast %181 : vector<16x1xf32> to vector<16x32xf32>
    %190 = arith.subf %173, %189 : vector<16x32xf32>
    %cst_96 = arith.constant 9.99999996E-13 : f32
    %191 = vector.broadcast %cst_96 : f32 to vector<16x1xf32>
    %192 = arith.addf %188, %191 : vector<16x1xf32>
    %193 = math.rsqrt %192 : vector<16x1xf32>
    %194 = vector.broadcast %193 : vector<16x1xf32> to vector<16x32xf32>
    %195 = arith.mulf %190, %194 : vector<16x32xf32>
    %196 = vector.broadcast %175 : vector<1x32xf32> to vector<16x32xf32>
    %197 = arith.mulf %195, %196 : vector<16x32xf32>
    %198 = vector.broadcast %177 : vector<1x32xf32> to vector<16x32xf32>
    %199 = arith.addf %197, %198 : vector<16x32xf32>
    %c1_97 = arith.constant 1 : index
    %c0_98 = arith.constant 0 : index
    %c0_99 = arith.constant 0 : index
    %200 = vector.load %arg12[%c1_97, %c0_98, %c0_99] : memref<4x32x64xf32, #tpu.memory_space<vmem>>, vector<1x32x64xf32>
    %201 = vector.shape_cast %200 : vector<1x32x64xf32> to vector<32x64xf32>
    %cst_100 = arith.constant dense<0.000000e+00> : vector<16x64xf32>
    %202 = tpu.matmul %199, %201, %cst_100 {dimension_numbers = #tpu.dot_dimension_numbers<[1], [0], [0], [1], [0, 0, 1, 1], [], []>} : vector<16x32xf32>, vector<32x64xf32>, vector<16x64xf32> -> vector<16x64xf32>
    %c1_101 = arith.constant 1 : index
    %c0_102 = arith.constant 0 : index
    %c0_103 = arith.constant 0 : index
    %203 = vector.load %arg13[%c1_101, %c0_102, %c0_103] : memref<4x1x64xf32, #tpu.memory_space<vmem>>, vector<1x1x64xf32>
    %204 = vector.shape_cast %203 : vector<1x1x64xf32> to vector<1x64xf32>
    %205 = vector.broadcast %204 : vector<1x64xf32> to vector<16x64xf32>
    %206 = arith.addf %202, %205 : vector<16x64xf32>
    %cst_104 = arith.constant 5.000000e-01 : f32
    %207 = vector.broadcast %cst_104 : f32 to vector<16x64xf32>
    %208 = arith.mulf %207, %206 : vector<16x64xf32>
    %cst_105 = arith.constant 4.471500e-02 : f32
    %209 = vector.broadcast %cst_105 : f32 to vector<16x64xf32>
    %210 = arith.mulf %209, %206 : vector<16x64xf32>
    %211 = arith.mulf %210, %206 : vector<16x64xf32>
    %212 = arith.mulf %211, %206 : vector<16x64xf32>
    %213 = arith.addf %206, %212 : vector<16x64xf32>
    %cst_106 = arith.constant 0.797884583 : f32
    %214 = vector.broadcast %cst_106 : f32 to vector<16x64xf32>
    %215 = arith.mulf %214, %213 : vector<16x64xf32>
    %216 = math.tanh %215 : vector<16x64xf32>
    %cst_107 = arith.constant 1.000000e+00 : f32
    %217 = vector.broadcast %cst_107 : f32 to vector<16x64xf32>
    %218 = arith.addf %217, %216 : vector<16x64xf32>
    %219 = arith.mulf %208, %218 : vector<16x64xf32>
    %c1_108 = arith.constant 1 : index
    %c0_109 = arith.constant 0 : index
    %c0_110 = arith.constant 0 : index
    %220 = vector.load %arg14[%c1_108, %c0_109, %c0_110] : memref<4x64x32xf32, #tpu.memory_space<vmem>>, vector<1x64x32xf32>
    %221 = vector.shape_cast %220 : vector<1x64x32xf32> to vector<64x32xf32>
    %cst_111 = arith.constant dense<0.000000e+00> : vector<16x32xf32>
    %222 = tpu.matmul %219, %221, %cst_111 {dimension_numbers = #tpu.dot_dimension_numbers<[1], [0], [0], [1], [0, 0, 1, 1], [], []>} : vector<16x64xf32>, vector<64x32xf32>, vector<16x32xf32> -> vector<16x32xf32>
    %c1_112 = arith.constant 1 : index
    %c0_113 = arith.constant 0 : index
    %c0_114 = arith.constant 0 : index
    %223 = vector.load %arg15[%c1_112, %c0_113, %c0_114] : memref<4x1x32xf32, #tpu.memory_space<vmem>>, vector<1x1x32xf32>
    %224 = vector.shape_cast %223 : vector<1x1x32xf32> to vector<1x32xf32>
    %225 = vector.broadcast %224 : vector<1x32xf32> to vector<16x32xf32>
    %226 = arith.addf %222, %225 : vector<16x32xf32>
    %227 = arith.addf %199, %226 : vector<16x32xf32>
    %c1_115 = arith.constant 1 : index
    %c0_116 = arith.constant 0 : index
    %c0_117 = arith.constant 0 : index
    %228 = vector.load %arg16[%c1_115, %c0_116, %c0_117] : memref<4x1x32xf32, #tpu.memory_space<vmem>>, vector<1x1x32xf32>
    %229 = vector.shape_cast %228 : vector<1x1x32xf32> to vector<1x32xf32>
    %c1_118 = arith.constant 1 : index
    %c0_119 = arith.constant 0 : index
    %c0_120 = arith.constant 0 : index
    %230 = vector.load %arg17[%c1_118, %c0_119, %c0_120] : memref<4x1x32xf32, #tpu.memory_space<vmem>>, vector<1x1x32xf32>
    %231 = vector.shape_cast %230 : vector<1x1x32xf32> to vector<1x32xf32>
    %cst_121 = arith.constant dense<0.000000e+00> : vector<16xf32>
    %232 = vector.multi_reduction <add>, %227, %cst_121 [1] : vector<16x32xf32> to vector<16xf32>
    %233 = vector.shape_cast %232 : vector<16xf32> to vector<16x1xf32>
    %cst_122 = arith.constant 3.200000e+01 : f32
    %234 = vector.broadcast %cst_122 : f32 to vector<16x1xf32>
    %235 = arith.divf %233, %234 : vector<16x1xf32>
    %236 = vector.broadcast %235 : vector<16x1xf32> to vector<16x32xf32>
    %237 = arith.subf %227, %236 : vector<16x32xf32>
    %238 = arith.mulf %237, %237 : vector<16x32xf32>
    %cst_123 = arith.constant dense<0.000000e+00> : vector<16xf32>
    %239 = vector.multi_reduction <add>, %238, %cst_123 [1] : vector<16x32xf32> to vector<16xf32>
    %240 = vector.shape_cast %239 : vector<16xf32> to vector<16x1xf32>
    %cst_124 = arith.constant 3.200000e+01 : f32
    %241 = vector.broadcast %cst_124 : f32 to vector<16x1xf32>
    %242 = arith.divf %240, %241 : vector<16x1xf32>
    %243 = vector.broadcast %235 : vector<16x1xf32> to vector<16x32xf32>
    %244 = arith.subf %227, %243 : vector<16x32xf32>
    %cst_125 = arith.constant 9.99999996E-13 : f32
    %245 = vector.broadcast %cst_125 : f32 to vector<16x1xf32>
    %246 = arith.addf %242, %245 : vector<16x1xf32>
    %247 = math.rsqrt %246 : vector<16x1xf32>
    %248 = vector.broadcast %247 : vector<16x1xf32> to vector<16x32xf32>
    %249 = arith.mulf %244, %248 : vector<16x32xf32>
    %250 = vector.broadcast %229 : vector<1x32xf32> to vector<16x32xf32>
    %251 = arith.mulf %249, %250 : vector<16x32xf32>
    %252 = vector.broadcast %231 : vector<1x32xf32> to vector<16x32xf32>
    %253 = arith.addf %251, %252 : vector<16x32xf32>
    %254 = vector.extract_strided_slice %253 {offsets = [0, 0], sizes = [1, 32], strides = [1, 1]} : vector<16x32xf32> to vector<1x32xf32>
    %255 = vector.extract_strided_slice %253 {offsets = [8, 0], sizes = [1, 32], strides = [1, 1]} : vector<16x32xf32> to vector<1x32xf32>
    %256 = tpu.concatenate %254, %255 in 0 : vector<1x32xf32>, vector<1x32xf32> -> vector<2x32xf32>
    %c0_126 = arith.constant 0 : index
    %c0_127 = arith.constant 0 : index
    %257 = vector.load %arg1[%c0_126, %c0_127] : memref<16x32xf32, #tpu.memory_space<vmem>>, vector<16x32xf32>
    %c0_128 = arith.constant 0 : index
    %c0_129 = arith.constant 0 : index
    %c0_130 = arith.constant 0 : index
    %258 = vector.load %arg3[%c0_128, %c0_129, %c0_130] : memref<4x1x8xf32, #tpu.memory_space<vmem>>, vector<4x1x8xf32>
    %259 = vector.shape_cast %257 : vector<16x32xf32> to vector<2x8x32xf32>
    %260 = vector.shape_cast %259 : vector<2x8x32xf32> to vector<1x2x8x32xf32>
    %261 = vector.shape_cast %260 : vector<1x2x8x32xf32> to vector<1x2x8x32xf32>
    %262 = vector.broadcast %261 : vector<1x2x8x32xf32> to vector<2x2x8x32xf32>
    %263 = vector.shape_cast %262 : vector<2x2x8x32xf32> to vector<4x8x32xf32>
    %c2 = arith.constant 2 : index
    %c0_131 = arith.constant 0 : index
    %c0_132 = arith.constant 0 : index
    %c0_133 = arith.constant 0 : index
    %264 = vector.load %arg6[%c2, %c0_131, %c0_132, %c0_133] : memref<4x4x32x48xf32, #tpu.memory_space<vmem>>, vector<1x4x32x48xf32>
    %265 = vector.shape_cast %264 : vector<1x4x32x48xf32> to vector<4x32x48xf32>
    "tpu.trace_start"() <{level = 10 : i32, message = "gsc,gcf->gsf"}> : () -> ()
    %cst_134 = arith.constant dense<0.000000e+00> : vector<4x8x48xf32>
    %266 = tpu.matmul %263, %265, %cst_134 {dimension_numbers = #tpu.dot_dimension_numbers<[2], [1], [1], [2], [0, 0, 0, 1, 1, 2], [0], [0]>} : vector<4x8x32xf32>, vector<4x32x48xf32>, vector<4x8x48xf32> -> vector<4x8x48xf32>
    "tpu.trace_stop"() : () -> ()
    %c2_135 = arith.constant 2 : index
    %c0_136 = arith.constant 0 : index
    %c0_137 = arith.constant 0 : index
    %c0_138 = arith.constant 0 : index
    %267 = vector.load %arg7[%c2_135, %c0_136, %c0_137, %c0_138] : memref<4x4x1x48xf32, #tpu.memory_space<vmem>>, vector<1x4x1x48xf32>
    %268 = vector.shape_cast %267 : vector<1x4x1x48xf32> to vector<4x1x48xf32>
    %269 = vector.broadcast %268 : vector<4x1x48xf32> to vector<4x8x48xf32>
    %270 = arith.addf %266, %269 : vector<4x8x48xf32>
    %271 = vector.extract_strided_slice %270 {offsets = [0, 0, 0], sizes = [4, 8, 16], strides = [1, 1, 1]} : vector<4x8x48xf32> to vector<4x8x16xf32>
    %272 = vector.extract_strided_slice %270 {offsets = [0, 0, 16], sizes = [4, 8, 16], strides = [1, 1, 1]} : vector<4x8x48xf32> to vector<4x8x16xf32>
    %273 = vector.extract_strided_slice %270 {offsets = [0, 0, 32], sizes = [4, 8, 16], strides = [1, 1, 1]} : vector<4x8x48xf32> to vector<4x8x16xf32>
    "tpu.trace_start"() <{level = 10 : i32, message = "gqd,gkd->gqk"}> : () -> ()
    %cst_139 = arith.constant dense<0.000000e+00> : vector<4x8x8xf32>
    %274 = tpu.matmul %271, %272, %cst_139 {dimension_numbers = #tpu.dot_dimension_numbers<[2], [2], [1], [1], [0, 0, 0, 1, 1, 1], [0], [0]>} : vector<4x8x16xf32>, vector<4x8x16xf32>, vector<4x8x8xf32> -> vector<4x8x8xf32>
    "tpu.trace_stop"() : () -> ()
    %cst_140 = arith.constant 2.500000e-01 : f32
    %275 = vector.broadcast %cst_140 : f32 to vector<4x8x8xf32>
    %276 = arith.mulf %274, %275 : vector<4x8x8xf32>
    %277 = vector.broadcast %258 : vector<4x1x8xf32> to vector<4x8x8xf32>
    %278 = arith.addf %276, %277 : vector<4x8x8xf32>
    %cst_141 = arith.constant dense<0xFF800000> : vector<4x8xf32>
    %279 = vector.multi_reduction <maximumf>, %278, %cst_141 [2] : vector<4x8x8xf32> to vector<4x8xf32>
    %280 = vector.shape_cast %279 : vector<4x8xf32> to vector<4x8x1xf32>
    %281 = vector.broadcast %280 : vector<4x8x1xf32> to vector<4x8x8xf32>
    %282 = arith.subf %278, %281 : vector<4x8x8xf32>
    %283 = math.exp %282 : vector<4x8x8xf32>
    %cst_142 = arith.constant dense<0.000000e+00> : vector<4x8xf32>
    %284 = vector.multi_reduction <add>, %283, %cst_142 [2] : vector<4x8x8xf32> to vector<4x8xf32>
    %285 = vector.shape_cast %284 : vector<4x8xf32> to vector<4x8x1xf32>
    %286 = tpu.reciprocal %285 {approx = true} : vector<4x8x1xf32> -> vector<4x8x1xf32>
    %287 = vector.broadcast %286 : vector<4x8x1xf32> to vector<4x8x8xf32>
    %288 = arith.mulf %283, %287 : vector<4x8x8xf32>
    "tpu.trace_start"() <{level = 10 : i32, message = "gqk,gkd->gqd"}> : () -> ()
    %cst_143 = arith.constant dense<0.000000e+00> : vector<4x8x16xf32>
    %289 = tpu.matmul %288, %273, %cst_143 {dimension_numbers = #tpu.dot_dimension_numbers<[2], [1], [1], [2], [0, 0, 0, 1, 1, 2], [0], [0]>} : vector<4x8x8xf32>, vector<4x8x16xf32>, vector<4x8x16xf32> -> vector<4x8x16xf32>
    "tpu.trace_stop"() : () -> ()
    %c2_144 = arith.constant 2 : index
    %c0_145 = arith.constant 0 : index
    %c0_146 = arith.constant 0 : index
    %c0_147 = arith.constant 0 : index
    %290 = vector.load %arg8[%c2_144, %c0_145, %c0_146, %c0_147] : memref<4x4x16x32xf32, #tpu.memory_space<vmem>>, vector<1x4x16x32xf32>
    %291 = vector.shape_cast %290 : vector<1x4x16x32xf32> to vector<4x16x32xf32>
    "tpu.trace_start"() <{level = 10 : i32, message = "gsd,gdh->gsh"}> : () -> ()
    %cst_148 = arith.constant dense<0.000000e+00> : vector<4x8x32xf32>
    %292 = tpu.matmul %289, %291, %cst_148 {dimension_numbers = #tpu.dot_dimension_numbers<[2], [1], [1], [2], [0, 0, 0, 1, 1, 2], [0], [0]>} : vector<4x8x16xf32>, vector<4x16x32xf32>, vector<4x8x32xf32> -> vector<4x8x32xf32>
    "tpu.trace_stop"() : () -> ()
    %293 = vector.shape_cast %292 : vector<4x8x32xf32> to vector<2x2x8x32xf32>
    %294 = vector.extract_strided_slice %293 {offsets = [0, 0, 0, 0], sizes = [1, 2, 8, 32], strides = [1, 1, 1, 1]} : vector<2x2x8x32xf32> to vector<1x2x8x32xf32>
    %295 = vector.shape_cast %294 : vector<1x2x8x32xf32> to vector<2x8x32xf32>
    %296 = vector.extract_strided_slice %293 {offsets = [1, 0, 0, 0], sizes = [1, 2, 8, 32], strides = [1, 1, 1, 1]} : vector<2x2x8x32xf32> to vector<1x2x8x32xf32>
    %297 = vector.shape_cast %296 : vector<1x2x8x32xf32> to vector<2x8x32xf32>
    %298 = arith.addf %295, %297 : vector<2x8x32xf32>
    %299 = vector.shape_cast %298 : vector<2x8x32xf32> to vector<16x32xf32>
    %c2_149 = arith.constant 2 : index
    %c0_150 = arith.constant 0 : index
    %c0_151 = arith.constant 0 : index
    %300 = vector.load %arg9[%c2_149, %c0_150, %c0_151] : memref<4x1x32xf32, #tpu.memory_space<vmem>>, vector<1x1x32xf32>
    %301 = vector.shape_cast %300 : vector<1x1x32xf32> to vector<1x32xf32>
    %302 = vector.broadcast %301 : vector<1x32xf32> to vector<16x32xf32>
    %303 = arith.addf %299, %302 : vector<16x32xf32>
    %304 = arith.addf %257, %303 : vector<16x32xf32>
    %c2_152 = arith.constant 2 : index
    %c0_153 = arith.constant 0 : index
    %c0_154 = arith.constant 0 : index
    %305 = vector.load %arg10[%c2_152, %c0_153, %c0_154] : memref<4x1x32xf32, #tpu.memory_space<vmem>>, vector<1x1x32xf32>
    %306 = vector.shape_cast %305 : vector<1x1x32xf32> to vector<1x32xf32>
    %c2_155 = arith.constant 2 : index
    %c0_156 = arith.constant 0 : index
    %c0_157 = arith.constant 0 : index
    %307 = vector.load %arg11[%c2_155, %c0_156, %c0_157] : memref<4x1x32xf32, #tpu.memory_space<vmem>>, vector<1x1x32xf32>
    %308 = vector.shape_cast %307 : vector<1x1x32xf32> to vector<1x32xf32>
    %cst_158 = arith.constant dense<0.000000e+00> : vector<16xf32>
    %309 = vector.multi_reduction <add>, %304, %cst_158 [1] : vector<16x32xf32> to vector<16xf32>
    %310 = vector.shape_cast %309 : vector<16xf32> to vector<16x1xf32>
    %cst_159 = arith.constant 3.200000e+01 : f32
    %311 = vector.broadcast %cst_159 : f32 to vector<16x1xf32>
    %312 = arith.divf %310, %311 : vector<16x1xf32>
    %313 = vector.broadcast %312 : vector<16x1xf32> to vector<16x32xf32>
    %314 = arith.subf %304, %313 : vector<16x32xf32>
    %315 = arith.mulf %314, %314 : vector<16x32xf32>
    %cst_160 = arith.constant dense<0.000000e+00> : vector<16xf32>
    %316 = vector.multi_reduction <add>, %315, %cst_160 [1] : vector<16x32xf32> to vector<16xf32>
    %317 = vector.shape_cast %316 : vector<16xf32> to vector<16x1xf32>
    %cst_161 = arith.constant 3.200000e+01 : f32
    %318 = vector.broadcast %cst_161 : f32 to vector<16x1xf32>
    %319 = arith.divf %317, %318 : vector<16x1xf32>
    %320 = vector.broadcast %312 : vector<16x1xf32> to vector<16x32xf32>
    %321 = arith.subf %304, %320 : vector<16x32xf32>
    %cst_162 = arith.constant 9.99999996E-13 : f32
    %322 = vector.broadcast %cst_162 : f32 to vector<16x1xf32>
    %323 = arith.addf %319, %322 : vector<16x1xf32>
    %324 = math.rsqrt %323 : vector<16x1xf32>
    %325 = vector.broadcast %324 : vector<16x1xf32> to vector<16x32xf32>
    %326 = arith.mulf %321, %325 : vector<16x32xf32>
    %327 = vector.broadcast %306 : vector<1x32xf32> to vector<16x32xf32>
    %328 = arith.mulf %326, %327 : vector<16x32xf32>
    %329 = vector.broadcast %308 : vector<1x32xf32> to vector<16x32xf32>
    %330 = arith.addf %328, %329 : vector<16x32xf32>
    %c2_163 = arith.constant 2 : index
    %c0_164 = arith.constant 0 : index
    %c0_165 = arith.constant 0 : index
    %331 = vector.load %arg12[%c2_163, %c0_164, %c0_165] : memref<4x32x64xf32, #tpu.memory_space<vmem>>, vector<1x32x64xf32>
    %332 = vector.shape_cast %331 : vector<1x32x64xf32> to vector<32x64xf32>
    %cst_166 = arith.constant dense<0.000000e+00> : vector<16x64xf32>
    %333 = tpu.matmul %330, %332, %cst_166 {dimension_numbers = #tpu.dot_dimension_numbers<[1], [0], [0], [1], [0, 0, 1, 1], [], []>} : vector<16x32xf32>, vector<32x64xf32>, vector<16x64xf32> -> vector<16x64xf32>
    %c2_167 = arith.constant 2 : index
    %c0_168 = arith.constant 0 : index
    %c0_169 = arith.constant 0 : index
    %334 = vector.load %arg13[%c2_167, %c0_168, %c0_169] : memref<4x1x64xf32, #tpu.memory_space<vmem>>, vector<1x1x64xf32>
    %335 = vector.shape_cast %334 : vector<1x1x64xf32> to vector<1x64xf32>
    %336 = vector.broadcast %335 : vector<1x64xf32> to vector<16x64xf32>
    %337 = arith.addf %333, %336 : vector<16x64xf32>
    %cst_170 = arith.constant 5.000000e-01 : f32
    %338 = vector.broadcast %cst_170 : f32 to vector<16x64xf32>
    %339 = arith.mulf %338, %337 : vector<16x64xf32>
    %cst_171 = arith.constant 4.471500e-02 : f32
    %340 = vector.broadcast %cst_171 : f32 to vector<16x64xf32>
    %341 = arith.mulf %340, %337 : vector<16x64xf32>
    %342 = arith.mulf %341, %337 : vector<16x64xf32>
    %343 = arith.mulf %342, %337 : vector<16x64xf32>
    %344 = arith.addf %337, %343 : vector<16x64xf32>
    %cst_172 = arith.constant 0.797884583 : f32
    %345 = vector.broadcast %cst_172 : f32 to vector<16x64xf32>
    %346 = arith.mulf %345, %344 : vector<16x64xf32>
    %347 = math.tanh %346 : vector<16x64xf32>
    %cst_173 = arith.constant 1.000000e+00 : f32
    %348 = vector.broadcast %cst_173 : f32 to vector<16x64xf32>
    %349 = arith.addf %348, %347 : vector<16x64xf32>
    %350 = arith.mulf %339, %349 : vector<16x64xf32>
    %c2_174 = arith.constant 2 : index
    %c0_175 = arith.constant 0 : index
    %c0_176 = arith.constant 0 : index
    %351 = vector.load %arg14[%c2_174, %c0_175, %c0_176] : memref<4x64x32xf32, #tpu.memory_space<vmem>>, vector<1x64x32xf32>
    %352 = vector.shape_cast %351 : vector<1x64x32xf32> to vector<64x32xf32>
    %cst_177 = arith.constant dense<0.000000e+00> : vector<16x32xf32>
    %353 = tpu.matmul %350, %352, %cst_177 {dimension_numbers = #tpu.dot_dimension_numbers<[1], [0], [0], [1], [0, 0, 1, 1], [], []>} : vector<16x64xf32>, vector<64x32xf32>, vector<16x32xf32> -> vector<16x32xf32>
    %c2_178 = arith.constant 2 : index
    %c0_179 = arith.constant 0 : index
    %c0_180 = arith.constant 0 : index
    %354 = vector.load %arg15[%c2_178, %c0_179, %c0_180] : memref<4x1x32xf32, #tpu.memory_space<vmem>>, vector<1x1x32xf32>
    %355 = vector.shape_cast %354 : vector<1x1x32xf32> to vector<1x32xf32>
    %356 = vector.broadcast %355 : vector<1x32xf32> to vector<16x32xf32>
    %357 = arith.addf %353, %356 : vector<16x32xf32>
    %358 = arith.addf %330, %357 : vector<16x32xf32>
    %c2_181 = arith.constant 2 : index
    %c0_182 = arith.constant 0 : index
    %c0_183 = arith.constant 0 : index
    %359 = vector.load %arg16[%c2_181, %c0_182, %c0_183] : memref<4x1x32xf32, #tpu.memory_space<vmem>>, vector<1x1x32xf32>
    %360 = vector.shape_cast %359 : vector<1x1x32xf32> to vector<1x32xf32>
    %c2_184 = arith.constant 2 : index
    %c0_185 = arith.constant 0 : index
    %c0_186 = arith.constant 0 : index
    %361 = vector.load %arg17[%c2_184, %c0_185, %c0_186] : memref<4x1x32xf32, #tpu.memory_space<vmem>>, vector<1x1x32xf32>
    %362 = vector.shape_cast %361 : vector<1x1x32xf32> to vector<1x32xf32>
    %cst_187 = arith.constant dense<0.000000e+00> : vector<16xf32>
    %363 = vector.multi_reduction <add>, %358, %cst_187 [1] : vector<16x32xf32> to vector<16xf32>
    %364 = vector.shape_cast %363 : vector<16xf32> to vector<16x1xf32>
    %cst_188 = arith.constant 3.200000e+01 : f32
    %365 = vector.broadcast %cst_188 : f32 to vector<16x1xf32>
    %366 = arith.divf %364, %365 : vector<16x1xf32>
    %367 = vector.broadcast %366 : vector<16x1xf32> to vector<16x32xf32>
    %368 = arith.subf %358, %367 : vector<16x32xf32>
    %369 = arith.mulf %368, %368 : vector<16x32xf32>
    %cst_189 = arith.constant dense<0.000000e+00> : vector<16xf32>
    %370 = vector.multi_reduction <add>, %369, %cst_189 [1] : vector<16x32xf32> to vector<16xf32>
    %371 = vector.shape_cast %370 : vector<16xf32> to vector<16x1xf32>
    %cst_190 = arith.constant 3.200000e+01 : f32
    %372 = vector.broadcast %cst_190 : f32 to vector<16x1xf32>
    %373 = arith.divf %371, %372 : vector<16x1xf32>
    %374 = vector.broadcast %366 : vector<16x1xf32> to vector<16x32xf32>
    %375 = arith.subf %358, %374 : vector<16x32xf32>
    %cst_191 = arith.constant 9.99999996E-13 : f32
    %376 = vector.broadcast %cst_191 : f32 to vector<16x1xf32>
    %377 = arith.addf %373, %376 : vector<16x1xf32>
    %378 = math.rsqrt %377 : vector<16x1xf32>
    %379 = vector.broadcast %378 : vector<16x1xf32> to vector<16x32xf32>
    %380 = arith.mulf %375, %379 : vector<16x32xf32>
    %381 = vector.broadcast %360 : vector<1x32xf32> to vector<16x32xf32>
    %382 = arith.mulf %380, %381 : vector<16x32xf32>
    %383 = vector.broadcast %362 : vector<1x32xf32> to vector<16x32xf32>
    %384 = arith.addf %382, %383 : vector<16x32xf32>
    %385 = vector.shape_cast %384 : vector<16x32xf32> to vector<2x8x32xf32>
    %386 = vector.shape_cast %385 : vector<2x8x32xf32> to vector<1x2x8x32xf32>
    %387 = vector.shape_cast %386 : vector<1x2x8x32xf32> to vector<1x2x8x32xf32>
    %388 = vector.broadcast %387 : vector<1x2x8x32xf32> to vector<2x2x8x32xf32>
    %389 = vector.shape_cast %388 : vector<2x2x8x32xf32> to vector<4x8x32xf32>
    %c3 = arith.constant 3 : index
    %c0_192 = arith.constant 0 : index
    %c0_193 = arith.constant 0 : index
    %c0_194 = arith.constant 0 : index
    %390 = vector.load %arg6[%c3, %c0_192, %c0_193, %c0_194] : memref<4x4x32x48xf32, #tpu.memory_space<vmem>>, vector<1x4x32x48xf32>
    %391 = vector.shape_cast %390 : vector<1x4x32x48xf32> to vector<4x32x48xf32>
    "tpu.trace_start"() <{level = 10 : i32, message = "gsc,gcf->gsf"}> : () -> ()
    %cst_195 = arith.constant dense<0.000000e+00> : vector<4x8x48xf32>
    %392 = tpu.matmul %389, %391, %cst_195 {dimension_numbers = #tpu.dot_dimension_numbers<[2], [1], [1], [2], [0, 0, 0, 1, 1, 2], [0], [0]>} : vector<4x8x32xf32>, vector<4x32x48xf32>, vector<4x8x48xf32> -> vector<4x8x48xf32>
    "tpu.trace_stop"() : () -> ()
    %c3_196 = arith.constant 3 : index
    %c0_197 = arith.constant 0 : index
    %c0_198 = arith.constant 0 : index
    %c0_199 = arith.constant 0 : index
    %393 = vector.load %arg7[%c3_196, %c0_197, %c0_198, %c0_199] : memref<4x4x1x48xf32, #tpu.memory_space<vmem>>, vector<1x4x1x48xf32>
    %394 = vector.shape_cast %393 : vector<1x4x1x48xf32> to vector<4x1x48xf32>
    %395 = vector.broadcast %394 : vector<4x1x48xf32> to vector<4x8x48xf32>
    %396 = arith.addf %392, %395 : vector<4x8x48xf32>
    %397 = vector.extract_strided_slice %396 {offsets = [0, 0, 0], sizes = [4, 8, 16], strides = [1, 1, 1]} : vector<4x8x48xf32> to vector<4x8x16xf32>
    %398 = vector.extract_strided_slice %396 {offsets = [0, 0, 16], sizes = [4, 8, 16], strides = [1, 1, 1]} : vector<4x8x48xf32> to vector<4x8x16xf32>
    %399 = vector.extract_strided_slice %396 {offsets = [0, 0, 32], sizes = [4, 8, 16], strides = [1, 1, 1]} : vector<4x8x48xf32> to vector<4x8x16xf32>
    "tpu.trace_start"() <{level = 10 : i32, message = "gqd,gkd->gqk"}> : () -> ()
    %cst_200 = arith.constant dense<0.000000e+00> : vector<4x8x8xf32>
    %400 = tpu.matmul %397, %398, %cst_200 {dimension_numbers = #tpu.dot_dimension_numbers<[2], [2], [1], [1], [0, 0, 0, 1, 1, 1], [0], [0]>} : vector<4x8x16xf32>, vector<4x8x16xf32>, vector<4x8x8xf32> -> vector<4x8x8xf32>
    "tpu.trace_stop"() : () -> ()
    %cst_201 = arith.constant 2.500000e-01 : f32
    %401 = vector.broadcast %cst_201 : f32 to vector<4x8x8xf32>
    %402 = arith.mulf %400, %401 : vector<4x8x8xf32>
    %403 = vector.broadcast %258 : vector<4x1x8xf32> to vector<4x8x8xf32>
    %404 = arith.addf %402, %403 : vector<4x8x8xf32>
    %cst_202 = arith.constant dense<0xFF800000> : vector<4x8xf32>
    %405 = vector.multi_reduction <maximumf>, %404, %cst_202 [2] : vector<4x8x8xf32> to vector<4x8xf32>
    %406 = vector.shape_cast %405 : vector<4x8xf32> to vector<4x8x1xf32>
    %407 = vector.broadcast %406 : vector<4x8x1xf32> to vector<4x8x8xf32>
    %408 = arith.subf %404, %407 : vector<4x8x8xf32>
    %409 = math.exp %408 : vector<4x8x8xf32>
    %cst_203 = arith.constant dense<0.000000e+00> : vector<4x8xf32>
    %410 = vector.multi_reduction <add>, %409, %cst_203 [2] : vector<4x8x8xf32> to vector<4x8xf32>
    %411 = vector.shape_cast %410 : vector<4x8xf32> to vector<4x8x1xf32>
    %412 = tpu.reciprocal %411 {approx = true} : vector<4x8x1xf32> -> vector<4x8x1xf32>
    %413 = vector.broadcast %412 : vector<4x8x1xf32> to vector<4x8x8xf32>
    %414 = arith.mulf %409, %413 : vector<4x8x8xf32>
    "tpu.trace_start"() <{level = 10 : i32, message = "gqk,gkd->gqd"}> : () -> ()
    %cst_204 = arith.constant dense<0.000000e+00> : vector<4x8x16xf32>
    %415 = tpu.matmul %414, %399, %cst_204 {dimension_numbers = #tpu.dot_dimension_numbers<[2], [1], [1], [2], [0, 0, 0, 1, 1, 2], [0], [0]>} : vector<4x8x8xf32>, vector<4x8x16xf32>, vector<4x8x16xf32> -> vector<4x8x16xf32>
    "tpu.trace_stop"() : () -> ()
    %c3_205 = arith.constant 3 : index
    %c0_206 = arith.constant 0 : index
    %c0_207 = arith.constant 0 : index
    %c0_208 = arith.constant 0 : index
    %416 = vector.load %arg8[%c3_205, %c0_206, %c0_207, %c0_208] : memref<4x4x16x32xf32, #tpu.memory_space<vmem>>, vector<1x4x16x32xf32>
    %417 = vector.shape_cast %416 : vector<1x4x16x32xf32> to vector<4x16x32xf32>
    "tpu.trace_start"() <{level = 10 : i32, message = "gsd,gdh->gsh"}> : () -> ()
    %cst_209 = arith.constant dense<0.000000e+00> : vector<4x8x32xf32>
    %418 = tpu.matmul %415, %417, %cst_209 {dimension_numbers = #tpu.dot_dimension_numbers<[2], [1], [1], [2], [0, 0, 0, 1, 1, 2], [0], [0]>} : vector<4x8x16xf32>, vector<4x16x32xf32>, vector<4x8x32xf32> -> vector<4x8x32xf32>
    "tpu.trace_stop"() : () -> ()
    %419 = vector.shape_cast %418 : vector<4x8x32xf32> to vector<2x2x8x32xf32>
    %420 = vector.extract_strided_slice %419 {offsets = [0, 0, 0, 0], sizes = [1, 2, 8, 32], strides = [1, 1, 1, 1]} : vector<2x2x8x32xf32> to vector<1x2x8x32xf32>
    %421 = vector.shape_cast %420 : vector<1x2x8x32xf32> to vector<2x8x32xf32>
    %422 = vector.extract_strided_slice %419 {offsets = [1, 0, 0, 0], sizes = [1, 2, 8, 32], strides = [1, 1, 1, 1]} : vector<2x2x8x32xf32> to vector<1x2x8x32xf32>
    %423 = vector.shape_cast %422 : vector<1x2x8x32xf32> to vector<2x8x32xf32>
    %424 = arith.addf %421, %423 : vector<2x8x32xf32>
    %425 = vector.shape_cast %424 : vector<2x8x32xf32> to vector<16x32xf32>
    %c3_210 = arith.constant 3 : index
    %c0_211 = arith.constant 0 : index
    %c0_212 = arith.constant 0 : index
    %426 = vector.load %arg9[%c3_210, %c0_211, %c0_212] : memref<4x1x32xf32, #tpu.memory_space<vmem>>, vector<1x1x32xf32>
    %427 = vector.shape_cast %426 : vector<1x1x32xf32> to vector<1x32xf32>
    %428 = vector.broadcast %427 : vector<1x32xf32> to vector<16x32xf32>
    %429 = arith.addf %425, %428 : vector<16x32xf32>
    %430 = arith.addf %384, %429 : vector<16x32xf32>
    %c3_213 = arith.constant 3 : index
    %c0_214 = arith.constant 0 : index
    %c0_215 = arith.constant 0 : index
    %431 = vector.load %arg10[%c3_213, %c0_214, %c0_215] : memref<4x1x32xf32, #tpu.memory_space<vmem>>, vector<1x1x32xf32>
    %432 = vector.shape_cast %431 : vector<1x1x32xf32> to vector<1x32xf32>
    %c3_216 = arith.constant 3 : index
    %c0_217 = arith.constant 0 : index
    %c0_218 = arith.constant 0 : index
    %433 = vector.load %arg11[%c3_216, %c0_217, %c0_218] : memref<4x1x32xf32, #tpu.memory_space<vmem>>, vector<1x1x32xf32>
    %434 = vector.shape_cast %433 : vector<1x1x32xf32> to vector<1x32xf32>
    %cst_219 = arith.constant dense<0.000000e+00> : vector<16xf32>
    %435 = vector.multi_reduction <add>, %430, %cst_219 [1] : vector<16x32xf32> to vector<16xf32>
    %436 = vector.shape_cast %435 : vector<16xf32> to vector<16x1xf32>
    %cst_220 = arith.constant 3.200000e+01 : f32
    %437 = vector.broadcast %cst_220 : f32 to vector<16x1xf32>
    %438 = arith.divf %436, %437 : vector<16x1xf32>
    %439 = vector.broadcast %438 : vector<16x1xf32> to vector<16x32xf32>
    %440 = arith.subf %430, %439 : vector<16x32xf32>
    %441 = arith.mulf %440, %440 : vector<16x32xf32>
    %cst_221 = arith.constant dense<0.000000e+00> : vector<16xf32>
    %442 = vector.multi_reduction <add>, %441, %cst_221 [1] : vector<16x32xf32> to vector<16xf32>
    %443 = vector.shape_cast %442 : vector<16xf32> to vector<16x1xf32>
    %cst_222 = arith.constant 3.200000e+01 : f32
    %444 = vector.broadcast %cst_222 : f32 to vector<16x1xf32>
    %445 = arith.divf %443, %444 : vector<16x1xf32>
    %446 = vector.broadcast %438 : vector<16x1xf32> to vector<16x32xf32>
    %447 = arith.subf %430, %446 : vector<16x32xf32>
    %cst_223 = arith.constant 9.99999996E-13 : f32
    %448 = vector.broadcast %cst_223 : f32 to vector<16x1xf32>
    %449 = arith.addf %445, %448 : vector<16x1xf32>
    %450 = math.rsqrt %449 : vector<16x1xf32>
    %451 = vector.broadcast %450 : vector<16x1xf32> to vector<16x32xf32>
    %452 = arith.mulf %447, %451 : vector<16x32xf32>
    %453 = vector.broadcast %432 : vector<1x32xf32> to vector<16x32xf32>
    %454 = arith.mulf %452, %453 : vector<16x32xf32>
    %455 = vector.broadcast %434 : vector<1x32xf32> to vector<16x32xf32>
    %456 = arith.addf %454, %455 : vector<16x32xf32>
    %c3_224 = arith.constant 3 : index
    %c0_225 = arith.constant 0 : index
    %c0_226 = arith.constant 0 : index
    %457 = vector.load %arg12[%c3_224, %c0_225, %c0_226] : memref<4x32x64xf32, #tpu.memory_space<vmem>>, vector<1x32x64xf32>
    %458 = vector.shape_cast %457 : vector<1x32x64xf32> to vector<32x64xf32>
    %cst_227 = arith.constant dense<0.000000e+00> : vector<16x64xf32>
    %459 = tpu.matmul %456, %458, %cst_227 {dimension_numbers = #tpu.dot_dimension_numbers<[1], [0], [0], [1], [0, 0, 1, 1], [], []>} : vector<16x32xf32>, vector<32x64xf32>, vector<16x64xf32> -> vector<16x64xf32>
    %c3_228 = arith.constant 3 : index
    %c0_229 = arith.constant 0 : index
    %c0_230 = arith.constant 0 : index
    %460 = vector.load %arg13[%c3_228, %c0_229, %c0_230] : memref<4x1x64xf32, #tpu.memory_space<vmem>>, vector<1x1x64xf32>
    %461 = vector.shape_cast %460 : vector<1x1x64xf32> to vector<1x64xf32>
    %462 = vector.broadcast %461 : vector<1x64xf32> to vector<16x64xf32>
    %463 = arith.addf %459, %462 : vector<16x64xf32>
    %cst_231 = arith.constant 5.000000e-01 : f32
    %464 = vector.broadcast %cst_231 : f32 to vector<16x64xf32>
    %465 = arith.mulf %464, %463 : vector<16x64xf32>
    %cst_232 = arith.constant 4.471500e-02 : f32
    %466 = vector.broadcast %cst_232 : f32 to vector<16x64xf32>
    %467 = arith.mulf %466, %463 : vector<16x64xf32>
    %468 = arith.mulf %467, %463 : vector<16x64xf32>
    %469 = arith.mulf %468, %463 : vector<16x64xf32>
    %470 = arith.addf %463, %469 : vector<16x64xf32>
    %cst_233 = arith.constant 0.797884583 : f32
    %471 = vector.broadcast %cst_233 : f32 to vector<16x64xf32>
    %472 = arith.mulf %471, %470 : vector<16x64xf32>
    %473 = math.tanh %472 : vector<16x64xf32>
    %cst_234 = arith.constant 1.000000e+00 : f32
    %474 = vector.broadcast %cst_234 : f32 to vector<16x64xf32>
    %475 = arith.addf %474, %473 : vector<16x64xf32>
    %476 = arith.mulf %465, %475 : vector<16x64xf32>
    %c3_235 = arith.constant 3 : index
    %c0_236 = arith.constant 0 : index
    %c0_237 = arith.constant 0 : index
    %477 = vector.load %arg14[%c3_235, %c0_236, %c0_237] : memref<4x64x32xf32, #tpu.memory_space<vmem>>, vector<1x64x32xf32>
    %478 = vector.shape_cast %477 : vector<1x64x32xf32> to vector<64x32xf32>
    %cst_238 = arith.constant dense<0.000000e+00> : vector<16x32xf32>
    %479 = tpu.matmul %476, %478, %cst_238 {dimension_numbers = #tpu.dot_dimension_numbers<[1], [0], [0], [1], [0, 0, 1, 1], [], []>} : vector<16x64xf32>, vector<64x32xf32>, vector<16x32xf32> -> vector<16x32xf32>
    %c3_239 = arith.constant 3 : index
    %c0_240 = arith.constant 0 : index
    %c0_241 = arith.constant 0 : index
    %480 = vector.load %arg15[%c3_239, %c0_240, %c0_241] : memref<4x1x32xf32, #tpu.memory_space<vmem>>, vector<1x1x32xf32>
    %481 = vector.shape_cast %480 : vector<1x1x32xf32> to vector<1x32xf32>
    %482 = vector.broadcast %481 : vector<1x32xf32> to vector<16x32xf32>
    %483 = arith.addf %479, %482 : vector<16x32xf32>
    %484 = arith.addf %456, %483 : vector<16x32xf32>
    %c3_242 = arith.constant 3 : index
    %c0_243 = arith.constant 0 : index
    %c0_244 = arith.constant 0 : index
    %485 = vector.load %arg16[%c3_242, %c0_243, %c0_244] : memref<4x1x32xf32, #tpu.memory_space<vmem>>, vector<1x1x32xf32>
    %486 = vector.shape_cast %485 : vector<1x1x32xf32> to vector<1x32xf32>
    %c3_245 = arith.constant 3 : index
    %c0_246 = arith.constant 0 : index
    %c0_247 = arith.constant 0 : index
    %487 = vector.load %arg17[%c3_245, %c0_246, %c0_247] : memref<4x1x32xf32, #tpu.memory_space<vmem>>, vector<1x1x32xf32>
    %488 = vector.shape_cast %487 : vector<1x1x32xf32> to vector<1x32xf32>
    %cst_248 = arith.constant dense<0.000000e+00> : vector<16xf32>
    %489 = vector.multi_reduction <add>, %484, %cst_248 [1] : vector<16x32xf32> to vector<16xf32>
    %490 = vector.shape_cast %489 : vector<16xf32> to vector<16x1xf32>
    %cst_249 = arith.constant 3.200000e+01 : f32
    %491 = vector.broadcast %cst_249 : f32 to vector<16x1xf32>
    %492 = arith.divf %490, %491 : vector<16x1xf32>
    %493 = vector.broadcast %492 : vector<16x1xf32> to vector<16x32xf32>
    %494 = arith.subf %484, %493 : vector<16x32xf32>
    %495 = arith.mulf %494, %494 : vector<16x32xf32>
    %cst_250 = arith.constant dense<0.000000e+00> : vector<16xf32>
    %496 = vector.multi_reduction <add>, %495, %cst_250 [1] : vector<16x32xf32> to vector<16xf32>
    %497 = vector.shape_cast %496 : vector<16xf32> to vector<16x1xf32>
    %cst_251 = arith.constant 3.200000e+01 : f32
    %498 = vector.broadcast %cst_251 : f32 to vector<16x1xf32>
    %499 = arith.divf %497, %498 : vector<16x1xf32>
    %500 = vector.broadcast %492 : vector<16x1xf32> to vector<16x32xf32>
    %501 = arith.subf %484, %500 : vector<16x32xf32>
    %cst_252 = arith.constant 9.99999996E-13 : f32
    %502 = vector.broadcast %cst_252 : f32 to vector<16x1xf32>
    %503 = arith.addf %499, %502 : vector<16x1xf32>
    %504 = math.rsqrt %503 : vector<16x1xf32>
    %505 = vector.broadcast %504 : vector<16x1xf32> to vector<16x32xf32>
    %506 = arith.mulf %501, %505 : vector<16x32xf32>
    %507 = vector.broadcast %486 : vector<1x32xf32> to vector<16x32xf32>
    %508 = arith.mulf %506, %507 : vector<16x32xf32>
    %509 = vector.broadcast %488 : vector<1x32xf32> to vector<16x32xf32>
    %510 = arith.addf %508, %509 : vector<16x32xf32>
    %511 = vector.extract_strided_slice %510 {offsets = [0, 0], sizes = [1, 32], strides = [1, 1]} : vector<16x32xf32> to vector<1x32xf32>
    %512 = vector.extract_strided_slice %510 {offsets = [8, 0], sizes = [1, 32], strides = [1, 1]} : vector<16x32xf32> to vector<1x32xf32>
    %513 = tpu.concatenate %511, %512 in 0 : vector<1x32xf32>, vector<1x32xf32> -> vector<2x32xf32>
    %c0_253 = arith.constant 0 : index
    %c0_254 = arith.constant 0 : index
    %514 = vector.load %arg4[%c0_253, %c0_254] : memref<2x32xf32, #tpu.memory_space<vmem>>, vector<2x32xf32>
    %c0_255 = arith.constant 0 : index
    %c0_256 = arith.constant 0 : index
    %515 = vector.load %arg5[%c0_255, %c0_256] : memref<2x32xf32, #tpu.memory_space<vmem>>, vector<2x32xf32>
    %c0_257 = arith.constant 0 : index
    %c0_258 = arith.constant 0 : index
    %516 = vector.load %arg19[%c0_257, %c0_258] : memref<1x64xf32, #tpu.memory_space<vmem>>, vector<1x64xf32>
    %c0_259 = arith.constant 0 : index
    %c0_260 = arith.constant 0 : index
    %c0_261 = arith.constant 0 : index
    %517 = vector.load %arg18[%c0_259, %c0_260, %c0_261] : memref<4x32x64xf32, #tpu.memory_space<vmem>>, vector<1x32x64xf32>
    %518 = vector.shape_cast %517 : vector<1x32x64xf32> to vector<32x64xf32>
    %cst_262 = arith.constant dense<0.000000e+00> : vector<2x64xf32>
    %519 = tpu.matmul %514, %518, %cst_262 {dimension_numbers = #tpu.dot_dimension_numbers<[1], [0], [0], [1], [0, 0, 1, 1], [], []>} : vector<2x32xf32>, vector<32x64xf32>, vector<2x64xf32> -> vector<2x64xf32>
    %520 = vector.broadcast %516 : vector<1x64xf32> to vector<2x64xf32>
    %521 = arith.addf %520, %519 : vector<2x64xf32>
    %c1_263 = arith.constant 1 : index
    %c0_264 = arith.constant 0 : index
    %c0_265 = arith.constant 0 : index
    %522 = vector.load %arg18[%c1_263, %c0_264, %c0_265] : memref<4x32x64xf32, #tpu.memory_space<vmem>>, vector<1x32x64xf32>
    %523 = vector.shape_cast %522 : vector<1x32x64xf32> to vector<32x64xf32>
    %cst_266 = arith.constant dense<0.000000e+00> : vector<2x64xf32>
    %524 = tpu.matmul %515, %523, %cst_266 {dimension_numbers = #tpu.dot_dimension_numbers<[1], [0], [0], [1], [0, 0, 1, 1], [], []>} : vector<2x32xf32>, vector<32x64xf32>, vector<2x64xf32> -> vector<2x64xf32>
    %525 = arith.addf %521, %524 : vector<2x64xf32>
    %c2_267 = arith.constant 2 : index
    %c0_268 = arith.constant 0 : index
    %c0_269 = arith.constant 0 : index
    %526 = vector.load %arg18[%c2_267, %c0_268, %c0_269] : memref<4x32x64xf32, #tpu.memory_space<vmem>>, vector<1x32x64xf32>
    %527 = vector.shape_cast %526 : vector<1x32x64xf32> to vector<32x64xf32>
    %cst_270 = arith.constant dense<0.000000e+00> : vector<2x64xf32>
    %528 = tpu.matmul %256, %527, %cst_270 {dimension_numbers = #tpu.dot_dimension_numbers<[1], [0], [0], [1], [0, 0, 1, 1], [], []>} : vector<2x32xf32>, vector<32x64xf32>, vector<2x64xf32> -> vector<2x64xf32>
    %529 = arith.addf %525, %528 : vector<2x64xf32>
    %c3_271 = arith.constant 3 : index
    %c0_272 = arith.constant 0 : index
    %c0_273 = arith.constant 0 : index
    %530 = vector.load %arg18[%c3_271, %c0_272, %c0_273] : memref<4x32x64xf32, #tpu.memory_space<vmem>>, vector<1x32x64xf32>
    %531 = vector.shape_cast %530 : vector<1x32x64xf32> to vector<32x64xf32>
    %cst_274 = arith.constant dense<0.000000e+00> : vector<2x64xf32>
    %532 = tpu.matmul %513, %531, %cst_274 {dimension_numbers = #tpu.dot_dimension_numbers<[1], [0], [0], [1], [0, 0, 1, 1], [], []>} : vector<2x32xf32>, vector<32x64xf32>, vector<2x64xf32> -> vector<2x64xf32>
    %533 = arith.addf %529, %532 : vector<2x64xf32>
    %cst_275 = arith.constant 0.000000e+00 : f32
    %534 = vector.broadcast %cst_275 : f32 to vector<2x64xf32>
    %535 = arith.maximumf %533, %534 : vector<2x64xf32>
    %c0_276 = arith.constant 0 : index
    %c0_277 = arith.constant 0 : index
    %536 = vector.load %arg20[%c0_276, %c0_277] : memref<64x1xf32, #tpu.memory_space<vmem>>, vector<64x1xf32>
    %cst_278 = arith.constant dense<0.000000e+00> : vector<2x1xf32>
    %537 = tpu.matmul %535, %536, %cst_278 {dimension_numbers = #tpu.dot_dimension_numbers<[1], [0], [0], [1], [0, 0, 1, 1], [], []>} : vector<2x64xf32>, vector<64x1xf32>, vector<2x1xf32> -> vector<2x1xf32>
    %c0_279 = arith.constant 0 : index
    %c0_280 = arith.constant 0 : index
    %538 = vector.load %arg21[%c0_279, %c0_280] : memref<1x1xf32, #tpu.memory_space<vmem>>, vector<1x1xf32>
    %539 = vector.broadcast %538 : vector<1x1xf32> to vector<2x1xf32>
    %540 = arith.addf %537, %539 : vector<2x1xf32>
    %cst_281 = arith.constant 0.000000e+00 : f32
    %541 = vector.broadcast %cst_281 : f32 to vector<2x1xf32>
    %542 = arith.subf %541, %540 : vector<2x1xf32>
    %543 = math.exp %542 : vector<2x1xf32>
    %cst_282 = arith.constant 1.000000e+00 : f32
    %544 = vector.broadcast %cst_282 : f32 to vector<2x1xf32>
    %545 = arith.addf %544, %543 : vector<2x1xf32>
    %cst_283 = arith.constant 1.000000e+00 : f32
    %546 = vector.broadcast %cst_283 : f32 to vector<2x1xf32>
    %547 = arith.divf %546, %545 : vector<2x1xf32>
    %c0_284 = arith.constant 0 : index
    %c0_285 = arith.constant 0 : index
    %548 = vector.load %arg22[%c0_284, %c0_285] : memref<2x1xf32, #tpu.memory_space<vmem>>, vector<2x1xf32>
    tpu.vector_store %arg22[%c0_284, %c0_285], %547 {strides = array<i32>} : memref<2x1xf32, #tpu.memory_space<vmem>>, vector<2x1xf32>,
    return
  }
}

</mosaic_0001>

<llo_original>
// kernel: epitope_mhc_bert_forward.1
$region0: #{epitope_mhc_bert_forward.1}
  #allocation0 [shape = 'u32[]', space=smem, size = 0x4, offset = 0x4, fixed_abs, tag = 'smem constant byte address 0x4 - core index']
  #allocation1 [shape = 'u32[72,128]{1,0:T(1,128)}', space=vmem, size = 0x9000, scoped, tag = 'internal scratch']
  #allocation2 [shape = 'f32[1,1]{1,0:T(1,128)S(1)}', space=vmem, size = 0x200, scoped, tag = 'scoped memory for epitope_mhc_bert_forward.1']
  %s0 = inlined_call_operand.vmem [shape: f32[16,32], index: 0, kind: input, shape index: {}]
  %s1 = inlined_call_operand.vmem [shape: f32[16,32], index: 1, kind: input, shape index: {}]
  %s2 = inlined_call_operand.vmem [shape: f32[4,1,8], index: 2, kind: input, shape index: {}]
  %s3 = inlined_call_operand.vmem [shape: f32[4,1,8], index: 3, kind: input, shape index: {}]
  %s4 = inlined_call_operand.vmem [shape: f32[2,32], index: 4, kind: input, shape index: {}]
  %s5 = inlined_call_operand.vmem [shape: f32[2,32], index: 5, kind: input, shape index: {}]
  %s6 = inlined_call_operand.hbm [shape: f32[4,4,32,48], index: 6, kind: input, shape index: {}]
  %s7 = inlined_call_operand.vmem [shape: f32[4,4,1,48], index: 7, kind: input, shape index: {}]
  %s8 = inlined_call_operand.vmem [shape: f32[4,4,16,32], index: 8, kind: input, shape index: {}]
  %s9 = inlined_call_operand.vmem [shape: f32[4,1,32], index: 9, kind: input, shape index: {}]
  %s10 = inlined_call_operand.vmem [shape: f32[4,1,32], index: 10, kind: input, shape index: {}]
  %s11 = inlined_call_operand.vmem [shape: f32[4,1,32], index: 11, kind: input, shape index: {}]
  %s12 = inlined_call_operand.vmem [shape: f32[4,32,64], index: 12, kind: input, shape index: {}]
  %s13 = inlined_call_operand.vmem [shape: f32[4,1,64], index: 13, kind: input, shape index: {}]
  %s14 = inlined_call_operand.vmem [shape: f32[4,64,32], index: 14, kind: input, shape index: {}]
  %s15 = inlined_call_operand.vmem [shape: f32[4,1,32], index: 15, kind: input, shape index: {}]
  %s16 = inlined_call_operand.vmem [shape: f32[4,1,32], index: 16, kind: input, shape index: {}]
  %s17 = inlined_call_operand.vmem [shape: f32[4,1,32], index: 17, kind: input, shape index: {}]
  %s18 = inlined_call_operand.vmem [shape: f32[4,32,64], index: 18, kind: input, shape index: {}]
  %s19 = inlined_call_operand.vmem [shape: f32[1,64], index: 19, kind: input, shape index: {}]
  %s20 = inlined_call_operand.vmem [shape: f32[64,1], index: 20, kind: input, shape index: {}]
  %s21 = inlined_call_operand.<no memory space> [shape: f32[1,1], index: 21, kind: input, shape index: {}]
  %s22 = inlined_call_operand.vmem [shape: f32[2,1], index: 22, kind: output, shape index: {}]
  %s23 = sld [smem:[#allocation0]]
  $region102: #{epitope_mhc_bert_forward.1} parent=0
    _
  %s25 = ssub.s32 1, %s23
  %s26 = scalar_select 0, %s25, %s23
  %v27 = vstv %s21
  %28 = vst [vmem:[#allocation2] sm:$0x1] %v27
  $region1: #{epitope_mhc_bert_forward.1} parent=0
    #allocation3 [shape = 'u8[262144]{0}', space=vmem, size = 0x40000, scoped, tag = 'input window, operand 6, single buffered']
    #allocation4 [shape = 's32[1]{0}', space=sflag, size = 0x4, scoped, tag = 'scoped memory for epitope_mhc_bert_forward.1']
    %29 = vsyncpa [#allocation4], 0
    // Predicated region
    $region2: #{epitope_mhc_bert_forward.1} parent=1 // pred_check
      _
    $region3: #{epitope_mhc_bert_forward.1} parent=1 // pred_check_branch
      %31 = sbr.rel (0) target = $region5
    $region4: #{epitope_mhc_bert_forward.1} parent=1 // pred_region
      _
    $region5: #{epitope_mhc_bert_forward.1} parent=1 // pred_fallthru
      _
    // Predicated region
    $region6: #{epitope_mhc_bert_forward.1} parent=1 // pred_check
      _
    $region7: #{epitope_mhc_bert_forward.1} parent=1 // pred_check_branch
      %33 = sbr.rel (0) target = $region9
    $region8: #{epitope_mhc_bert_forward.1} parent=1 // pred_region
      _
    $region9: #{epitope_mhc_bert_forward.1} parent=1 // pred_fallthru
      _
    // Predicated region
    $region10: #{epitope_mhc_bert_forward.1} parent=1 // pred_check
      _
    $region11: #{epitope_mhc_bert_forward.1} parent=1 // pred_check_branch
      %35 = sbr.rel (0) target = $region13
    $region12: #{epitope_mhc_bert_forward.1} parent=1 // pred_region
      _
    $region13: #{epitope_mhc_bert_forward.1} parent=1 // pred_fallthru
      _
    // Predicated region
    $region14: #{epitope_mhc_bert_forward.1} parent=1 // pred_check
      _
    $region15: #{epitope_mhc_bert_forward.1} parent=1 // pred_check_branch
      %37 = sbr.rel (0) target = $region17
    $region16: #{epitope_mhc_bert_forward.1} parent=1 // pred_region
      _
    $region17: #{epitope_mhc_bert_forward.1} parent=1 // pred_fallthru
      _
    // Predicated region
    $region18: #{epitope_mhc_bert_forward.1} parent=1 // pred_check
      _
    $region19: #{epitope_mhc_bert_forward.1} parent=1 // pred_check_branch
      %39 = sbr.rel (0) target = $region21
    $region20: #{epitope_mhc_bert_forward.1} parent=1 // pred_region
      _
    $region21: #{epitope_mhc_bert_forward.1} parent=1 // pred_fallthru
      _
    // Predicated region
    $region22: #{epitope_mhc_bert_forward.1} parent=1 // pred_check
      _
    $region23: #{epitope_mhc_bert_forward.1} parent=1 // pred_check_branch
      %41 = sbr.rel (0) target = $region25
    $region24: #{epitope_mhc_bert_forward.1} parent=1 // pred_region
      _
    $region25: #{epitope_mhc_bert_forward.1} parent=1 // pred_fallthru
      _
    // Predicated region
    $region26: #{epitope_mhc_bert_forward.1} parent=1 // pred_check
      _
    $region27: #{epitope_mhc_bert_forward.1} parent=1 // pred_check_branch
      %43 = sbr.rel (0) target = $region29
    $region28: #{epitope_mhc_bert_forward.1} parent=1 // pred_region
      %45 = vsyncadd [#allocation4], 0
      %s46 = sshll.u32 %s6, 4
      %s47 = int_to_ptr.hbm [resolvable:$true] %s46
      %s48 = sshll.u32 [#allocation3], 4
      %s49 = int_to_ptr.vmem [resolvable:$true] %s48
      %54 = dma.hbm_to_vmem [thread:$0]  %s47, 8192, %s49, [#allocation4], 128, 128, 8
    $region29: #{epitope_mhc_bert_forward.1} parent=1 // pred_fallthru
      _
    // Predicated region
    $region30: #{epitope_mhc_bert_forward.1} parent=1 // pred_check
      _
    $region31: #{epitope_mhc_bert_forward.1} parent=1 // pred_check_branch
      %56 = sbr.rel (0) target = $region33
    $region32: #{epitope_mhc_bert_forward.1} parent=1 // pred_region
      _
    $region33: #{epitope_mhc_bert_forward.1} parent=1 // pred_fallthru
      _
    // Predicated region
    $region34: #{epitope_mhc_bert_forward.1} parent=1 // pred_check
      _
    $region35: #{epitope_mhc_bert_forward.1} parent=1 // pred_check_branch
      %58 = sbr.rel (0) target = $region37
    $region36: #{epitope_mhc_bert_forward.1} parent=1 // pred_region
      _
    $region37: #{epitope_mhc_bert_forward.1} parent=1 // pred_fallthru
      _
    // Predicated region
    $region38: #{epitope_mhc_bert_forward.1} parent=1 // pred_check
      _
    $region39: #{epitope_mhc_bert_forward.1} parent=1 // pred_check_branch
      %60 = sbr.rel (0) target = $region41
    $region40: #{epitope_mhc_bert_forward.1} parent=1 // pred_region
      _
    $region41: #{epitope_mhc_bert_forward.1} parent=1 // pred_fallthru
      _
    // Predicated region
    $region42: #{epitope_mhc_bert_forward.1} parent=1 // pred_check
      _
    $region43: #{epitope_mhc_bert_forward.1} parent=1 // pred_check_branch
      %62 = sbr.rel (0) target = $region45
    $region44: #{epitope_mhc_bert_forward.1} parent=1 // pred_region
      _
    $region45: #{epitope_mhc_bert_forward.1} parent=1 // pred_fallthru
      _
    // Predicated region
    $region46: #{epitope_mhc_bert_forward.1} parent=1 // pred_check
      _
    $region47: #{epitope_mhc_bert_forward.1} parent=1 // pred_check_branch
      %64 = sbr.rel (0) target = $region49
    $region48: #{epitope_mhc_bert_forward.1} parent=1 // pred_region
      _
    $region49: #{epitope_mhc_bert_forward.1} parent=1 // pred_fallthru
      _
    // Predicated region
    $region50: #{epitope_mhc_bert_forward.1} parent=1 // pred_check
      _
    $region51: #{epitope_mhc_bert_forward.1} parent=1 // pred_check_branch
      %66 = sbr.rel (0) target = $region53
    $region52: #{epitope_mhc_bert_forward.1} parent=1 // pred_region
      _
    $region53: #{epitope_mhc_bert_forward.1} parent=1 // pred_fallthru
      _
    // Predicated region
    $region54: #{epitope_mhc_bert_forward.1} parent=1 // pred_check
      _
    $region55: #{epitope_mhc_bert_forward.1} parent=1 // pred_check_branch
      %68 = sbr.rel (0) target = $region57
    $region56: #{epitope_mhc_bert_forward.1} parent=1 // pred_region
      _
    $region57: #{epitope_mhc_bert_forward.1} parent=1 // pred_fallthru
      _
    // Predicated region
    $region58: #{epitope_mhc_bert_forward.1} parent=1 // pred_check
      _
    $region59: #{epitope_mhc_bert_forward.1} parent=1 // pred_check_branch
      %70 = sbr.rel (0) target = $region61
    $region60: #{epitope_mhc_bert_forward.1} parent=1 // pred_region
      _
    $region61: #{epitope_mhc_bert_forward.1} parent=1 // pred_fallthru
      _
    // Predicated region
    $region62: #{epitope_mhc_bert_forward.1} parent=1 // pred_check
      _
    $region63: #{epitope_mhc_bert_forward.1} parent=1 // pred_check_branch
      %72 = sbr.rel (0) target = $region65
    $region64: #{epitope_mhc_bert_forward.1} parent=1 // pred_region
      _
    $region65: #{epitope_mhc_bert_forward.1} parent=1 // pred_fallthru
      _
    // Predicated region
    $region66: #{epitope_mhc_bert_forward.1} parent=1 // pred_check
      _
    $region67: #{epitope_mhc_bert_forward.1} parent=1 // pred_check_branch
      %74 = sbr.rel (0) target = $region69
    $region68: #{epitope_mhc_bert_forward.1} parent=1 // pred_region
      _
    $region69: #{epitope_mhc_bert_forward.1} parent=1 // pred_fallthru
      _
    // Predicated region
    $region70: #{epitope_mhc_bert_forward.1} parent=1 // pred_check
      _
    $region71: #{epitope_mhc_bert_forward.1} parent=1 // pred_check_branch
      %76 = sbr.rel (0) target = $region73
    $region72: #{epitope_mhc_bert_forward.1} parent=1 // pred_region
      _
    $region73: #{epitope_mhc_bert_forward.1} parent=1 // pred_fallthru
      _
    // Predicated region
    $region74: #{epitope_mhc_bert_forward.1} parent=1 // pred_check
      _
    $region75: #{epitope_mhc_bert_forward.1} parent=1 // pred_check_branch
      %78 = sbr.rel (0) target = $region77
    $region76: #{epitope_mhc_bert_forward.1} parent=1 // pred_region
      _
    $region77: #{epitope_mhc_bert_forward.1} parent=1 // pred_fallthru
      _
    // Predicated region
    $region78: #{epitope_mhc_bert_forward.1} parent=1 // pred_check
      _
    $region79: #{epitope_mhc_bert_forward.1} parent=1 // pred_check_branch
      %80 = sbr.rel (0) target = $region81
    $region80: #{epitope_mhc_bert_forward.1} parent=1 // pred_region
      _
    $region81: #{epitope_mhc_bert_forward.1} parent=1 // pred_fallthru
      _
    // Predicated region
    $region82: #{epitope_mhc_bert_forward.1} parent=1 // pred_check
      _
    $region83: #{epitope_mhc_bert_forward.1} parent=1 // pred_check_branch
      %82 = sbr.rel (0) target = $region85
    $region84: #{epitope_mhc_bert_forward.1} parent=1 // pred_region
      _
    $region85: #{epitope_mhc_bert_forward.1} parent=1 // pred_fallthru
      _
    // Predicated region
    $region86: #{epitope_mhc_bert_forward.1} parent=1 // pred_check
      _
    $region87: #{epitope_mhc_bert_forward.1} parent=1 // pred_check_branch
      %84 = sbr.rel (0) target = $region89
    $region88: #{epitope_mhc_bert_forward.1} parent=1 // pred_region
      _
    $region89: #{epitope_mhc_bert_forward.1} parent=1 // pred_fallthru
      _
    // Predicated region
    $region90: #{epitope_mhc_bert_forward.1} parent=1 // pred_check
      _
    $region91: #{epitope_mhc_bert_forward.1} parent=1 // pred_check_branch
      %86 = sbr.rel (0) target = $region93
    $region92: #{epitope_mhc_bert_forward.1} parent=1 // pred_region
      %88 = dma.done [#allocation4], 8192
    $region93: #{epitope_mhc_bert_forward.1} parent=1 // pred_fallthru
      _
    %v89 = vld [vmem:[%s0] sm:$0xff]
    %v90 = vld [vmem:[%s0 + $0x8] sm:$0xff]
    %v91 = vld [vmem:[%s2] sm:$0x1]
    %v92 = vld [vmem:[%s2 + $0x1] sm:$0x1]
    %v93 = vld [vmem:[%s2 + $0x2] sm:$0x1]
    %v94 = vld [vmem:[%s2 + $0x3] sm:$0x1]
    %v95 = vld [vmem:[#allocation3] sm:$0xff]
    %v96 = vld [vmem:[#allocation3 + $0x8] sm:$0xff]
    %v97 = vld [vmem:[#allocation3 + $0x10] sm:$0xff]
    %v98 = vld [vmem:[#allocation3 + $0x18] sm:$0xff]
    %v99 = vld [vmem:[#allocation3 + $0x20] sm:$0xff]
    %v100 = vld [vmem:[#allocation3 + $0x28] sm:$0xff]
    %v101 = vld [vmem:[#allocation3 + $0x30] sm:$0xff]
    %v102 = vld [vmem:[#allocation3 + $0x38] sm:$0xff]
    %v103 = vld [vmem:[#allocation3 + $0x40] sm:$0xff]
    %v104 = vld [vmem:[#allocation3 + $0x48] sm:$0xff]
    %v105 = vld [vmem:[#allocation3 + $0x50] sm:$0xff]
    %v106 = vld [vmem:[#allocation3 + $0x58] sm:$0xff]
    %v107 = vld [vmem:[#allocation3 + $0x60] sm:$0xff]
    %v108 = vld [vmem:[#allocation3 + $0x68] sm:$0xff]
    %v109 = vld [vmem:[#allocation3 + $0x70] sm:$0xff]
    %v110 = vld [vmem:[#allocation3 + $0x78] sm:$0xff]
    %v111 = vld [vmem:[%s7] sm:$0x1]
    %v112 = vld [vmem:[%s7 + $0x1] sm:$0x1]
    %v113 = vld [vmem:[%s7 + $0x2] sm:$0x1]
    %v114 = vld [vmem:[%s7 + $0x3] sm:$0x1]
    %v119 = vperm.slane %v111, 0
    %v120 = vperm.slane %v112, 0
    %v121 = vperm.slane %v113, 0
    %v122 = vperm.slane %v114, 0
    %vm127 = vcmask 261120
    %v129 = vsel %vm127, %v89, 0
    %131 = vmatpush.msra.mxu0 0.0
    %132 = vmatpush.msra.mxu0 0.0
    %133 = vmatpush.msra.mxu0 0.0
    %134 = vmatpush.msra.mxu0 0.0
    %135 = vmatpush.msra.mxu0 0.0
    %136 = vmatpush.msra.mxu0 0.0
    %137 = vmatpush.msra.mxu0 0.0
    %138 = vmatpush.msra.mxu0 0.0
    %139 = vmatpush.msra.mxu0 0.0
    %140 = vmatpush.msra.mxu0 0.0
    %141 = vmatpush.msra.mxu0 0.0
    %142 = vmatpush.msra.mxu0 0.0
    %143 = vmatpush.msra.mxu0 %v98
    %144 = vmatpush.msra.mxu0 %v97
    %145 = vmatpush.msra.mxu0 %v96
    %146 = vmatpush.msra.mxu0 %v95
    %147 = vmatmul.f32.gmra.mxu0 %v129
    %v148 = vpop.f32.mrf.mxu0
    %v149 = vadd.f32 %v119, %v148
    %150 = vdwg.mxu0
    %v152 = vsel %vm127, %v90, 0
    %154 = vmatpush.msra.mxu0 0.0
    %155 = vmatpush.msra.mxu0 0.0
    %156 = vmatpush.msra.mxu0 0.0
    %157 = vmatpush.msra.mxu0 0.0
    %158 = vmatpush.msra.mxu0 0.0
    %159 = vmatpush.msra.mxu0 0.0
    %160 = vmatpush.msra.mxu0 0.0
    %161 = vmatpush.msra.mxu0 0.0
    %162 = vmatpush.msra.mxu0 0.0
    %163 = vmatpush.msra.mxu0 0.0
    %164 = vmatpush.msra.mxu0 0.0
    %165 = vmatpush.msra.mxu0 0.0
    %166 = vmatpush.msra.mxu0 %v102
    %167 = vmatpush.msra.mxu0 %v101
    %168 = vmatpush.msra.mxu0 %v100
    %169 = vmatpush.msra.mxu0 %v99
    %170 = vmatmul.f32.gmra.mxu0 %v152
    %v171 = vpop.f32.mrf.mxu0
    %v172 = vadd.f32 %v120, %v171
    %173 = vdwg.mxu0
    %174 = vmatpush.msra.mxu0 0.0
    %175 = vmatpush.msra.mxu0 0.0
    %176 = vmatpush.msra.mxu0 0.0
    %177 = vmatpush.msra.mxu0 0.0
    %178 = vmatpush.msra.mxu0 0.0
    %179 = vmatpush.msra.mxu0 0.0
    %180 = vmatpush.msra.mxu0 0.0
    %181 = vmatpush.msra.mxu0 0.0
    %182 = vmatpush.msra.mxu0 0.0
    %183 = vmatpush.msra.mxu0 0.0
    %184 = vmatpush.msra.mxu0 0.0
    %185 = vmatpush.msra.mxu0 0.0
    %186 = vmatpush.msra.mxu0 %v106
    %187 = vmatpush.msra.mxu0 %v105
    %188 = vmatpush.msra.mxu0 %v104
    %189 = vmatpush.msra.mxu0 %v103
    %190 = vmatmul.f32.gmra.mxu0 %v129
    %v191 = vpop.f32.mrf.mxu0
    %v192 = vadd.f32 %v121, %v191
    %193 = vdwg.mxu0
    %194 = vmatpush.msra.mxu0 0.0
    %195 = vmatpush.msra.mxu0 0.0
    %196 = vmatpush.msra.mxu0 0.0
    %197 = vmatpush.msra.mxu0 0.0
    %198 = vmatpush.msra.mxu0 0.0
    %199 = vmatpush.msra.mxu0 0.0
    %200 = vmatpush.msra.mxu0 0.0
    %201 = vmatpush.msra.mxu0 0.0
    %202 = vmatpush.msra.mxu0 0.0
    %203 = vmatpush.msra.mxu0 0.0
    %204 = vmatpush.msra.mxu0 0.0
    %205 = vmatpush.msra.mxu0 0.0
    %206 = vmatpush.msra.mxu0 %v110
    %207 = vmatpush.msra.mxu0 %v109
    %208 = vmatpush.msra.mxu0 %v108
    %209 = vmatpush.msra.mxu0 %v107
    %210 = vmatmul.f32.gmra.mxu0 %v152
    %v211 = vpop.f32.mrf.mxu0
    %v212 = vadd.f32 %v122, %v211
    %213 = vdwg.mxu0
    %215 = vrot.lane.b32.xlu0 %v149, 112
    %v216 = vpop.permute.xlu0 %215
    %vm217 = vcmask 130048
    %v218 = vsel %vm217, %v149, 0
    %v220 = vsel %vm217, %v216, 0
    %222 = vmatpush.xpose.msra.mxu0 0.0
    %223 = vmatpush.xpose.msra.mxu0 0.0
    %224 = vmatpush.xpose.msra.mxu0 0.0
    %225 = vmatpush.xpose.msra.mxu0 0.0
    %226 = vmatpush.xpose.msra.mxu0 0.0
    %227 = vmatpush.xpose.msra.mxu0 0.0
    %228 = vmatpush.xpose.msra.mxu0 0.0
    %229 = vmatpush.xpose.msra.mxu0 0.0
    %230 = vmatpush.xpose.msra.mxu0 0.0
    %231 = vmatpush.xpose.msra.mxu0 0.0
    %232 = vmatpush.xpose.msra.mxu0 0.0
    %233 = vmatpush.xpose.msra.mxu0 0.0
    %234 = vmatpush.xpose.msra.mxu0 0.0
    %235 = vmatpush.xpose.msra.mxu0 0.0
    %236 = vmatpush.xpose.msra.mxu0 0.0
    %237 = vmatpush.xpose.msra.mxu0 %v220
    %238 = vmatmul.f32.gmra.mxu0 %v218
    %v239 = vpop.f32.mrf.mxu0
    %v240 = vadd.f32 0.0, %v239
    %241 = vdwg.mxu0
    %243 = vrot.lane.b32.xlu0 %v172, 112
    %v244 = vpop.permute.xlu0 %243
    %v245 = vsel %vm217, %v172, 0
    %v247 = vsel %vm217, %v244, 0
    %249 = vmatpush.xpose.msra.mxu0 0.0
    %250 = vmatpush.xpose.msra.mxu0 0.0
    %251 = vmatpush.xpose.msra.mxu0 0.0
    %252 = vmatpush.xpose.msra.mxu0 0.0
    %253 = vmatpush.xpose.msra.mxu0 0.0
    %254 = vmatpush.xpose.msra.mxu0 0.0
    %255 = vmatpush.xpose.msra.mxu0 0.0
    %256 = vmatpush.xpose.msra.mxu0 0.0
    %257 = vmatpush.xpose.msra.mxu0 0.0
    %258 = vmatpush.xpose.msra.mxu0 0.0
    %259 = vmatpush.xpose.msra.mxu0 0.0
    %260 = vmatpush.xpose.msra.mxu0 0.0
    %261 = vmatpush.xpose.msra.mxu0 0.0
    %262 = vmatpush.xpose.msra.mxu0 0.0
    %263 = vmatpush.xpose.msra.mxu0 0.0
    %264 = vmatpush.xpose.msra.mxu0 %v247
    %265 = vmatmul.f32.gmra.mxu0 %v245
    %v266 = vpop.f32.mrf.mxu0
    %v267 = vadd.f32 0.0, %v266
    %268 = vdwg.mxu0
    %270 = vrot.lane.b32.xlu0 %v192, 112
    %v271 = vpop.permute.xlu0 %270
    %v272 = vsel %vm217, %v192, 0
    %v274 = vsel %vm217, %v271, 0
    %276 = vmatpush.xpose.msra.mxu0 0.0
    %277 = vmatpush.xpose.msra.mxu0 0.0
    %278 = vmatpush.xpose.msra.mxu0 0.0
    %279 = vmatpush.xpose.msra.mxu0 0.0
    %280 = vmatpush.xpose.msra.mxu0 0.0
    %281 = vmatpush.xpose.msra.mxu0 0.0
    %282 = vmatpush.xpose.msra.mxu0 0.0
    %283 = vmatpush.xpose.msra.mxu0 0.0
    %284 = vmatpush.xpose.msra.mxu0 0.0
    %285 = vmatpush.xpose.msra.mxu0 0.0
    %286 = vmatpush.xpose.msra.mxu0 0.0
    %287 = vmatpush.xpose.msra.mxu0 0.0
    %288 = vmatpush.xpose.msra.mxu0 0.0
    %289 = vmatpush.xpose.msra.mxu0 0.0
    %290 = vmatpush.xpose.msra.mxu0 0.0
    %291 = vmatpush.xpose.msra.mxu0 %v274
    %292 = vmatmul.f32.gmra.mxu0 %v272
    %v293 = vpop.f32.mrf.mxu0
    %v294 = vadd.f32 0.0, %v293
    %295 = vdwg.mxu0
    %297 = vrot.lane.b32.xlu0 %v212, 112
    %v298 = vpop.permute.xlu0 %297
    %v299 = vsel %vm217, %v212, 0
    %v301 = vsel %vm217, %v298, 0
    %303 = vmatpush.xpose.msra.mxu0 0.0
    %304 = vmatpush.xpose.msra.mxu0 0.0
    %305 = vmatpush.xpose.msra.mxu0 0.0
    %306 = vmatpush.xpose.msra.mxu0 0.0
    %307 = vmatpush.xpose.msra.mxu0 0.0
    %308 = vmatpush.xpose.msra.mxu0 0.0
    %309 = vmatpush.xpose.msra.mxu0 0.0
    %310 = vmatpush.xpose.msra.mxu0 0.0
    %311 = vmatpush.xpose.msra.mxu0 0.0
    %312 = vmatpush.xpose.msra.mxu0 0.0
    %313 = vmatpush.xpose.msra.mxu0 0.0
    %314 = vmatpush.xpose.msra.mxu0 0.0
    %315 = vmatpush.xpose.msra.mxu0 0.0
    %316 = vmatpush.xpose.msra.mxu0 0.0
    %317 = vmatpush.xpose.msra.mxu0 0.0
    %318 = vmatpush.xpose.msra.mxu0 %v301
    %319 = vmatmul.f32.gmra.mxu0 %v299
    %v320 = vpop.f32.mrf.mxu0
    %v321 = vadd.f32 0.0, %v320
    %322 = vdwg.mxu0
    %v323 = vmul.f32 %v240, 0.25
    %v324 = vmul.f32 %v267, 0.25
    %v325 = vmul.f32 %v294, 0.25
    %v326 = vmul.f32 %v321, 0.25
    %v331 = vperm.slane %v91, 0
    %v332 = vperm.slane %v92, 0
    %v333 = vperm.slane %v93, 0
    %v334 = vperm.slane %v94, 0
    %v339 = vadd.f32 %v323, %v331
    %v340 = vadd.f32 %v324, %v332
    %v341 = vadd.f32 %v325, %v333
    %v342 = vadd.f32 %v326, %v334
    %vm343 = vcmask 64512
    %v344 = vsel %vm343, %v339, -inf
    %345 = vmax.xlane.f32.xlu0 %v344
    %v346 = vpop.xlane.xlu0 %345
    %v347 = vsel %vm343, %v340, -inf
    %348 = vmax.xlane.f32.xlu0 %v347
    %v349 = vpop.xlane.xlu0 %348
    %v350 = vsel %vm343, %v341, -inf
    %351 = vmax.xlane.f32.xlu0 %v350
    %v352 = vpop.xlane.xlu0 %351
    %v353 = vsel %vm343, %v342, -inf
    %354 = vmax.xlane.f32.xlu0 %v353
    %v355 = vpop.xlane.xlu0 %354
    %v356 = vsub.f32 %v339, %v346
    %v357 = vsub.f32 %v340, %v349
    %v358 = vsub.f32 %v341, %v352
    %v359 = vsub.f32 %v342, %v355
    %v360 = vmul.f32 %v356, 1.442695
    %v361 = vpow.pop %v360
    %v362 = vmul.f32 %v357, 1.442695
    %v363 = vpow.pop %v362
    %v364 = vmul.f32 %v358, 1.442695
    %v365 = vpow.pop %v364
    %v366 = vmul.f32 %v359, 1.442695
    %v367 = vpow.pop %v366
    %v368 = vsel %vm343, %v361, 0.0
    %369 = vadd.xlane.f32.xlu0 %v368
    %v370 = vpop.xlane.xlu0 %369
    %v371 = vsel %vm343, %v363, 0.0
    %372 = vadd.xlane.f32.xlu0 %v371
    %v373 = vpop.xlane.xlu0 %372
    %v374 = vsel %vm343, %v365, 0.0
    %375 = vadd.xlane.f32.xlu0 %v374
    %v376 = vpop.xlane.xlu0 %375
    %v377 = vsel %vm343, %v367, 0.0
    %378 = vadd.xlane.f32.xlu0 %v377
    %v379 = vpop.xlane.xlu0 %378
    %v380 = vrcp.pop %v370
    %v381 = vrcp.pop %v373
    %v382 = vrcp.pop %v376
    %v383 = vrcp.pop %v379
    %v384 = vmul.f32 %v361, %v380
    %v385 = vmul.f32 %v363, %v381
    %v386 = vmul.f32 %v365, %v382
    %v387 = vmul.f32 %v367, %v383
    %388 = vrot.lane.b32.xlu0 %v149, 96
    %v389 = vpop.permute.xlu0 %388
    %v392 = vsel %vm343, %v384, 0
    %394 = vmatpush.msra.mxu0 0.0
    %395 = vmatpush.msra.mxu0 0.0
    %396 = vmatpush.msra.mxu0 0.0
    %397 = vmatpush.msra.mxu0 0.0
    %398 = vmatpush.msra.mxu0 0.0
    %399 = vmatpush.msra.mxu0 0.0
    %400 = vmatpush.msra.mxu0 0.0
    %401 = vmatpush.msra.mxu0 0.0
    %402 = vmatpush.msra.mxu0 0.0
    %403 = vmatpush.msra.mxu0 0.0
    %404 = vmatpush.msra.mxu0 0.0
    %405 = vmatpush.msra.mxu0 0.0
    %406 = vmatpush.msra.mxu0 0.0
    %407 = vmatpush.msra.mxu0 0.0
    %408 = vmatpush.msra.mxu0 0.0
    %409 = vmatpush.msra.mxu0 %v389
    %410 = vmatmul.f32.gmra.mxu0 %v392
    %v411 = vpop.f32.mrf.mxu0
    %v412 = vadd.f32 0.0, %v411
    %413 = vdwg.mxu0
    %414 = vrot.lane.b32.xlu0 %v172, 96
    %v415 = vpop.permute.xlu0 %414
    %v418 = vsel %vm343, %v385, 0
    %420 = vmatpush.msra.mxu0 0.0
    %421 = vmatpush.msra.mxu0 0.0
    %422 = vmatpush.msra.mxu0 0.0
    %423 = vmatpush.msra.mxu0 0.0
    %424 = vmatpush.msra.mxu0 0.0
    %425 = vmatpush.msra.mxu0 0.0
    %426 = vmatpush.msra.mxu0 0.0
    %427 = vmatpush.msra.mxu0 0.0
    %428 = vmatpush.msra.mxu0 0.0
    %429 = vmatpush.msra.mxu0 0.0
    %430 = vmatpush.msra.mxu0 0.0
    %431 = vmatpush.msra.mxu0 0.0
    %432 = vmatpush.msra.mxu0 0.0
    %433 = vmatpush.msra.mxu0 0.0
    %434 = vmatpush.msra.mxu0 0.0
    %435 = vmatpush.msra.mxu0 %v415
    %436 = vmatmul.f32.gmra.mxu0 %v418
    %v437 = vpop.f32.mrf.mxu0
    %v438 = vadd.f32 0.0, %v437
    %439 = vdwg.mxu0
    %440 = vrot.lane.b32.xlu0 %v192, 96
    %v441 = vpop.permute.xlu0 %440
    %v444 = vsel %vm343, %v386, 0
    %446 = vmatpush.msra.mxu0 0.0
    %447 = vmatpush.msra.mxu0 0.0
    %448 = vmatpush.msra.mxu0 0.0
    %449 = vmatpush.msra.mxu0 0.0
    %450 = vmatpush.msra.mxu0 0.0
    %451 = vmatpush.msra.mxu0 0.0
    %452 = vmatpush.msra.mxu0 0.0
    %453 = vmatpush.msra.mxu0 0.0
    %454 = vmatpush.msra.mxu0 0.0
    %455 = vmatpush.msra.mxu0 0.0
    %456 = vmatpush.msra.mxu0 0.0
    %457 = vmatpush.msra.mxu0 0.0
    %458 = vmatpush.msra.mxu0 0.0
    %459 = vmatpush.msra.mxu0 0.0
    %460 = vmatpush.msra.mxu0 0.0
    %461 = vmatpush.msra.mxu0 %v441
    %462 = vmatmul.f32.gmra.mxu0 %v444
    %v463 = vpop.f32.mrf.mxu0
    %v464 = vadd.f32 0.0, %v463
    %465 = vdwg.mxu0
    %466 = vrot.lane.b32.xlu0 %v212, 96
    %v467 = vpop.permute.xlu0 %466
    %v470 = vsel %vm343, %v387, 0
    %472 = vmatpush.msra.mxu0 0.0
    %473 = vmatpush.msra.mxu0 0.0
    %474 = vmatpush.msra.mxu0 0.0
    %475 = vmatpush.msra.mxu0 0.0
    %476 = vmatpush.msra.mxu0 0.0
    %477 = vmatpush.msra.mxu0 0.0
    %478 = vmatpush.msra.mxu0 0.0
    %479 = vmatpush.msra.mxu0 0.0
    %480 = vmatpush.msra.mxu0 0.0
    %481 = vmatpush.msra.mxu0 0.0
    %482 = vmatpush.msra.mxu0 0.0
    %483 = vmatpush.msra.mxu0 0.0
    %484 = vmatpush.msra.mxu0 0.0
    %485 = vmatpush.msra.mxu0 0.0
    %486 = vmatpush.msra.mxu0 0.0
    %487 = vmatpush.msra.mxu0 %v467
    %488 = vmatmul.f32.gmra.mxu0 %v470
    %v489 = vpop.f32.mrf.mxu0
    %v490 = vadd.f32 0.0, %v489
    %491 = vdwg.mxu0
    %v492 = vld [vmem:[%s8] sm:$0xff]
    %v493 = vld [vmem:[%s8 + $0x8] sm:$0xff]
    %v494 = vld [vmem:[%s8 + $0x10] sm:$0xff]
    %v495 = vld [vmem:[%s8 + $0x18] sm:$0xff]
    %v496 = vld [vmem:[%s8 + $0x20] sm:$0xff]
    %v497 = vld [vmem:[%s8 + $0x28] sm:$0xff]
    %v498 = vld [vmem:[%s8 + $0x30] sm:$0xff]
    %v499 = vld [vmem:[%s8 + $0x38] sm:$0xff]
    %v501 = vsel %vm217, %v412, 0
    %503 = vmatpush.msra.mxu0 0.0
    %504 = vmatpush.msra.mxu0 0.0
    %505 = vmatpush.msra.mxu0 0.0
    %506 = vmatpush.msra.mxu0 0.0
    %507 = vmatpush.msra.mxu0 0.0
    %508 = vmatpush.msra.mxu0 0.0
    %509 = vmatpush.msra.mxu0 0.0
    %510 = vmatpush.msra.mxu0 0.0
    %511 = vmatpush.msra.mxu0 0.0
    %512 = vmatpush.msra.mxu0 0.0
    %513 = vmatpush.msra.mxu0 0.0
    %514 = vmatpush.msra.mxu0 0.0
    %515 = vmatpush.msra.mxu0 0.0
    %516 = vmatpush.msra.mxu0 0.0
    %517 = vmatpush.msra.mxu0 %v493
    %518 = vmatpush.msra.mxu0 %v492
    %519 = vmatmul.f32.gmra.mxu0 %v501
    %v520 = vpop.f32.mrf.mxu0
    %v521 = vadd.f32 0.0, %v520
    %522 = vdwg.mxu0
    %v524 = vsel %vm217, %v438, 0
    %526 = vmatpush.msra.mxu0 0.0
    %527 = vmatpush.msra.mxu0 0.0
    %528 = vmatpush.msra.mxu0 0.0
    %529 = vmatpush.msra.mxu0 0.0
    %530 = vmatpush.msra.mxu0 0.0
    %531 = vmatpush.msra.mxu0 0.0
    %532 = vmatpush.msra.mxu0 0.0
    %533 = vmatpush.msra.mxu0 0.0
    %534 = vmatpush.msra.mxu0 0.0
    %535 = vmatpush.msra.mxu0 0.0
    %536 = vmatpush.msra.mxu0 0.0
    %537 = vmatpush.msra.mxu0 0.0
    %538 = vmatpush.msra.mxu0 0.0
    %539 = vmatpush.msra.mxu0 0.0
    %540 = vmatpush.msra.mxu0 %v495
    %541 = vmatpush.msra.mxu0 %v494
    %542 = vmatmul.f32.gmra.mxu0 %v524
    %v543 = vpop.f32.mrf.mxu0
    %v544 = vadd.f32 0.0, %v543
    %545 = vdwg.mxu0
    %v547 = vsel %vm217, %v464, 0
    %549 = vmatpush.msra.mxu0 0.0
    %550 = vmatpush.msra.mxu0 0.0
    %551 = vmatpush.msra.mxu0 0.0
    %552 = vmatpush.msra.mxu0 0.0
    %553 = vmatpush.msra.mxu0 0.0
    %554 = vmatpush.msra.mxu0 0.0
    %555 = vmatpush.msra.mxu0 0.0
    %556 = vmatpush.msra.mxu0 0.0
    %557 = vmatpush.msra.mxu0 0.0
    %558 = vmatpush.msra.mxu0 0.0
    %559 = vmatpush.msra.mxu0 0.0
    %560 = vmatpush.msra.mxu0 0.0
    %561 = vmatpush.msra.mxu0 0.0
    %562 = vmatpush.msra.mxu0 0.0
    %563 = vmatpush.msra.mxu0 %v497
    %564 = vmatpush.msra.mxu0 %v496
    %565 = vmatmul.f32.gmra.mxu0 %v547
    %v566 = vpop.f32.mrf.mxu0
    %v567 = vadd.f32 0.0, %v566
    %568 = vdwg.mxu0
    %v570 = vsel %vm217, %v490, 0
    %572 = vmatpush.msra.mxu0 0.0
    %573 = vmatpush.msra.mxu0 0.0
    %574 = vmatpush.msra.mxu0 0.0
    %575 = vmatpush.msra.mxu0 0.0
    %576 = vmatpush.msra.mxu0 0.0
    %577 = vmatpush.msra.mxu0 0.0
    %578 = vmatpush.msra.mxu0 0.0
    %579 = vmatpush.msra.mxu0 0.0
    %580 = vmatpush.msra.mxu0 0.0
    %581 = vmatpush.msra.mxu0 0.0
    %582 = vmatpush.msra.mxu0 0.0
    %583 = vmatpush.msra.mxu0 0.0
    %584 = vmatpush.msra.mxu0 0.0
    %585 = vmatpush.msra.mxu0 0.0
    %586 = vmatpush.msra.mxu0 %v499
    %587 = vmatpush.msra.mxu0 %v498
    %588 = vmatmul.f32.gmra.mxu0 %v570
    %v589 = vpop.f32.mrf.mxu0
    %v590 = vadd.f32 0.0, %v589
    %591 = vdwg.mxu0
    %v592 = vadd.f32 %v521, %v567
    %v593 = vadd.f32 %v544, %v590
    %v594 = vld [vmem:[%s9] sm:$0x1]
    %v596 = vperm.slane %v594, 0
    %v598 = vadd.f32 %v592, %v596
    %v599 = vadd.f32 %v593, %v596
    %v600 = vadd.f32 %v89, %v598
    %v601 = vadd.f32 %v90, %v599
    %v602 = vld [vmem:[%s10] sm:$0x1]
    %v603 = vld [vmem:[%s11] sm:$0x1]
    %v604 = vsel %vm127, %v600, 0.0
    %605 = vadd.xlane.f32.xlu0 %v604
    %v606 = vpop.xlane.xlu0 %605
    %v607 = vsel %vm127, %v601, 0.0
    %608 = vadd.xlane.f32.xlu0 %v607
    %v609 = vpop.xlane.xlu0 %608
    %v610 = vrcp.pop 32.0
    %v611 = vmul.f32 32.0, %v610
    %v612 = vsub.f32 1.0, %v611
    %v613 = vmul.f32 %v610, %v612
    %v614 = vadd.f32 %v610, %v613
    %vm615 = vweird.f32 %v610
    %v616 = vsel %vm615, %v610, %v614
    %v617 = vmul.f32 %v606, %v616
    %v618 = vmul.f32 %v609, %v616
    %v619 = vsub.f32 %v600, %v617
    %v620 = vsub.f32 %v601, %v618
    %v621 = vmul.f32 %v619, %v619
    %v622 = vmul.f32 %v620, %v620
    %v623 = vsel %vm127, %v621, 0.0
    %624 = vadd.xlane.f32.xlu0 %v623
    %v625 = vpop.xlane.xlu0 %624
    %v626 = vsel %vm127, %v622, 0.0
    %627 = vadd.xlane.f32.xlu0 %v626
    %v628 = vpop.xlane.xlu0 %627
    %v629 = vmul.f32 %v625, %v616
    %v630 = vmul.f32 %v628, %v616
    %v631 = vadd.f32 %v629, 1e-12
    %v632 = vadd.f32 %v630, 1e-12
    %v633 = vrsqrt.pop %v631
    %v634 = vmul.f32 %v633, %v631
    %v635 = vmul.f32 %v634, %v633
    %v636 = vmul.f32 0.5, %v635
    %v637 = vsub.f32 1.5, %v636
    %v638 = vmul.f32 %v633, %v637
    %vm639 = vweird.f32 %v631
    %vm640 = vweird.f32 %v633
    %vm641 = vmor %vm639, %vm640
    %v642 = vsel %vm641, %v633, %v638
    %v643 = vrsqrt.pop %v632
    %v644 = vmul.f32 %v643, %v632
    %v645 = vmul.f32 %v644, %v643
    %v646 = vmul.f32 0.5, %v645
    %v647 = vsub.f32 1.5, %v646
    %v648 = vmul.f32 %v643, %v647
    %vm649 = vweird.f32 %v632
    %vm650 = vweird.f32 %v643
    %vm651 = vmor %vm649, %vm650
    %v652 = vsel %vm651, %v643, %v648
    %v653 = vmul.f32 %v619, %v642
    %v654 = vmul.f32 %v620, %v652
    %v656 = vperm.slane %v602, 0
    %v658 = vmul.f32 %v653, %v656
    %v659 = vmul.f32 %v654, %v656
    %v661 = vperm.slane %v603, 0
    %v663 = vadd.f32 %v658, %v661
    %v664 = vadd.f32 %v659, %v661
    %v665 = vld [vmem:[%s12] sm:$0xff]
    %v666 = vld [vmem:[%s12 + $0x8] sm:$0xff]
    %v667 = vld [vmem:[%s12 + $0x10] sm:$0xff]
    %v668 = vld [vmem:[%s12 + $0x18] sm:$0xff]
    %v669 = vld [vmem:[%s13] sm:$0x1]
    %v671 = vperm.slane %v669, 0
    %v674 = vsel %vm127, %v663, 0
    %v677 = vsel %vm127, %v664, 0
    %679 = vmatpush.msra.mxu0 0.0
    %680 = vmatpush.msra.mxu0 0.0
    %681 = vmatpush.msra.mxu0 0.0
    %682 = vmatpush.msra.mxu0 0.0
    %683 = vmatpush.msra.mxu0 0.0
    %684 = vmatpush.msra.mxu0 0.0
    %685 = vmatpush.msra.mxu0 0.0
    %686 = vmatpush.msra.mxu0 0.0
    %687 = vmatpush.msra.mxu0 0.0
    %688 = vmatpush.msra.mxu0 0.0
    %689 = vmatpush.msra.mxu0 0.0
    %690 = vmatpush.msra.mxu0 0.0
    %691 = vmatpush.msra.mxu0 %v668
    %692 = vmatpush.msra.mxu0 %v667
    %693 = vmatpush.msra.mxu0 %v666
    %694 = vmatpush.msra.mxu0 %v665
    %695 = vmatmul.f32.gmra.mxu0 %v674
    %v696 = vpop.f32.mrf.mxu0
    %v697 = vadd.f32 %v671, %v696
    %698 = vmatmul.f32.gmra.mxu0 %v677
    %v699 = vpop.f32.mrf.mxu0
    %v700 = vadd.f32 %v671, %v699
    %701 = vdwg.mxu0
    %v702 = vmul.f32 %v697, 0.5
    %v703 = vmul.f32 %v700, 0.5
    %v704 = vmul.f32 %v697, 0.044715
    %v705 = vmul.f32 %v700, 0.044715
    %v706 = vmul.f32 %v704, %v697
    %v707 = vmul.f32 %v705, %v700
    %v708 = vmul.f32 %v706, %v697
    %v709 = vmul.f32 %v707, %v700
    %v710 = vadd.f32 %v697, %v708
    %v711 = vadd.f32 %v700, %v709
    %v712 = vmul.f32 %v710, 0.7978846
    %v713 = vmul.f32 %v711, 0.7978846
    %v714 = vtanh.pop %v712
    %v715 = vtanh.pop %v713
    %v716 = vadd.f32 %v714, 1.0
    %v717 = vadd.f32 %v715, 1.0
    %v718 = vmul.f32 %v702, %v716
    %v719 = vmul.f32 %v703, %v717
    %v720 = vld [vmem:[%s14] sm:$0xff]
    %v721 = vld [vmem:[%s14 + $0x8] sm:$0xff]
    %v722 = vld [vmem:[%s14 + $0x10] sm:$0xff]
    %v723 = vld [vmem:[%s14 + $0x18] sm:$0xff]
    %v724 = vld [vmem:[%s14 + $0x20] sm:$0xff]
    %v725 = vld [vmem:[%s14 + $0x28] sm:$0xff]
    %v726 = vld [vmem:[%s14 + $0x30] sm:$0xff]
    %v727 = vld [vmem:[%s14 + $0x38] sm:$0xff]
    %v728 = vld [vmem:[%s15] sm:$0x1]
    %v730 = vperm.slane %v728, 0
    %vm732 = vcmask 523264
    %v734 = vsel %vm732, %v718, 0
    %v737 = vsel %vm732, %v719, 0
    %739 = vmatpush.msra.mxu0 0.0
    %740 = vmatpush.msra.mxu0 0.0
    %741 = vmatpush.msra.mxu0 0.0
    %742 = vmatpush.msra.mxu0 0.0
    %743 = vmatpush.msra.mxu0 0.0
    %744 = vmatpush.msra.mxu0 0.0
    %745 = vmatpush.msra.mxu0 0.0
    %746 = vmatpush.msra.mxu0 0.0
    %747 = vmatpush.msra.mxu0 %v727
    %748 = vmatpush.msra.mxu0 %v726
    %749 = vmatpush.msra.mxu0 %v725
    %750 = vmatpush.msra.mxu0 %v724
    %751 = vmatpush.msra.mxu0 %v723
    %752 = vmatpush.msra.mxu0 %v722
    %753 = vmatpush.msra.mxu0 %v721
    %754 = vmatpush.msra.mxu0 %v720
    %755 = vmatmul.f32.gmra.mxu0 %v734
    %v756 = vpop.f32.mrf.mxu0
    %v757 = vadd.f32 %v730, %v756
    %758 = vmatmul.f32.gmra.mxu0 %v737
    %v759 = vpop.f32.mrf.mxu0
    %v760 = vadd.f32 %v730, %v759
    %761 = vdwg.mxu0
    %v762 = vadd.f32 %v663, %v757
    %v763 = vadd.f32 %v664, %v760
    %v764 = vld [vmem:[%s16] sm:$0x1]
    %v765 = vld [vmem:[%s17] sm:$0x1]
    %v766 = vsel %vm127, %v762, 0.0
    %767 = vadd.xlane.f32.xlu0 %v766
    %v768 = vpop.xlane.xlu0 %767
    %v769 = vsel %vm127, %v763, 0.0
    %770 = vadd.xlane.f32.xlu0 %v769
    %v771 = vpop.xlane.xlu0 %770
    %v772 = vmul.f32 %v768, %v616
    %v773 = vmul.f32 %v771, %v616
    %v774 = vsub.f32 %v762, %v772
    %v775 = vsub.f32 %v763, %v773
    %v776 = vmul.f32 %v774, %v774
    %v777 = vmul.f32 %v775, %v775
    %v778 = vsel %vm127, %v776, 0.0
    %779 = vadd.xlane.f32.xlu0 %v778
    %v780 = vpop.xlane.xlu0 %779
    %v781 = vsel %vm127, %v777, 0.0
    %782 = vadd.xlane.f32.xlu0 %v781
    %v783 = vpop.xlane.xlu0 %782
    %v784 = vmul.f32 %v780, %v616
    %v785 = vmul.f32 %v783, %v616
    %v786 = vadd.f32 %v784, 1e-12
    %v787 = vadd.f32 %v785, 1e-12
    %v788 = vrsqrt.pop %v786
    %v789 = vmul.f32 %v788, %v786
    %v790 = vmul.f32 %v789, %v788
    %v791 = vmul.f32 0.5, %v790
    %v792 = vsub.f32 1.5, %v791
    %v793 = vmul.f32 %v788, %v792
    %vm794 = vweird.f32 %v786
    %vm795 = vweird.f32 %v788
    %vm796 = vmor %vm794, %vm795
    %v797 = vsel %vm796, %v788, %v793
    %v798 = vrsqrt.pop %v787
    %v799 = vmul.f32 %v798, %v787
    %v800 = vmul.f32 %v799, %v798
    %v801 = vmul.f32 0.5, %v800
    %v802 = vsub.f32 1.5, %v801
    %v803 = vmul.f32 %v798, %v802
    %vm804 = vweird.f32 %v787
    %vm805 = vweird.f32 %v798
    %vm806 = vmor %vm804, %vm805
    %v807 = vsel %vm806, %v798, %v803
    %v808 = vmul.f32 %v774, %v797
    %v809 = vmul.f32 %v775, %v807
    %v811 = vperm.slane %v764, 0
    %v813 = vmul.f32 %v808, %v811
    %v814 = vmul.f32 %v809, %v811
    %v816 = vperm.slane %v765, 0
    %v818 = vadd.f32 %v813, %v816
    %v819 = vadd.f32 %v814, %v816
    %s820 = scalar_lea.vmem [#allocation3], 128
    %v821 = vld [vmem:[%s820] sm:$0xff]
    %v822 = vld [vmem:[%s820 + $0x8] sm:$0xff]
    %v823 = vld [vmem:[%s820 + $0x10] sm:$0xff]
    %v824 = vld [vmem:[%s820 + $0x18] sm:$0xff]
    %v825 = vld [vmem:[%s820 + $0x20] sm:$0xff]
    %v826 = vld [vmem:[%s820 + $0x28] sm:$0xff]
    %v827 = vld [vmem:[%s820 + $0x30] sm:$0xff]
    %v828 = vld [vmem:[%s820 + $0x38] sm:$0xff]
    %v829 = vld [vmem:[%s820 + $0x40] sm:$0xff]
    %v830 = vld [vmem:[%s820 + $0x48] sm:$0xff]
    %v831 = vld [vmem:[%s820 + $0x50] sm:$0xff]
    %v832 = vld [vmem:[%s820 + $0x58] sm:$0xff]
    %v833 = vld [vmem:[%s820 + $0x60] sm:$0xff]
    %v834 = vld [vmem:[%s820 + $0x68] sm:$0xff]
    %v835 = vld [vmem:[%s820 + $0x70] sm:$0xff]
    %v836 = vld [vmem:[%s820 + $0x78] sm:$0xff]
    %s837 = scalar_lea.vmem %s7, 4
    %v838 = vld [vmem:[%s837] sm:$0x1]
    %v839 = vld [vmem:[%s837 + $0x1] sm:$0x1]
    %v840 = vld [vmem:[%s837 + $0x2] sm:$0x1]
    %v841 = vld [vmem:[%s837 + $0x3] sm:$0x1]
    %v846 = vperm.slane %v838, 0
    %v847 = vperm.slane %v839, 0
    %v848 = vperm.slane %v840, 0
    %v849 = vperm.slane %v841, 0
    %v855 = vsel %vm127, %v818, 0
    %857 = vmatpush.msra.mxu0 0.0
    %858 = vmatpush.msra.mxu0 0.0
    %859 = vmatpush.msra.mxu0 0.0
    %860 = vmatpush.msra.mxu0 0.0
    %861 = vmatpush.msra.mxu0 0.0
    %862 = vmatpush.msra.mxu0 0.0
    %863 = vmatpush.msra.mxu0 0.0
    %864 = vmatpush.msra.mxu0 0.0
    %865 = vmatpush.msra.mxu0 0.0
    %866 = vmatpush.msra.mxu0 0.0
    %867 = vmatpush.msra.mxu0 0.0
    %868 = vmatpush.msra.mxu0 0.0
    %869 = vmatpush.msra.mxu0 %v824
    %870 = vmatpush.msra.mxu0 %v823
    %871 = vmatpush.msra.mxu0 %v822
    %872 = vmatpush.msra.mxu0 %v821
    %873 = vmatmul.f32.gmra.mxu0 %v855
    %v874 = vpop.f32.mrf.mxu0
    %v875 = vadd.f32 %v846, %v874
    %876 = vdwg.mxu0
    %v878 = vsel %vm127, %v819, 0
    %880 = vmatpush.msra.mxu0 0.0
    %881 = vmatpush.msra.mxu0 0.0
    %882 = vmatpush.msra.mxu0 0.0
    %883 = vmatpush.msra.mxu0 0.0
    %884 = vmatpush.msra.mxu0 0.0
    %885 = vmatpush.msra.mxu0 0.0
    %886 = vmatpush.msra.mxu0 0.0
    %887 = vmatpush.msra.mxu0 0.0
    %888 = vmatpush.msra.mxu0 0.0
    %889 = vmatpush.msra.mxu0 0.0
    %890 = vmatpush.msra.mxu0 0.0
    %891 = vmatpush.msra.mxu0 0.0
    %892 = vmatpush.msra.mxu0 %v828
    %893 = vmatpush.msra.mxu0 %v827
    %894 = vmatpush.msra.mxu0 %v826
    %895 = vmatpush.msra.mxu0 %v825
    %896 = vmatmul.f32.gmra.mxu0 %v878
    %v897 = vpop.f32.mrf.mxu0
    %v898 = vadd.f32 %v847, %v897
    %899 = vdwg.mxu0
    %900 = vmatpush.msra.mxu0 0.0
    %901 = vmatpush.msra.mxu0 0.0
    %902 = vmatpush.msra.mxu0 0.0
    %903 = vmatpush.msra.mxu0 0.0
    %904 = vmatpush.msra.mxu0 0.0
    %905 = vmatpush.msra.mxu0 0.0
    %906 = vmatpush.msra.mxu0 0.0
    %907 = vmatpush.msra.mxu0 0.0
    %908 = vmatpush.msra.mxu0 0.0
    %909 = vmatpush.msra.mxu0 0.0
    %910 = vmatpush.msra.mxu0 0.0
    %911 = vmatpush.msra.mxu0 0.0
    %912 = vmatpush.msra.mxu0 %v832
    %913 = vmatpush.msra.mxu0 %v831
    %914 = vmatpush.msra.mxu0 %v830
    %915 = vmatpush.msra.mxu0 %v829
    %916 = vmatmul.f32.gmra.mxu0 %v855
    %v917 = vpop.f32.mrf.mxu0
    %v918 = vadd.f32 %v848, %v917
    %919 = vdwg.mxu0
    %920 = vmatpush.msra.mxu0 0.0
    %921 = vmatpush.msra.mxu0 0.0
    %922 = vmatpush.msra.mxu0 0.0
    %923 = vmatpush.msra.mxu0 0.0
    %924 = vmatpush.msra.mxu0 0.0
    %925 = vmatpush.msra.mxu0 0.0
    %926 = vmatpush.msra.mxu0 0.0
    %927 = vmatpush.msra.mxu0 0.0
    %928 = vmatpush.msra.mxu0 0.0
    %929 = vmatpush.msra.mxu0 0.0
    %930 = vmatpush.msra.mxu0 0.0
    %931 = vmatpush.msra.mxu0 0.0
    %932 = vmatpush.msra.mxu0 %v836
    %933 = vmatpush.msra.mxu0 %v835
    %934 = vmatpush.msra.mxu0 %v834
    %935 = vmatpush.msra.mxu0 %v833
    %936 = vmatmul.f32.gmra.mxu0 %v878
    %v937 = vpop.f32.mrf.mxu0
    %v938 = vadd.f32 %v849, %v937
    %939 = vdwg.mxu0
    %941 = vrot.lane.b32.xlu0 %v875, 112
    %v942 = vpop.permute.xlu0 %941
    %v943 = vsel %vm217, %v875, 0
    %v945 = vsel %vm217, %v942, 0
    %947 = vmatpush.xpose.msra.mxu0 0.0
    %948 = vmatpush.xpose.msra.mxu0 0.0
    %949 = vmatpush.xpose.msra.mxu0 0.0
    %950 = vmatpush.xpose.msra.mxu0 0.0
    %951 = vmatpush.xpose.msra.mxu0 0.0
    %952 = vmatpush.xpose.msra.mxu0 0.0
    %953 = vmatpush.xpose.msra.mxu0 0.0
    %954 = vmatpush.xpose.msra.mxu0 0.0
    %955 = vmatpush.xpose.msra.mxu0 0.0
    %956 = vmatpush.xpose.msra.mxu0 0.0
    %957 = vmatpush.xpose.msra.mxu0 0.0
    %958 = vmatpush.xpose.msra.mxu0 0.0
    %959 = vmatpush.xpose.msra.mxu0 0.0
    %960 = vmatpush.xpose.msra.mxu0 0.0
    %961 = vmatpush.xpose.msra.mxu0 0.0
    %962 = vmatpush.xpose.msra.mxu0 %v945
    %963 = vmatmul.f32.gmra.mxu0 %v943
    %v964 = vpop.f32.mrf.mxu0
    %v965 = vadd.f32 0.0, %v964
    %966 = vdwg.mxu0
    %968 = vrot.lane.b32.xlu0 %v898, 112
    %v969 = vpop.permute.xlu0 %968
    %v970 = vsel %vm217, %v898, 0
    %v972 = vsel %vm217, %v969, 0
    %974 = vmatpush.xpose.msra.mxu0 0.0
    %975 = vmatpush.xpose.msra.mxu0 0.0
    %976 = vmatpush.xpose.msra.mxu0 0.0
    %977 = vmatpush.xpose.msra.mxu0 0.0
    %978 = vmatpush.xpose.msra.mxu0 0.0
    %979 = vmatpush.xpose.msra.mxu0 0.0
    %980 = vmatpush.xpose.msra.mxu0 0.0
    %981 = vmatpush.xpose.msra.mxu0 0.0
    %982 = vmatpush.xpose.msra.mxu0 0.0
    %983 = vmatpush.xpose.msra.mxu0 0.0
    %984 = vmatpush.xpose.msra.mxu0 0.0
    %985 = vmatpush.xpose.msra.mxu0 0.0
    %986 = vmatpush.xpose.msra.mxu0 0.0
    %987 = vmatpush.xpose.msra.mxu0 0.0
    %988 = vmatpush.xpose.msra.mxu0 0.0
    %989 = vmatpush.xpose.msra.mxu0 %v972
    %990 = vmatmul.f32.gmra.mxu0 %v970
    %v991 = vpop.f32.mrf.mxu0
    %v992 = vadd.f32 0.0, %v991
    %993 = vdwg.mxu0
    %995 = vrot.lane.b32.xlu0 %v918, 112
    %v996 = vpop.permute.xlu0 %995
    %v997 = vsel %vm217, %v918, 0
    %v999 = vsel %vm217, %v996, 0
    %1001 = vmatpush.xpose.msra.mxu0 0.0
    %1002 = vmatpush.xpose.msra.mxu0 0.0
    %1003 = vmatpush.xpose.msra.mxu0 0.0
    %1004 = vmatpush.xpose.msra.mxu0 0.0
    %1005 = vmatpush.xpose.msra.mxu0 0.0
    %1006 = vmatpush.xpose.msra.mxu0 0.0
    %1007 = vmatpush.xpose.msra.mxu0 0.0
    %1008 = vmatpush.xpose.msra.mxu0 0.0
    %1009 = vmatpush.xpose.msra.mxu0 0.0
    %1010 = vmatpush.xpose.msra.mxu0 0.0
    %1011 = vmatpush.xpose.msra.mxu0 0.0
    %1012 = vmatpush.xpose.msra.mxu0 0.0
    %1013 = vmatpush.xpose.msra.mxu0 0.0
    %1014 = vmatpush.xpose.msra.mxu0 0.0
    %1015 = vmatpush.xpose.msra.mxu0 0.0
    %1016 = vmatpush.xpose.msra.mxu0 %v999
    %1017 = vmatmul.f32.gmra.mxu0 %v997
    %v1018 = vpop.f32.mrf.mxu0
    %v1019 = vadd.f32 0.0, %v1018
    %1020 = vdwg.mxu0
    %1022 = vrot.lane.b32.xlu0 %v938, 112
    %v1023 = vpop.permute.xlu0 %1022
    %v1024 = vsel %vm217, %v938, 0
    %v1026 = vsel %vm217, %v1023, 0
    %1028 = vmatpush.xpose.msra.mxu0 0.0
    %1029 = vmatpush.xpose.msra.mxu0 0.0
    %1030 = vmatpush.xpose.msra.mxu0 0.0
    %1031 = vmatpush.xpose.msra.mxu0 0.0
    %1032 = vmatpush.xpose.msra.mxu0 0.0
    %1033 = vmatpush.xpose.msra.mxu0 0.0
    %1034 = vmatpush.xpose.msra.mxu0 0.0
    %1035 = vmatpush.xpose.msra.mxu0 0.0
    %1036 = vmatpush.xpose.msra.mxu0 0.0
    %1037 = vmatpush.xpose.msra.mxu0 0.0
    %1038 = vmatpush.xpose.msra.mxu0 0.0
    %1039 = vmatpush.xpose.msra.mxu0 0.0
    %1040 = vmatpush.xpose.msra.mxu0 0.0
    %1041 = vmatpush.xpose.msra.mxu0 0.0
    %1042 = vmatpush.xpose.msra.mxu0 0.0
    %1043 = vmatpush.xpose.msra.mxu0 %v1026
    %1044 = vmatmul.f32.gmra.mxu0 %v1024
    %v1045 = vpop.f32.mrf.mxu0
    %v1046 = vadd.f32 0.0, %v1045
    %1047 = vdwg.mxu0
    %v1048 = vmul.f32 %v965, 0.25
    %v1049 = vmul.f32 %v992, 0.25
    %v1050 = vmul.f32 %v1019, 0.25
    %v1051 = vmul.f32 %v1046, 0.25
    %v1052 = vadd.f32 %v1048, %v331
    %v1053 = vadd.f32 %v1049, %v332
    %v1054 = vadd.f32 %v1050, %v333
    %v1055 = vadd.f32 %v1051, %v334
    %v1056 = vsel %vm343, %v1052, -inf
    %1057 = vmax.xlane.f32.xlu0 %v1056
    %v1058 = vpop.xlane.xlu0 %1057
    %v1059 = vsel %vm343, %v1053, -inf
    %1060 = vmax.xlane.f32.xlu0 %v1059
    %v1061 = vpop.xlane.xlu0 %1060
    %v1062 = vsel %vm343, %v1054, -inf
    %1063 = vmax.xlane.f32.xlu0 %v1062
    %v1064 = vpop.xlane.xlu0 %1063
    %v1065 = vsel %vm343, %v1055, -inf
    %1066 = vmax.xlane.f32.xlu0 %v1065
    %v1067 = vpop.xlane.xlu0 %1066
    %v1068 = vsub.f32 %v1052, %v1058
    %v1069 = vsub.f32 %v1053, %v1061
    %v1070 = vsub.f32 %v1054, %v1064
    %v1071 = vsub.f32 %v1055, %v1067
    %v1072 = vmul.f32 %v1068, 1.442695
    %v1073 = vpow.pop %v1072
    %v1074 = vmul.f32 %v1069, 1.442695
    %v1075 = vpow.pop %v1074
    %v1076 = vmul.f32 %v1070, 1.442695
    %v1077 = vpow.pop %v1076
    %v1078 = vmul.f32 %v1071, 1.442695
    %v1079 = vpow.pop %v1078
    %v1080 = vsel %vm343, %v1073, 0.0
    %1081 = vadd.xlane.f32.xlu0 %v1080
    %v1082 = vpop.xlane.xlu0 %1081
    %v1083 = vsel %vm343, %v1075, 0.0
    %1084 = vadd.xlane.f32.xlu0 %v1083
    %v1085 = vpop.xlane.xlu0 %1084
    %v1086 = vsel %vm343, %v1077, 0.0
    %1087 = vadd.xlane.f32.xlu0 %v1086
    %v1088 = vpop.xlane.xlu0 %1087
    %v1089 = vsel %vm343, %v1079, 0.0
    %1090 = vadd.xlane.f32.xlu0 %v1089
    %v1091 = vpop.xlane.xlu0 %1090
    %v1092 = vrcp.pop %v1082
    %v1093 = vrcp.pop %v1085
    %v1094 = vrcp.pop %v1088
    %v1095 = vrcp.pop %v1091
    %v1096 = vmul.f32 %v1073, %v1092
    %v1097 = vmul.f32 %v1075, %v1093
    %v1098 = vmul.f32 %v1077, %v1094
    %v1099 = vmul.f32 %v1079, %v1095
    %1100 = vrot.lane.b32.xlu0 %v875, 96
    %v1101 = vpop.permute.xlu0 %1100
    %v1104 = vsel %vm343, %v1096, 0
    %1106 = vmatpush.msra.mxu0 0.0
    %1107 = vmatpush.msra.mxu0 0.0
    %1108 = vmatpush.msra.mxu0 0.0
    %1109 = vmatpush.msra.mxu0 0.0
    %1110 = vmatpush.msra.mxu0 0.0
    %1111 = vmatpush.msra.mxu0 0.0
    %1112 = vmatpush.msra.mxu0 0.0
    %1113 = vmatpush.msra.mxu0 0.0
    %1114 = vmatpush.msra.mxu0 0.0
    %1115 = vmatpush.msra.mxu0 0.0
    %1116 = vmatpush.msra.mxu0 0.0
    %1117 = vmatpush.msra.mxu0 0.0
    %1118 = vmatpush.msra.mxu0 0.0
    %1119 = vmatpush.msra.mxu0 0.0
    %1120 = vmatpush.msra.mxu0 0.0
    %1121 = vmatpush.msra.mxu0 %v1101
    %1122 = vmatmul.f32.gmra.mxu0 %v1104
    %v1123 = vpop.f32.mrf.mxu0
    %v1124 = vadd.f32 0.0, %v1123
    %1125 = vdwg.mxu0
    %1126 = vrot.lane.b32.xlu0 %v898, 96
    %v1127 = vpop.permute.xlu0 %1126
    %v1130 = vsel %vm343, %v1097, 0
    %1132 = vmatpush.msra.mxu0 0.0
    %1133 = vmatpush.msra.mxu0 0.0
    %1134 = vmatpush.msra.mxu0 0.0
    %1135 = vmatpush.msra.mxu0 0.0
    %1136 = vmatpush.msra.mxu0 0.0
    %1137 = vmatpush.msra.mxu0 0.0
    %1138 = vmatpush.msra.mxu0 0.0
    %1139 = vmatpush.msra.mxu0 0.0
    %1140 = vmatpush.msra.mxu0 0.0
    %1141 = vmatpush.msra.mxu0 0.0
    %1142 = vmatpush.msra.mxu0 0.0
    %1143 = vmatpush.msra.mxu0 0.0
    %1144 = vmatpush.msra.mxu0 0.0
    %1145 = vmatpush.msra.mxu0 0.0
    %1146 = vmatpush.msra.mxu0 0.0
    %1147 = vmatpush.msra.mxu0 %v1127
    %1148 = vmatmul.f32.gmra.mxu0 %v1130
    %v1149 = vpop.f32.mrf.mxu0
    %v1150 = vadd.f32 0.0, %v1149
    %1151 = vdwg.mxu0
    %1152 = vrot.lane.b32.xlu0 %v918, 96
    %v1153 = vpop.permute.xlu0 %1152
    %v1156 = vsel %vm343, %v1098, 0
    %1158 = vmatpush.msra.mxu0 0.0
    %1159 = vmatpush.msra.mxu0 0.0
    %1160 = vmatpush.msra.mxu0 0.0
    %1161 = vmatpush.msra.mxu0 0.0
    %1162 = vmatpush.msra.mxu0 0.0
    %1163 = vmatpush.msra.mxu0 0.0
    %1164 = vmatpush.msra.mxu0 0.0
    %1165 = vmatpush.msra.mxu0 0.0
    %1166 = vmatpush.msra.mxu0 0.0
    %1167 = vmatpush.msra.mxu0 0.0
    %1168 = vmatpush.msra.mxu0 0.0
    %1169 = vmatpush.msra.mxu0 0.0
    %1170 = vmatpush.msra.mxu0 0.0
    %1171 = vmatpush.msra.mxu0 0.0
    %1172 = vmatpush.msra.mxu0 0.0
    %1173 = vmatpush.msra.mxu0 %v1153
    %1174 = vmatmul.f32.gmra.mxu0 %v1156
    %v1175 = vpop.f32.mrf.mxu0
    %v1176 = vadd.f32 0.0, %v1175
    %1177 = vdwg.mxu0
    %1178 = vrot.lane.b32.xlu0 %v938, 96
    %v1179 = vpop.permute.xlu0 %1178
    %v1182 = vsel %vm343, %v1099, 0
    %1184 = vmatpush.msra.mxu0 0.0
    %1185 = vmatpush.msra.mxu0 0.0
    %1186 = vmatpush.msra.mxu0 0.0
    %1187 = vmatpush.msra.mxu0 0.0
    %1188 = vmatpush.msra.mxu0 0.0
    %1189 = vmatpush.msra.mxu0 0.0
    %1190 = vmatpush.msra.mxu0 0.0
    %1191 = vmatpush.msra.mxu0 0.0
    %1192 = vmatpush.msra.mxu0 0.0
    %1193 = vmatpush.msra.mxu0 0.0
    %1194 = vmatpush.msra.mxu0 0.0
    %1195 = vmatpush.msra.mxu0 0.0
    %1196 = vmatpush.msra.mxu0 0.0
    %1197 = vmatpush.msra.mxu0 0.0
    %1198 = vmatpush.msra.mxu0 0.0
    %1199 = vmatpush.msra.mxu0 %v1179
    %1200 = vmatmul.f32.gmra.mxu0 %v1182
    %v1201 = vpop.f32.mrf.mxu0
    %v1202 = vadd.f32 0.0, %v1201
    %1203 = vdwg.mxu0
    %s1204 = scalar_lea.vmem %s8, 64
    %v1205 = vld [vmem:[%s1204] sm:$0xff]
    %v1206 = vld [vmem:[%s1204 + $0x8] sm:$0xff]
    %v1207 = vld [vmem:[%s1204 + $0x10] sm:$0xff]
    %v1208 = vld [vmem:[%s1204 + $0x18] sm:$0xff]
    %v1209 = vld [vmem:[%s1204 + $0x20] sm:$0xff]
    %v1210 = vld [vmem:[%s1204 + $0x28] sm:$0xff]
    %v1211 = vld [vmem:[%s1204 + $0x30] sm:$0xff]
    %v1212 = vld [vmem:[%s1204 + $0x38] sm:$0xff]
    %v1214 = vsel %vm217, %v1124, 0
    %1216 = vmatpush.msra.mxu0 0.0
    %1217 = vmatpush.msra.mxu0 0.0
    %1218 = vmatpush.msra.mxu0 0.0
    %1219 = vmatpush.msra.mxu0 0.0
    %1220 = vmatpush.msra.mxu0 0.0
    %1221 = vmatpush.msra.mxu0 0.0
    %1222 = vmatpush.msra.mxu0 0.0
    %1223 = vmatpush.msra.mxu0 0.0
    %1224 = vmatpush.msra.mxu0 0.0
    %1225 = vmatpush.msra.mxu0 0.0
    %1226 = vmatpush.msra.mxu0 0.0
    %1227 = vmatpush.msra.mxu0 0.0
    %1228 = vmatpush.msra.mxu0 0.0
    %1229 = vmatpush.msra.mxu0 0.0
    %1230 = vmatpush.msra.mxu0 %v1206
    %1231 = vmatpush.msra.mxu0 %v1205
    %1232 = vmatmul.f32.gmra.mxu0 %v1214
    %v1233 = vpop.f32.mrf.mxu0
    %v1234 = vadd.f32 0.0, %v1233
    %1235 = vdwg.mxu0
    %v1237 = vsel %vm217, %v1150, 0
    %1239 = vmatpush.msra.mxu0 0.0
    %1240 = vmatpush.msra.mxu0 0.0
    %1241 = vmatpush.msra.mxu0 0.0
    %1242 = vmatpush.msra.mxu0 0.0
    %1243 = vmatpush.msra.mxu0 0.0
    %1244 = vmatpush.msra.mxu0 0.0
    %1245 = vmatpush.msra.mxu0 0.0
    %1246 = vmatpush.msra.mxu0 0.0
    %1247 = vmatpush.msra.mxu0 0.0
    %1248 = vmatpush.msra.mxu0 0.0
    %1249 = vmatpush.msra.mxu0 0.0
    %1250 = vmatpush.msra.mxu0 0.0
    %1251 = vmatpush.msra.mxu0 0.0
    %1252 = vmatpush.msra.mxu0 0.0
    %1253 = vmatpush.msra.mxu0 %v1208
    %1254 = vmatpush.msra.mxu0 %v1207
    %1255 = vmatmul.f32.gmra.mxu0 %v1237
    %v1256 = vpop.f32.mrf.mxu0
    %v1257 = vadd.f32 0.0, %v1256
    %1258 = vdwg.mxu0
    %v1260 = vsel %vm217, %v1176, 0
    %1262 = vmatpush.msra.mxu0 0.0
    %1263 = vmatpush.msra.mxu0 0.0
    %1264 = vmatpush.msra.mxu0 0.0
    %1265 = vmatpush.msra.mxu0 0.0
    %1266 = vmatpush.msra.mxu0 0.0
    %1267 = vmatpush.msra.mxu0 0.0
    %1268 = vmatpush.msra.mxu0 0.0
    %1269 = vmatpush.msra.mxu0 0.0
    %1270 = vmatpush.msra.mxu0 0.0
    %1271 = vmatpush.msra.mxu0 0.0
    %1272 = vmatpush.msra.mxu0 0.0
    %1273 = vmatpush.msra.mxu0 0.0
    %1274 = vmatpush.msra.mxu0 0.0
    %1275 = vmatpush.msra.mxu0 0.0
    %1276 = vmatpush.msra.mxu0 %v1210
    %1277 = vmatpush.msra.mxu0 %v1209
    %1278 = vmatmul.f32.gmra.mxu0 %v1260
    %v1279 = vpop.f32.mrf.mxu0
    %v1280 = vadd.f32 0.0, %v1279
    %1281 = vdwg.mxu0
    %v1283 = vsel %vm217, %v1202, 0
    %1285 = vmatpush.msra.mxu0 0.0
    %1286 = vmatpush.msra.mxu0 0.0
    %1287 = vmatpush.msra.mxu0 0.0
    %1288 = vmatpush.msra.mxu0 0.0
    %1289 = vmatpush.msra.mxu0 0.0
    %1290 = vmatpush.msra.mxu0 0.0
    %1291 = vmatpush.msra.mxu0 0.0
    %1292 = vmatpush.msra.mxu0 0.0
    %1293 = vmatpush.msra.mxu0 0.0
    %1294 = vmatpush.msra.mxu0 0.0
    %1295 = vmatpush.msra.mxu0 0.0
    %1296 = vmatpush.msra.mxu0 0.0
    %1297 = vmatpush.msra.mxu0 0.0
    %1298 = vmatpush.msra.mxu0 0.0
    %1299 = vmatpush.msra.mxu0 %v1212
    %1300 = vmatpush.msra.mxu0 %v1211
    %1301 = vmatmul.f32.gmra.mxu0 %v1283
    %v1302 = vpop.f32.mrf.mxu0
    %v1303 = vadd.f32 0.0, %v1302
    %1304 = vdwg.mxu0
    %v1305 = vadd.f32 %v1234, %v1280
    %v1306 = vadd.f32 %v1257, %v1303
    %s1307 = scalar_lea.vmem %s9, 1
    %v1308 = vld [vmem:[%s1307] sm:$0x1]
    %v1310 = vperm.slane %v1308, 0
    %v1312 = vadd.f32 %v1305, %v1310
    %v1313 = vadd.f32 %v1306, %v1310
    %v1314 = vadd.f32 %v818, %v1312
    %v1315 = vadd.f32 %v819, %v1313
    %s1316 = scalar_lea.vmem %s10, 1
    %v1317 = vld [vmem:[%s1316] sm:$0x1]
    %s1318 = scalar_lea.vmem %s11, 1
    %v1319 = vld [vmem:[%s1318] sm:$0x1]
    %v1320 = vsel %vm127, %v1314, 0.0
    %1321 = vadd.xlane.f32.xlu0 %v1320
    %v1322 = vpop.xlane.xlu0 %1321
    %v1323 = vsel %vm127, %v1315, 0.0
    %1324 = vadd.xlane.f32.xlu0 %v1323
    %v1325 = vpop.xlane.xlu0 %1324
    %v1326 = vmul.f32 %v1322, %v616
    %v1327 = vmul.f32 %v1325, %v616
    %v1328 = vsub.f32 %v1314, %v1326
    %v1329 = vsub.f32 %v1315, %v1327
    %v1330 = vmul.f32 %v1328, %v1328
    %v1331 = vmul.f32 %v1329, %v1329
    %v1332 = vsel %vm127, %v1330, 0.0
    %1333 = vadd.xlane.f32.xlu0 %v1332
    %v1334 = vpop.xlane.xlu0 %1333
    %v1335 = vsel %vm127, %v1331, 0.0
    %1336 = vadd.xlane.f32.xlu0 %v1335
    %v1337 = vpop.xlane.xlu0 %1336
    %v1338 = vmul.f32 %v1334, %v616
    %v1339 = vmul.f32 %v1337, %v616
    %v1340 = vadd.f32 %v1338, 1e-12
    %v1341 = vadd.f32 %v1339, 1e-12
    %v1342 = vrsqrt.pop %v1340
    %v1343 = vmul.f32 %v1342, %v1340
    %v1344 = vmul.f32 %v1343, %v1342
    %v1345 = vmul.f32 0.5, %v1344
    %v1346 = vsub.f32 1.5, %v1345
    %v1347 = vmul.f32 %v1342, %v1346
    %vm1348 = vweird.f32 %v1340
    %vm1349 = vweird.f32 %v1342
    %vm1350 = vmor %vm1348, %vm1349
    %v1351 = vsel %vm1350, %v1342, %v1347
    %v1352 = vrsqrt.pop %v1341
    %v1353 = vmul.f32 %v1352, %v1341
    %v1354 = vmul.f32 %v1353, %v1352
    %v1355 = vmul.f32 0.5, %v1354
    %v1356 = vsub.f32 1.5, %v1355
    %v1357 = vmul.f32 %v1352, %v1356
    %vm1358 = vweird.f32 %v1341
    %vm1359 = vweird.f32 %v1352
    %vm1360 = vmor %vm1358, %vm1359
    %v1361 = vsel %vm1360, %v1352, %v1357
    %v1362 = vmul.f32 %v1328, %v1351
    %v1363 = vmul.f32 %v1329, %v1361
    %v1365 = vperm.slane %v1317, 0
    %v1367 = vmul.f32 %v1362, %v1365
    %v1368 = vmul.f32 %v1363, %v1365
    %v1370 = vperm.slane %v1319, 0
    %v1372 = vadd.f32 %v1367, %v1370
    %v1373 = vadd.f32 %v1368, %v1370
    %s1374 = scalar_lea.vmem %s12, 32
    %v1375 = vld [vmem:[%s1374] sm:$0xff]
    %v1376 = vld [vmem:[%s1374 + $0x8] sm:$0xff]
    %v1377 = vld [vmem:[%s1374 + $0x10] sm:$0xff]
    %v1378 = vld [vmem:[%s1374 + $0x18] sm:$0xff]
    %s1379 = scalar_lea.vmem %s13, 1
    %v1380 = vld [vmem:[%s1379] sm:$0x1]
    %v1382 = vperm.slane %v1380, 0
    %v1385 = vsel %vm127, %v1372, 0
    %v1388 = vsel %vm127, %v1373, 0
    %1390 = vmatpush.msra.mxu0 0.0
    %1391 = vmatpush.msra.mxu0 0.0
    %1392 = vmatpush.msra.mxu0 0.0
    %1393 = vmatpush.msra.mxu0 0.0
    %1394 = vmatpush.msra.mxu0 0.0
    %1395 = vmatpush.msra.mxu0 0.0
    %1396 = vmatpush.msra.mxu0 0.0
    %1397 = vmatpush.msra.mxu0 0.0
    %1398 = vmatpush.msra.mxu0 0.0
    %1399 = vmatpush.msra.mxu0 0.0
    %1400 = vmatpush.msra.mxu0 0.0
    %1401 = vmatpush.msra.mxu0 0.0
    %1402 = vmatpush.msra.mxu0 %v1378
    %1403 = vmatpush.msra.mxu0 %v1377
    %1404 = vmatpush.msra.mxu0 %v1376
    %1405 = vmatpush.msra.mxu0 %v1375
    %1406 = vmatmul.f32.gmra.mxu0 %v1385
    %v1407 = vpop.f32.mrf.mxu0
    %v1408 = vadd.f32 %v1382, %v1407
    %1409 = vmatmul.f32.gmra.mxu0 %v1388
    %v1410 = vpop.f32.mrf.mxu0
    %v1411 = vadd.f32 %v1382, %v1410
    %1412 = vdwg.mxu0
    %v1413 = vmul.f32 %v1408, 0.5
    %v1414 = vmul.f32 %v1411, 0.5
    %v1415 = vmul.f32 %v1408, 0.044715
    %v1416 = vmul.f32 %v1411, 0.044715
    %v1417 = vmul.f32 %v1415, %v1408
    %v1418 = vmul.f32 %v1416, %v1411
    %v1419 = vmul.f32 %v1417, %v1408
    %v1420 = vmul.f32 %v1418, %v1411
    %v1421 = vadd.f32 %v1408, %v1419
    %v1422 = vadd.f32 %v1411, %v1420
    %v1423 = vmul.f32 %v1421, 0.7978846
    %v1424 = vmul.f32 %v1422, 0.7978846
    %v1425 = vtanh.pop %v1423
    %v1426 = vtanh.pop %v1424
    %v1427 = vadd.f32 %v1425, 1.0
    %v1428 = vadd.f32 %v1426, 1.0
    %v1429 = vmul.f32 %v1413, %v1427
    %v1430 = vmul.f32 %v1414, %v1428
    %s1431 = scalar_lea.vmem %s14, 64
    %v1432 = vld [vmem:[%s1431] sm:$0xff]
    %v1433 = vld [vmem:[%s1431 + $0x8] sm:$0xff]
    %v1434 = vld [vmem:[%s1431 + $0x10] sm:$0xff]
    %v1435 = vld [vmem:[%s1431 + $0x18] sm:$0xff]
    %v1436 = vld [vmem:[%s1431 + $0x20] sm:$0xff]
    %v1437 = vld [vmem:[%s1431 + $0x28] sm:$0xff]
    %v1438 = vld [vmem:[%s1431 + $0x30] sm:$0xff]
    %v1439 = vld [vmem:[%s1431 + $0x38] sm:$0xff]
    %s1440 = scalar_lea.vmem %s15, 1
    %v1441 = vld [vmem:[%s1440] sm:$0x1]
    %v1443 = vperm.slane %v1441, 0
    %v1446 = vsel %vm732, %v1429, 0
    %v1449 = vsel %vm732, %v1430, 0
    %1451 = vmatpush.msra.mxu0 0.0
    %1452 = vmatpush.msra.mxu0 0.0
    %1453 = vmatpush.msra.mxu0 0.0
    %1454 = vmatpush.msra.mxu0 0.0
    %1455 = vmatpush.msra.mxu0 0.0
    %1456 = vmatpush.msra.mxu0 0.0
    %1457 = vmatpush.msra.mxu0 0.0
    %1458 = vmatpush.msra.mxu0 0.0
    %1459 = vmatpush.msra.mxu0 %v1439
    %1460 = vmatpush.msra.mxu0 %v1438
    %1461 = vmatpush.msra.mxu0 %v1437
    %1462 = vmatpush.msra.mxu0 %v1436
    %1463 = vmatpush.msra.mxu0 %v1435
    %1464 = vmatpush.msra.mxu0 %v1434
    %1465 = vmatpush.msra.mxu0 %v1433
    %1466 = vmatpush.msra.mxu0 %v1432
    %1467 = vmatmul.f32.gmra.mxu0 %v1446
    %v1468 = vpop.f32.mrf.mxu0
    %v1469 = vadd.f32 %v1443, %v1468
    %1470 = vmatmul.f32.gmra.mxu0 %v1449
    %v1471 = vpop.f32.mrf.mxu0
    %v1472 = vadd.f32 %v1443, %v1471
    %1473 = vdwg.mxu0
    %v1474 = vadd.f32 %v1372, %v1469
    %v1475 = vadd.f32 %v1373, %v1472
    %s1476 = scalar_lea.vmem %s16, 1
    %v1477 = vld [vmem:[%s1476] sm:$0x1]
    %s1478 = scalar_lea.vmem %s17, 1
    %v1479 = vld [vmem:[%s1478] sm:$0x1]
    %v1480 = vsel %vm127, %v1474, 0.0
    %1481 = vadd.xlane.f32.xlu0 %v1480
    %v1482 = vpop.xlane.xlu0 %1481
    %v1483 = vsel %vm127, %v1475, 0.0
    %1484 = vadd.xlane.f32.xlu0 %v1483
    %v1485 = vpop.xlane.xlu0 %1484
    %v1486 = vmul.f32 %v1482, %v616
    %v1487 = vmul.f32 %v1485, %v616
    %v1488 = vsub.f32 %v1474, %v1486
    %v1489 = vsub.f32 %v1475, %v1487
    %v1490 = vmul.f32 %v1488, %v1488
    %v1491 = vmul.f32 %v1489, %v1489
    %v1492 = vsel %vm127, %v1490, 0.0
    %1493 = vadd.xlane.f32.xlu0 %v1492
    %v1494 = vpop.xlane.xlu0 %1493
    %v1495 = vsel %vm127, %v1491, 0.0
    %1496 = vadd.xlane.f32.xlu0 %v1495
    %v1497 = vpop.xlane.xlu0 %1496
    %v1498 = vmul.f32 %v1494, %v616
    %v1499 = vmul.f32 %v1497, %v616
    %v1500 = vadd.f32 %v1498, 1e-12
    %v1501 = vadd.f32 %v1499, 1e-12
    %v1502 = vrsqrt.pop %v1500
    %v1503 = vmul.f32 %v1502, %v1500
    %v1504 = vmul.f32 %v1503, %v1502
    %v1505 = vmul.f32 0.5, %v1504
    %v1506 = vsub.f32 1.5, %v1505
    %v1507 = vmul.f32 %v1502, %v1506
    %vm1508 = vweird.f32 %v1500
    %vm1509 = vweird.f32 %v1502
    %vm1510 = vmor %vm1508, %vm1509
    %v1511 = vsel %vm1510, %v1502, %v1507
    %v1512 = vrsqrt.pop %v1501
    %v1513 = vmul.f32 %v1512, %v1501
    %v1514 = vmul.f32 %v1513, %v1512
    %v1515 = vmul.f32 0.5, %v1514
    %v1516 = vsub.f32 1.5, %v1515
    %v1517 = vmul.f32 %v1512, %v1516
    %vm1518 = vweird.f32 %v1501
    %vm1519 = vweird.f32 %v1512
    %vm1520 = vmor %vm1518, %vm1519
    %v1521 = vsel %vm1520, %v1512, %v1517
    %v1522 = vmul.f32 %v1488, %v1511
    %v1523 = vmul.f32 %v1489, %v1521
    %v1525 = vperm.slane %v1477, 0
    %v1527 = vmul.f32 %v1522, %v1525
    %v1528 = vmul.f32 %v1523, %v1525
    %v1530 = vperm.slane %v1479, 0
    %v1532 = vadd.f32 %v1527, %v1530
    %v1533 = vadd.f32 %v1528, %v1530
    %v1535 = vrot.slane %v1533, 7
    %vm1537 = vcmask 1040384
    %v1538 = vsel %vm1537, %v1532, %v1535
    %v1539 = vld [vmem:[%s1] sm:$0xff]
    %v1540 = vld [vmem:[%s1 + $0x8] sm:$0xff]
    %v1541 = vld [vmem:[%s3] sm:$0x1]
    %v1542 = vld [vmem:[%s3 + $0x1] sm:$0x1]
    %v1543 = vld [vmem:[%s3 + $0x2] sm:$0x1]
    %v1544 = vld [vmem:[%s3 + $0x3] sm:$0x1]
    %s1545 = scalar_lea.vmem [#allocation3], 256
    %v1546 = vld [vmem:[%s1545] sm:$0xff]
    %v1547 = vld [vmem:[%s1545 + $0x8] sm:$0xff]
    %v1548 = vld [vmem:[%s1545 + $0x10] sm:$0xff]
    %v1549 = vld [vmem:[%s1545 + $0x18] sm:$0xff]
    %v1550 = vld [vmem:[%s1545 + $0x20] sm:$0xff]
    %v1551 = vld [vmem:[%s1545 + $0x28] sm:$0xff]
    %v1552 = vld [vmem:[%s1545 + $0x30] sm:$0xff]
    %v1553 = vld [vmem:[%s1545 + $0x38] sm:$0xff]
    %v1554 = vld [vmem:[%s1545 + $0x40] sm:$0xff]
    %v1555 = vld [vmem:[%s1545 + $0x48] sm:$0xff]
    %v1556 = vld [vmem:[%s1545 + $0x50] sm:$0xff]
    %v1557 = vld [vmem:[%s1545 + $0x58] sm:$0xff]
    %v1558 = vld [vmem:[%s1545 + $0x60] sm:$0xff]
    %v1559 = vld [vmem:[%s1545 + $0x68] sm:$0xff]
    %v1560 = vld [vmem:[%s1545 + $0x70] sm:$0xff]
    %v1561 = vld [vmem:[%s1545 + $0x78] sm:$0xff]
    %s1562 = scalar_lea.vmem %s7, 8
    %v1563 = vld [vmem:[%s1562] sm:$0x1]
    %v1564 = vld [vmem:[%s1562 + $0x1] sm:$0x1]
    %v1565 = vld [vmem:[%s1562 + $0x2] sm:$0x1]
    %v1566 = vld [vmem:[%s1562 + $0x3] sm:$0x1]
    %v1571 = vperm.slane %v1563, 0
    %v1572 = vperm.slane %v1564, 0
    %v1573 = vperm.slane %v1565, 0
    %v1574 = vperm.slane %v1566, 0
    %v1580 = vsel %vm127, %v1539, 0
    %1582 = vmatpush.msra.mxu0 0.0
    %1583 = vmatpush.msra.mxu0 0.0
    %1584 = vmatpush.msra.mxu0 0.0
    %1585 = vmatpush.msra.mxu0 0.0
    %1586 = vmatpush.msra.mxu0 0.0
    %1587 = vmatpush.msra.mxu0 0.0
    %1588 = vmatpush.msra.mxu0 0.0
    %1589 = vmatpush.msra.mxu0 0.0
    %1590 = vmatpush.msra.mxu0 0.0
    %1591 = vmatpush.msra.mxu0 0.0
    %1592 = vmatpush.msra.mxu0 0.0
    %1593 = vmatpush.msra.mxu0 0.0
    %1594 = vmatpush.msra.mxu0 %v1549
    %1595 = vmatpush.msra.mxu0 %v1548
    %1596 = vmatpush.msra.mxu0 %v1547
    %1597 = vmatpush.msra.mxu0 %v1546
    %1598 = vmatmul.f32.gmra.mxu0 %v1580
    %v1599 = vpop.f32.mrf.mxu0
    %v1600 = vadd.f32 %v1571, %v1599
    %1601 = vdwg.mxu0
    %v1603 = vsel %vm127, %v1540, 0
    %1605 = vmatpush.msra.mxu0 0.0
    %1606 = vmatpush.msra.mxu0 0.0
    %1607 = vmatpush.msra.mxu0 0.0
    %1608 = vmatpush.msra.mxu0 0.0
    %1609 = vmatpush.msra.mxu0 0.0
    %1610 = vmatpush.msra.mxu0 0.0
    %1611 = vmatpush.msra.mxu0 0.0
    %1612 = vmatpush.msra.mxu0 0.0
    %1613 = vmatpush.msra.mxu0 0.0
    %1614 = vmatpush.msra.mxu0 0.0
    %1615 = vmatpush.msra.mxu0 0.0
    %1616 = vmatpush.msra.mxu0 0.0
    %1617 = vmatpush.msra.mxu0 %v1553
    %1618 = vmatpush.msra.mxu0 %v1552
    %1619 = vmatpush.msra.mxu0 %v1551
    %1620 = vmatpush.msra.mxu0 %v1550
    %1621 = vmatmul.f32.gmra.mxu0 %v1603
    %v1622 = vpop.f32.mrf.mxu0
    %v1623 = vadd.f32 %v1572, %v1622
    %1624 = vdwg.mxu0
    %1625 = vmatpush.msra.mxu0 0.0
    %1626 = vmatpush.msra.mxu0 0.0
    %1627 = vmatpush.msra.mxu0 0.0
    %1628 = vmatpush.msra.mxu0 0.0
    %1629 = vmatpush.msra.mxu0 0.0
    %1630 = vmatpush.msra.mxu0 0.0
    %1631 = vmatpush.msra.mxu0 0.0
    %1632 = vmatpush.msra.mxu0 0.0
    %1633 = vmatpush.msra.mxu0 0.0
    %1634 = vmatpush.msra.mxu0 0.0
    %1635 = vmatpush.msra.mxu0 0.0
    %1636 = vmatpush.msra.mxu0 0.0
    %1637 = vmatpush.msra.mxu0 %v1557
    %1638 = vmatpush.msra.mxu0 %v1556
    %1639 = vmatpush.msra.mxu0 %v1555
    %1640 = vmatpush.msra.mxu0 %v1554
    %1641 = vmatmul.f32.gmra.mxu0 %v1580
    %v1642 = vpop.f32.mrf.mxu0
    %v1643 = vadd.f32 %v1573, %v1642
    %1644 = vdwg.mxu0
    %1645 = vmatpush.msra.mxu0 0.0
    %1646 = vmatpush.msra.mxu0 0.0
    %1647 = vmatpush.msra.mxu0 0.0
    %1648 = vmatpush.msra.mxu0 0.0
    %1649 = vmatpush.msra.mxu0 0.0
    %1650 = vmatpush.msra.mxu0 0.0
    %1651 = vmatpush.msra.mxu0 0.0
    %1652 = vmatpush.msra.mxu0 0.0
    %1653 = vmatpush.msra.mxu0 0.0
    %1654 = vmatpush.msra.mxu0 0.0
    %1655 = vmatpush.msra.mxu0 0.0
    %1656 = vmatpush.msra.mxu0 0.0
    %1657 = vmatpush.msra.mxu0 %v1561
    %1658 = vmatpush.msra.mxu0 %v1560
    %1659 = vmatpush.msra.mxu0 %v1559
    %1660 = vmatpush.msra.mxu0 %v1558
    %1661 = vmatmul.f32.gmra.mxu0 %v1603
    %v1662 = vpop.f32.mrf.mxu0
    %v1663 = vadd.f32 %v1574, %v1662
    %1664 = vdwg.mxu0
    %1666 = vrot.lane.b32.xlu0 %v1600, 112
    %v1667 = vpop.permute.xlu0 %1666
    %v1668 = vsel %vm217, %v1600, 0
    %v1670 = vsel %vm217, %v1667, 0
    %1672 = vmatpush.xpose.msra.mxu0 0.0
    %1673 = vmatpush.xpose.msra.mxu0 0.0
    %1674 = vmatpush.xpose.msra.mxu0 0.0
    %1675 = vmatpush.xpose.msra.mxu0 0.0
    %1676 = vmatpush.xpose.msra.mxu0 0.0
    %1677 = vmatpush.xpose.msra.mxu0 0.0
    %1678 = vmatpush.xpose.msra.mxu0 0.0
    %1679 = vmatpush.xpose.msra.mxu0 0.0
    %1680 = vmatpush.xpose.msra.mxu0 0.0
    %1681 = vmatpush.xpose.msra.mxu0 0.0
    %1682 = vmatpush.xpose.msra.mxu0 0.0
    %1683 = vmatpush.xpose.msra.mxu0 0.0
    %1684 = vmatpush.xpose.msra.mxu0 0.0
    %1685 = vmatpush.xpose.msra.mxu0 0.0
    %1686 = vmatpush.xpose.msra.mxu0 0.0
    %1687 = vmatpush.xpose.msra.mxu0 %v1670
    %1688 = vmatmul.f32.gmra.mxu0 %v1668
    %v1689 = vpop.f32.mrf.mxu0
    %v1690 = vadd.f32 0.0, %v1689
    %1691 = vdwg.mxu0
    %1693 = vrot.lane.b32.xlu0 %v1623, 112
    %v1694 = vpop.permute.xlu0 %1693
    %v1695 = vsel %vm217, %v1623, 0
    %v1697 = vsel %vm217, %v1694, 0
    %1699 = vmatpush.xpose.msra.mxu0 0.0
    %1700 = vmatpush.xpose.msra.mxu0 0.0
    %1701 = vmatpush.xpose.msra.mxu0 0.0
    %1702 = vmatpush.xpose.msra.mxu0 0.0
    %1703 = vmatpush.xpose.msra.mxu0 0.0
    %1704 = vmatpush.xpose.msra.mxu0 0.0
    %1705 = vmatpush.xpose.msra.mxu0 0.0
    %1706 = vmatpush.xpose.msra.mxu0 0.0
    %1707 = vmatpush.xpose.msra.mxu0 0.0
    %1708 = vmatpush.xpose.msra.mxu0 0.0
    %1709 = vmatpush.xpose.msra.mxu0 0.0
    %1710 = vmatpush.xpose.msra.mxu0 0.0
    %1711 = vmatpush.xpose.msra.mxu0 0.0
    %1712 = vmatpush.xpose.msra.mxu0 0.0
    %1713 = vmatpush.xpose.msra.mxu0 0.0
    %1714 = vmatpush.xpose.msra.mxu0 %v1697
    %1715 = vmatmul.f32.gmra.mxu0 %v1695
    %v1716 = vpop.f32.mrf.mxu0
    %v1717 = vadd.f32 0.0, %v1716
    %1718 = vdwg.mxu0
    %1720 = vrot.lane.b32.xlu0 %v1643, 112
    %v1721 = vpop.permute.xlu0 %1720
    %v1722 = vsel %vm217, %v1643, 0
    %v1724 = vsel %vm217, %v1721, 0
    %1726 = vmatpush.xpose.msra.mxu0 0.0
    %1727 = vmatpush.xpose.msra.mxu0 0.0
    %1728 = vmatpush.xpose.msra.mxu0 0.0
    %1729 = vmatpush.xpose.msra.mxu0 0.0
    %1730 = vmatpush.xpose.msra.mxu0 0.0
    %1731 = vmatpush.xpose.msra.mxu0 0.0
    %1732 = vmatpush.xpose.msra.mxu0 0.0
    %1733 = vmatpush.xpose.msra.mxu0 0.0
    %1734 = vmatpush.xpose.msra.mxu0 0.0
    %1735 = vmatpush.xpose.msra.mxu0 0.0
    %1736 = vmatpush.xpose.msra.mxu0 0.0
    %1737 = vmatpush.xpose.msra.mxu0 0.0
    %1738 = vmatpush.xpose.msra.mxu0 0.0
    %1739 = vmatpush.xpose.msra.mxu0 0.0
    %1740 = vmatpush.xpose.msra.mxu0 0.0
    %1741 = vmatpush.xpose.msra.mxu0 %v1724
    %1742 = vmatmul.f32.gmra.mxu0 %v1722
    %v1743 = vpop.f32.mrf.mxu0
    %v1744 = vadd.f32 0.0, %v1743
    %1745 = vdwg.mxu0
    %1747 = vrot.lane.b32.xlu0 %v1663, 112
    %v1748 = vpop.permute.xlu0 %1747
    %v1749 = vsel %vm217, %v1663, 0
    %v1751 = vsel %vm217, %v1748, 0
    %1753 = vmatpush.xpose.msra.mxu0 0.0
    %1754 = vmatpush.xpose.msra.mxu0 0.0
    %1755 = vmatpush.xpose.msra.mxu0 0.0
    %1756 = vmatpush.xpose.msra.mxu0 0.0
    %1757 = vmatpush.xpose.msra.mxu0 0.0
    %1758 = vmatpush.xpose.msra.mxu0 0.0
    %1759 = vmatpush.xpose.msra.mxu0 0.0
    %1760 = vmatpush.xpose.msra.mxu0 0.0
    %1761 = vmatpush.xpose.msra.mxu0 0.0
    %1762 = vmatpush.xpose.msra.mxu0 0.0
    %1763 = vmatpush.xpose.msra.mxu0 0.0
    %1764 = vmatpush.xpose.msra.mxu0 0.0
    %1765 = vmatpush.xpose.msra.mxu0 0.0
    %1766 = vmatpush.xpose.msra.mxu0 0.0
    %1767 = vmatpush.xpose.msra.mxu0 0.0
    %1768 = vmatpush.xpose.msra.mxu0 %v1751
    %1769 = vmatmul.f32.gmra.mxu0 %v1749
    %v1770 = vpop.f32.mrf.mxu0
    %v1771 = vadd.f32 0.0, %v1770
    %1772 = vdwg.mxu0
    %v1773 = vmul.f32 %v1690, 0.25
    %v1774 = vmul.f32 %v1717, 0.25
    %v1775 = vmul.f32 %v1744, 0.25
    %v1776 = vmul.f32 %v1771, 0.25
    %v1781 = vperm.slane %v1541, 0
    %v1782 = vperm.slane %v1542, 0
    %v1783 = vperm.slane %v1543, 0
    %v1784 = vperm.slane %v1544, 0
    %v1789 = vadd.f32 %v1773, %v1781
    %v1790 = vadd.f32 %v1774, %v1782
    %v1791 = vadd.f32 %v1775, %v1783
    %v1792 = vadd.f32 %v1776, %v1784
    %v1793 = vsel %vm343, %v1789, -inf
    %1794 = vmax.xlane.f32.xlu0 %v1793
    %v1795 = vpop.xlane.xlu0 %1794
    %v1796 = vsel %vm343, %v1790, -inf
    %1797 = vmax.xlane.f32.xlu0 %v1796
    %v1798 = vpop.xlane.xlu0 %1797
    %v1799 = vsel %vm343, %v1791, -inf
    %1800 = vmax.xlane.f32.xlu0 %v1799
    %v1801 = vpop.xlane.xlu0 %1800
    %v1802 = vsel %vm343, %v1792, -inf
    %1803 = vmax.xlane.f32.xlu0 %v1802
    %v1804 = vpop.xlane.xlu0 %1803
    %v1805 = vsub.f32 %v1789, %v1795
    %v1806 = vsub.f32 %v1790, %v1798
    %v1807 = vsub.f32 %v1791, %v1801
    %v1808 = vsub.f32 %v1792, %v1804
    %v1809 = vmul.f32 %v1805, 1.442695
    %v1810 = vpow.pop %v1809
    %v1811 = vmul.f32 %v1806, 1.442695
    %v1812 = vpow.pop %v1811
    %v1813 = vmul.f32 %v1807, 1.442695
    %v1814 = vpow.pop %v1813
    %v1815 = vmul.f32 %v1808, 1.442695
    %v1816 = vpow.pop %v1815
    %v1817 = vsel %vm343, %v1810, 0.0
    %1818 = vadd.xlane.f32.xlu0 %v1817
    %v1819 = vpop.xlane.xlu0 %1818
    %v1820 = vsel %vm343, %v1812, 0.0
    %1821 = vadd.xlane.f32.xlu0 %v1820
    %v1822 = vpop.xlane.xlu0 %1821
    %v1823 = vsel %vm343, %v1814, 0.0
    %1824 = vadd.xlane.f32.xlu0 %v1823
    %v1825 = vpop.xlane.xlu0 %1824
    %v1826 = vsel %vm343, %v1816, 0.0
    %1827 = vadd.xlane.f32.xlu0 %v1826
    %v1828 = vpop.xlane.xlu0 %1827
    %v1829 = vrcp.pop %v1819
    %v1830 = vrcp.pop %v1822
    %v1831 = vrcp.pop %v1825
    %v1832 = vrcp.pop %v1828
    %v1833 = vmul.f32 %v1810, %v1829
    %v1834 = vmul.f32 %v1812, %v1830
    %v1835 = vmul.f32 %v1814, %v1831
    %v1836 = vmul.f32 %v1816, %v1832
    %1837 = vrot.lane.b32.xlu0 %v1600, 96
    %v1838 = vpop.permute.xlu0 %1837
    %v1841 = vsel %vm343, %v1833, 0
    %1843 = vmatpush.msra.mxu0 0.0
    %1844 = vmatpush.msra.mxu0 0.0
    %1845 = vmatpush.msra.mxu0 0.0
    %1846 = vmatpush.msra.mxu0 0.0
    %1847 = vmatpush.msra.mxu0 0.0
    %1848 = vmatpush.msra.mxu0 0.0
    %1849 = vmatpush.msra.mxu0 0.0
    %1850 = vmatpush.msra.mxu0 0.0
    %1851 = vmatpush.msra.mxu0 0.0
    %1852 = vmatpush.msra.mxu0 0.0
    %1853 = vmatpush.msra.mxu0 0.0
    %1854 = vmatpush.msra.mxu0 0.0
    %1855 = vmatpush.msra.mxu0 0.0
    %1856 = vmatpush.msra.mxu0 0.0
    %1857 = vmatpush.msra.mxu0 0.0
    %1858 = vmatpush.msra.mxu0 %v1838
    %1859 = vmatmul.f32.gmra.mxu0 %v1841
    %v1860 = vpop.f32.mrf.mxu0
    %v1861 = vadd.f32 0.0, %v1860
    %1862 = vdwg.mxu0
    %1863 = vrot.lane.b32.xlu0 %v1623, 96
    %v1864 = vpop.permute.xlu0 %1863
    %v1867 = vsel %vm343, %v1834, 0
    %1869 = vmatpush.msra.mxu0 0.0
    %1870 = vmatpush.msra.mxu0 0.0
    %1871 = vmatpush.msra.mxu0 0.0
    %1872 = vmatpush.msra.mxu0 0.0
    %1873 = vmatpush.msra.mxu0 0.0
    %1874 = vmatpush.msra.mxu0 0.0
    %1875 = vmatpush.msra.mxu0 0.0
    %1876 = vmatpush.msra.mxu0 0.0
    %1877 = vmatpush.msra.mxu0 0.0
    %1878 = vmatpush.msra.mxu0 0.0
    %1879 = vmatpush.msra.mxu0 0.0
    %1880 = vmatpush.msra.mxu0 0.0
    %1881 = vmatpush.msra.mxu0 0.0
    %1882 = vmatpush.msra.mxu0 0.0
    %1883 = vmatpush.msra.mxu0 0.0
    %1884 = vmatpush.msra.mxu0 %v1864
    %1885 = vmatmul.f32.gmra.mxu0 %v1867
    %v1886 = vpop.f32.mrf.mxu0
    %v1887 = vadd.f32 0.0, %v1886
    %1888 = vdwg.mxu0
    %1889 = vrot.lane.b32.xlu0 %v1643, 96
    %v1890 = vpop.permute.xlu0 %1889
    %v1893 = vsel %vm343, %v1835, 0
    %1895 = vmatpush.msra.mxu0 0.0
    %1896 = vmatpush.msra.mxu0 0.0
    %1897 = vmatpush.msra.mxu0 0.0
    %1898 = vmatpush.msra.mxu0 0.0
    %1899 = vmatpush.msra.mxu0 0.0
    %1900 = vmatpush.msra.mxu0 0.0
    %1901 = vmatpush.msra.mxu0 0.0
    %1902 = vmatpush.msra.mxu0 0.0
    %1903 = vmatpush.msra.mxu0 0.0
    %1904 = vmatpush.msra.mxu0 0.0
    %1905 = vmatpush.msra.mxu0 0.0
    %1906 = vmatpush.msra.mxu0 0.0
    %1907 = vmatpush.msra.mxu0 0.0
    %1908 = vmatpush.msra.mxu0 0.0
    %1909 = vmatpush.msra.mxu0 0.0
    %1910 = vmatpush.msra.mxu0 %v1890
    %1911 = vmatmul.f32.gmra.mxu0 %v1893
    %v1912 = vpop.f32.mrf.mxu0
    %v1913 = vadd.f32 0.0, %v1912
    %1914 = vdwg.mxu0
    %1915 = vrot.lane.b32.xlu0 %v1663, 96
    %v1916 = vpop.permute.xlu0 %1915
    %v1919 = vsel %vm343, %v1836, 0
    %1921 = vmatpush.msra.mxu0 0.0
    %1922 = vmatpush.msra.mxu0 0.0
    %1923 = vmatpush.msra.mxu0 0.0
    %1924 = vmatpush.msra.mxu0 0.0
    %1925 = vmatpush.msra.mxu0 0.0
    %1926 = vmatpush.msra.mxu0 0.0
    %1927 = vmatpush.msra.mxu0 0.0
    %1928 = vmatpush.msra.mxu0 0.0
    %1929 = vmatpush.msra.mxu0 0.0
    %1930 = vmatpush.msra.mxu0 0.0
    %1931 = vmatpush.msra.mxu0 0.0
    %1932 = vmatpush.msra.mxu0 0.0
    %1933 = vmatpush.msra.mxu0 0.0
    %1934 = vmatpush.msra.mxu0 0.0
    %1935 = vmatpush.msra.mxu0 0.0
    %1936 = vmatpush.msra.mxu0 %v1916
    %1937 = vmatmul.f32.gmra.mxu0 %v1919
    %v1938 = vpop.f32.mrf.mxu0
    %v1939 = vadd.f32 0.0, %v1938
    %1940 = vdwg.mxu0
    %s1941 = scalar_lea.vmem %s8, 128
    %v1942 = vld [vmem:[%s1941] sm:$0xff]
    %v1943 = vld [vmem:[%s1941 + $0x8] sm:$0xff]
    %v1944 = vld [vmem:[%s1941 + $0x10] sm:$0xff]
    %v1945 = vld [vmem:[%s1941 + $0x18] sm:$0xff]
    %v1946 = vld [vmem:[%s1941 + $0x20] sm:$0xff]
    %v1947 = vld [vmem:[%s1941 + $0x28] sm:$0xff]
    %v1948 = vld [vmem:[%s1941 + $0x30] sm:$0xff]
    %v1949 = vld [vmem:[%s1941 + $0x38] sm:$0xff]
    %v1951 = vsel %vm217, %v1861, 0
    %1953 = vmatpush.msra.mxu0 0.0
    %1954 = vmatpush.msra.mxu0 0.0
    %1955 = vmatpush.msra.mxu0 0.0
    %1956 = vmatpush.msra.mxu0 0.0
    %1957 = vmatpush.msra.mxu0 0.0
    %1958 = vmatpush.msra.mxu0 0.0
    %1959 = vmatpush.msra.mxu0 0.0
    %1960 = vmatpush.msra.mxu0 0.0
    %1961 = vmatpush.msra.mxu0 0.0
    %1962 = vmatpush.msra.mxu0 0.0
    %1963 = vmatpush.msra.mxu0 0.0
    %1964 = vmatpush.msra.mxu0 0.0
    %1965 = vmatpush.msra.mxu0 0.0
    %1966 = vmatpush.msra.mxu0 0.0
    %1967 = vmatpush.msra.mxu0 %v1943
    %1968 = vmatpush.msra.mxu0 %v1942
    %1969 = vmatmul.f32.gmra.mxu0 %v1951
    %v1970 = vpop.f32.mrf.mxu0
    %v1971 = vadd.f32 0.0, %v1970
    %1972 = vdwg.mxu0
    %v1974 = vsel %vm217, %v1887, 0
    %1976 = vmatpush.msra.mxu0 0.0
    %1977 = vmatpush.msra.mxu0 0.0
    %1978 = vmatpush.msra.mxu0 0.0
    %1979 = vmatpush.msra.mxu0 0.0
    %1980 = vmatpush.msra.mxu0 0.0
    %1981 = vmatpush.msra.mxu0 0.0
    %1982 = vmatpush.msra.mxu0 0.0
    %1983 = vmatpush.msra.mxu0 0.0
    %1984 = vmatpush.msra.mxu0 0.0
    %1985 = vmatpush.msra.mxu0 0.0
    %1986 = vmatpush.msra.mxu0 0.0
    %1987 = vmatpush.msra.mxu0 0.0
    %1988 = vmatpush.msra.mxu0 0.0
    %1989 = vmatpush.msra.mxu0 0.0
    %1990 = vmatpush.msra.mxu0 %v1945
    %1991 = vmatpush.msra.mxu0 %v1944
    %1992 = vmatmul.f32.gmra.mxu0 %v1974
    %v1993 = vpop.f32.mrf.mxu0
    %v1994 = vadd.f32 0.0, %v1993
    %1995 = vdwg.mxu0
    %v1997 = vsel %vm217, %v1913, 0
    %1999 = vmatpush.msra.mxu0 0.0
    %2000 = vmatpush.msra.mxu0 0.0
    %2001 = vmatpush.msra.mxu0 0.0
    %2002 = vmatpush.msra.mxu0 0.0
    %2003 = vmatpush.msra.mxu0 0.0
    %2004 = vmatpush.msra.mxu0 0.0
    %2005 = vmatpush.msra.mxu0 0.0
    %2006 = vmatpush.msra.mxu0 0.0
    %2007 = vmatpush.msra.mxu0 0.0
    %2008 = vmatpush.msra.mxu0 0.0
    %2009 = vmatpush.msra.mxu0 0.0
    %2010 = vmatpush.msra.mxu0 0.0
    %2011 = vmatpush.msra.mxu0 0.0
    %2012 = vmatpush.msra.mxu0 0.0
    %2013 = vmatpush.msra.mxu0 %v1947
    %2014 = vmatpush.msra.mxu0 %v1946
    %2015 = vmatmul.f32.gmra.mxu0 %v1997
    %v2016 = vpop.f32.mrf.mxu0
    %v2017 = vadd.f32 0.0, %v2016
    %2018 = vdwg.mxu0
    %v2020 = vsel %vm217, %v1939, 0
    %2022 = vmatpush.msra.mxu0 0.0
    %2023 = vmatpush.msra.mxu0 0.0
    %2024 = vmatpush.msra.mxu0 0.0
    %2025 = vmatpush.msra.mxu0 0.0
    %2026 = vmatpush.msra.mxu0 0.0
    %2027 = vmatpush.msra.mxu0 0.0
    %2028 = vmatpush.msra.mxu0 0.0
    %2029 = vmatpush.msra.mxu0 0.0
    %2030 = vmatpush.msra.mxu0 0.0
    %2031 = vmatpush.msra.mxu0 0.0
    %2032 = vmatpush.msra.mxu0 0.0
    %2033 = vmatpush.msra.mxu0 0.0
    %2034 = vmatpush.msra.mxu0 0.0
    %2035 = vmatpush.msra.mxu0 0.0
    %2036 = vmatpush.msra.mxu0 %v1949
    %2037 = vmatpush.msra.mxu0 %v1948
    %2038 = vmatmul.f32.gmra.mxu0 %v2020
    %v2039 = vpop.f32.mrf.mxu0
    %v2040 = vadd.f32 0.0, %v2039
    %2041 = vdwg.mxu0
    %v2042 = vadd.f32 %v1971, %v2017
    %v2043 = vadd.f32 %v1994, %v2040
    %s2044 = scalar_lea.vmem %s9, 2
    %v2045 = vld [vmem:[%s2044] sm:$0x1]
    %v2047 = vperm.slane %v2045, 0
    %v2049 = vadd.f32 %v2042, %v2047
    %v2050 = vadd.f32 %v2043, %v2047
    %v2051 = vadd.f32 %v1539, %v2049
    %v2052 = vadd.f32 %v1540, %v2050
    %s2053 = scalar_lea.vmem %s10, 2
    %v2054 = vld [vmem:[%s2053] sm:$0x1]
    %s2055 = scalar_lea.vmem %s11, 2
    %v2056 = vld [vmem:[%s2055] sm:$0x1]
    %v2057 = vsel %vm127, %v2051, 0.0
    %2058 = vadd.xlane.f32.xlu0 %v2057
    %v2059 = vpop.xlane.xlu0 %2058
    %v2060 = vsel %vm127, %v2052, 0.0
    %2061 = vadd.xlane.f32.xlu0 %v2060
    %v2062 = vpop.xlane.xlu0 %2061
    %v2063 = vmul.f32 %v2059, %v616
    %v2064 = vmul.f32 %v2062, %v616
    %v2065 = vsub.f32 %v2051, %v2063
    %v2066 = vsub.f32 %v2052, %v2064
    %v2067 = vmul.f32 %v2065, %v2065
    %v2068 = vmul.f32 %v2066, %v2066
    %v2069 = vsel %vm127, %v2067, 0.0
    %2070 = vadd.xlane.f32.xlu0 %v2069
    %v2071 = vpop.xlane.xlu0 %2070
    %v2072 = vsel %vm127, %v2068, 0.0
    %2073 = vadd.xlane.f32.xlu0 %v2072
    %v2074 = vpop.xlane.xlu0 %2073
    %v2075 = vmul.f32 %v2071, %v616
    %v2076 = vmul.f32 %v2074, %v616
    %v2077 = vadd.f32 %v2075, 1e-12
    %v2078 = vadd.f32 %v2076, 1e-12
    %v2079 = vrsqrt.pop %v2077
    %v2080 = vmul.f32 %v2079, %v2077
    %v2081 = vmul.f32 %v2080, %v2079
    %v2082 = vmul.f32 0.5, %v2081
    %v2083 = vsub.f32 1.5, %v2082
    %v2084 = vmul.f32 %v2079, %v2083
    %vm2085 = vweird.f32 %v2077
    %vm2086 = vweird.f32 %v2079
    %vm2087 = vmor %vm2085, %vm2086
    %v2088 = vsel %vm2087, %v2079, %v2084
    %v2089 = vrsqrt.pop %v2078
    %v2090 = vmul.f32 %v2089, %v2078
    %v2091 = vmul.f32 %v2090, %v2089
    %v2092 = vmul.f32 0.5, %v2091
    %v2093 = vsub.f32 1.5, %v2092
    %v2094 = vmul.f32 %v2089, %v2093
    %vm2095 = vweird.f32 %v2078
    %vm2096 = vweird.f32 %v2089
    %vm2097 = vmor %vm2095, %vm2096
    %v2098 = vsel %vm2097, %v2089, %v2094
    %v2099 = vmul.f32 %v2065, %v2088
    %v2100 = vmul.f32 %v2066, %v2098
    %v2102 = vperm.slane %v2054, 0
    %v2104 = vmul.f32 %v2099, %v2102
    %v2105 = vmul.f32 %v2100, %v2102
    %v2107 = vperm.slane %v2056, 0
    %v2109 = vadd.f32 %v2104, %v2107
    %v2110 = vadd.f32 %v2105, %v2107
    %s2111 = scalar_lea.vmem %s12, 64
    %v2112 = vld [vmem:[%s2111] sm:$0xff]
    %v2113 = vld [vmem:[%s2111 + $0x8] sm:$0xff]
    %v2114 = vld [vmem:[%s2111 + $0x10] sm:$0xff]
    %v2115 = vld [vmem:[%s2111 + $0x18] sm:$0xff]
    %s2116 = scalar_lea.vmem %s13, 2
    %v2117 = vld [vmem:[%s2116] sm:$0x1]
    %v2119 = vperm.slane %v2117, 0
    %v2122 = vsel %vm127, %v2109, 0
    %v2125 = vsel %vm127, %v2110, 0
    %2127 = vmatpush.msra.mxu0 0.0
    %2128 = vmatpush.msra.mxu0 0.0
    %2129 = vmatpush.msra.mxu0 0.0
    %2130 = vmatpush.msra.mxu0 0.0
    %2131 = vmatpush.msra.mxu0 0.0
    %2132 = vmatpush.msra.mxu0 0.0
    %2133 = vmatpush.msra.mxu0 0.0
    %2134 = vmatpush.msra.mxu0 0.0
    %2135 = vmatpush.msra.mxu0 0.0
    %2136 = vmatpush.msra.mxu0 0.0
    %2137 = vmatpush.msra.mxu0 0.0
    %2138 = vmatpush.msra.mxu0 0.0
    %2139 = vmatpush.msra.mxu0 %v2115
    %2140 = vmatpush.msra.mxu0 %v2114
    %2141 = vmatpush.msra.mxu0 %v2113
    %2142 = vmatpush.msra.mxu0 %v2112
    %2143 = vmatmul.f32.gmra.mxu0 %v2122
    %v2144 = vpop.f32.mrf.mxu0
    %v2145 = vadd.f32 %v2119, %v2144
    %2146 = vmatmul.f32.gmra.mxu0 %v2125
    %v2147 = vpop.f32.mrf.mxu0
    %v2148 = vadd.f32 %v2119, %v2147
    %2149 = vdwg.mxu0
    %v2150 = vmul.f32 %v2145, 0.5
    %v2151 = vmul.f32 %v2148, 0.5
    %v2152 = vmul.f32 %v2145, 0.044715
    %v2153 = vmul.f32 %v2148, 0.044715
    %v2154 = vmul.f32 %v2152, %v2145
    %v2155 = vmul.f32 %v2153, %v2148
    %v2156 = vmul.f32 %v2154, %v2145
    %v2157 = vmul.f32 %v2155, %v2148
    %v2158 = vadd.f32 %v2145, %v2156
    %v2159 = vadd.f32 %v2148, %v2157
    %v2160 = vmul.f32 %v2158, 0.7978846
    %v2161 = vmul.f32 %v2159, 0.7978846
    %v2162 = vtanh.pop %v2160
    %v2163 = vtanh.pop %v2161
    %v2164 = vadd.f32 %v2162, 1.0
    %v2165 = vadd.f32 %v2163, 1.0
    %v2166 = vmul.f32 %v2150, %v2164
    %v2167 = vmul.f32 %v2151, %v2165
    %s2168 = scalar_lea.vmem %s14, 128
    %v2169 = vld [vmem:[%s2168] sm:$0xff]
    %v2170 = vld [vmem:[%s2168 + $0x8] sm:$0xff]
    %v2171 = vld [vmem:[%s2168 + $0x10] sm:$0xff]
    %v2172 = vld [vmem:[%s2168 + $0x18] sm:$0xff]
    %v2173 = vld [vmem:[%s2168 + $0x20] sm:$0xff]
    %v2174 = vld [vmem:[%s2168 + $0x28] sm:$0xff]
    %v2175 = vld [vmem:[%s2168 + $0x30] sm:$0xff]
    %v2176 = vld [vmem:[%s2168 + $0x38] sm:$0xff]
    %s2177 = scalar_lea.vmem %s15, 2
    %v2178 = vld [vmem:[%s2177] sm:$0x1]
    %v2180 = vperm.slane %v2178, 0
    %v2183 = vsel %vm732, %v2166, 0
    %v2186 = vsel %vm732, %v2167, 0
    %2188 = vmatpush.msra.mxu0 0.0
    %2189 = vmatpush.msra.mxu0 0.0
    %2190 = vmatpush.msra.mxu0 0.0
    %2191 = vmatpush.msra.mxu0 0.0
    %2192 = vmatpush.msra.mxu0 0.0
    %2193 = vmatpush.msra.mxu0 0.0
    %2194 = vmatpush.msra.mxu0 0.0
    %2195 = vmatpush.msra.mxu0 0.0
    %2196 = vmatpush.msra.mxu0 %v2176
    %2197 = vmatpush.msra.mxu0 %v2175
    %2198 = vmatpush.msra.mxu0 %v2174
    %2199 = vmatpush.msra.mxu0 %v2173
    %2200 = vmatpush.msra.mxu0 %v2172
    %2201 = vmatpush.msra.mxu0 %v2171
    %2202 = vmatpush.msra.mxu0 %v2170
    %2203 = vmatpush.msra.mxu0 %v2169
    %2204 = vmatmul.f32.gmra.mxu0 %v2183
    %v2205 = vpop.f32.mrf.mxu0
    %v2206 = vadd.f32 %v2180, %v2205
    %2207 = vmatmul.f32.gmra.mxu0 %v2186
    %v2208 = vpop.f32.mrf.mxu0
    %v2209 = vadd.f32 %v2180, %v2208
    %2210 = vdwg.mxu0
    %v2211 = vadd.f32 %v2109, %v2206
    %v2212 = vadd.f32 %v2110, %v2209
    %s2213 = scalar_lea.vmem %s16, 2
    %v2214 = vld [vmem:[%s2213] sm:$0x1]
    %s2215 = scalar_lea.vmem %s17, 2
    %v2216 = vld [vmem:[%s2215] sm:$0x1]
    %v2217 = vsel %vm127, %v2211, 0.0
    %2218 = vadd.xlane.f32.xlu0 %v2217
    %v2219 = vpop.xlane.xlu0 %2218
    %v2220 = vsel %vm127, %v2212, 0.0
    %2221 = vadd.xlane.f32.xlu0 %v2220
    %v2222 = vpop.xlane.xlu0 %2221
    %v2223 = vmul.f32 %v2219, %v616
    %v2224 = vmul.f32 %v2222, %v616
    %v2225 = vsub.f32 %v2211, %v2223
    %v2226 = vsub.f32 %v2212, %v2224
    %v2227 = vmul.f32 %v2225, %v2225
    %v2228 = vmul.f32 %v2226, %v2226
    %v2229 = vsel %vm127, %v2227, 0.0
    %2230 = vadd.xlane.f32.xlu0 %v2229
    %v2231 = vpop.xlane.xlu0 %2230
    %v2232 = vsel %vm127, %v2228, 0.0
    %2233 = vadd.xlane.f32.xlu0 %v2232
    %v2234 = vpop.xlane.xlu0 %2233
    %v2235 = vmul.f32 %v2231, %v616
    %v2236 = vmul.f32 %v2234, %v616
    %v2237 = vadd.f32 %v2235, 1e-12
    %v2238 = vadd.f32 %v2236, 1e-12
    %v2239 = vrsqrt.pop %v2237
    %v2240 = vmul.f32 %v2239, %v2237
    %v2241 = vmul.f32 %v2240, %v2239
    %v2242 = vmul.f32 0.5, %v2241
    %v2243 = vsub.f32 1.5, %v2242
    %v2244 = vmul.f32 %v2239, %v2243
    %vm2245 = vweird.f32 %v2237
    %vm2246 = vweird.f32 %v2239
    %vm2247 = vmor %vm2245, %vm2246
    %v2248 = vsel %vm2247, %v2239, %v2244
    %v2249 = vrsqrt.pop %v2238
    %v2250 = vmul.f32 %v2249, %v2238
    %v2251 = vmul.f32 %v2250, %v2249
    %v2252 = vmul.f32 0.5, %v2251
    %v2253 = vsub.f32 1.5, %v2252
    %v2254 = vmul.f32 %v2249, %v2253
    %vm2255 = vweird.f32 %v2238
    %vm2256 = vweird.f32 %v2249
    %vm2257 = vmor %vm2255, %vm2256
    %v2258 = vsel %vm2257, %v2249, %v2254
    %v2259 = vmul.f32 %v2225, %v2248
    %v2260 = vmul.f32 %v2226, %v2258
    %v2262 = vperm.slane %v2214, 0
    %v2264 = vmul.f32 %v2259, %v2262
    %v2265 = vmul.f32 %v2260, %v2262
    %v2267 = vperm.slane %v2216, 0
    %v2269 = vadd.f32 %v2264, %v2267
    %v2270 = vadd.f32 %v2265, %v2267
    %s2271 = scalar_lea.vmem [#allocation3], 384
    %v2272 = vld [vmem:[%s2271] sm:$0xff]
    %v2273 = vld [vmem:[%s2271 + $0x8] sm:$0xff]
    %v2274 = vld [vmem:[%s2271 + $0x10] sm:$0xff]
    %v2275 = vld [vmem:[%s2271 + $0x18] sm:$0xff]
    %v2276 = vld [vmem:[%s2271 + $0x20] sm:$0xff]
    %v2277 = vld [vmem:[%s2271 + $0x28] sm:$0xff]
    %v2278 = vld [vmem:[%s2271 + $0x30] sm:$0xff]
    %v2279 = vld [vmem:[%s2271 + $0x38] sm:$0xff]
    %v2280 = vld [vmem:[%s2271 + $0x40] sm:$0xff]
    %v2281 = vld [vmem:[%s2271 + $0x48] sm:$0xff]
    %v2282 = vld [vmem:[%s2271 + $0x50] sm:$0xff]
    %v2283 = vld [vmem:[%s2271 + $0x58] sm:$0xff]
    %v2284 = vld [vmem:[%s2271 + $0x60] sm:$0xff]
    %v2285 = vld [vmem:[%s2271 + $0x68] sm:$0xff]
    %v2286 = vld [vmem:[%s2271 + $0x70] sm:$0xff]
    %v2287 = vld [vmem:[%s2271 + $0x78] sm:$0xff]
    %s2288 = scalar_lea.vmem %s7, 12
    %v2289 = vld [vmem:[%s2288] sm:$0x1]
    %v2290 = vld [vmem:[%s2288 + $0x1] sm:$0x1]
    %v2291 = vld [vmem:[%s2288 + $0x2] sm:$0x1]
    %v2292 = vld [vmem:[%s2288 + $0x3] sm:$0x1]
    %v2297 = vperm.slane %v2289, 0
    %v2298 = vperm.slane %v2290, 0
    %v2299 = vperm.slane %v2291, 0
    %v2300 = vperm.slane %v2292, 0
    %v2306 = vsel %vm127, %v2269, 0
    %2308 = vmatpush.msra.mxu0 0.0
    %2309 = vmatpush.msra.mxu0 0.0
    %2310 = vmatpush.msra.mxu0 0.0
    %2311 = vmatpush.msra.mxu0 0.0
    %2312 = vmatpush.msra.mxu0 0.0
    %2313 = vmatpush.msra.mxu0 0.0
    %2314 = vmatpush.msra.mxu0 0.0
    %2315 = vmatpush.msra.mxu0 0.0
    %2316 = vmatpush.msra.mxu0 0.0
    %2317 = vmatpush.msra.mxu0 0.0
    %2318 = vmatpush.msra.mxu0 0.0
    %2319 = vmatpush.msra.mxu0 0.0
    %2320 = vmatpush.msra.mxu0 %v2275
    %2321 = vmatpush.msra.mxu0 %v2274
    %2322 = vmatpush.msra.mxu0 %v2273
    %2323 = vmatpush.msra.mxu0 %v2272
    %2324 = vmatmul.f32.gmra.mxu0 %v2306
    %v2325 = vpop.f32.mrf.mxu0
    %v2326 = vadd.f32 %v2297, %v2325
    %2327 = vdwg.mxu0
    %v2329 = vsel %vm127, %v2270, 0
    %2331 = vmatpush.msra.mxu0 0.0
    %2332 = vmatpush.msra.mxu0 0.0
    %2333 = vmatpush.msra.mxu0 0.0
    %2334 = vmatpush.msra.mxu0 0.0
    %2335 = vmatpush.msra.mxu0 0.0
    %2336 = vmatpush.msra.mxu0 0.0
    %2337 = vmatpush.msra.mxu0 0.0
    %2338 = vmatpush.msra.mxu0 0.0
    %2339 = vmatpush.msra.mxu0 0.0
    %2340 = vmatpush.msra.mxu0 0.0
    %2341 = vmatpush.msra.mxu0 0.0
    %2342 = vmatpush.msra.mxu0 0.0
    %2343 = vmatpush.msra.mxu0 %v2279
    %2344 = vmatpush.msra.mxu0 %v2278
    %2345 = vmatpush.msra.mxu0 %v2277
    %2346 = vmatpush.msra.mxu0 %v2276
    %2347 = vmatmul.f32.gmra.mxu0 %v2329
    %v2348 = vpop.f32.mrf.mxu0
    %v2349 = vadd.f32 %v2298, %v2348
    %2350 = vdwg.mxu0
    %2351 = vmatpush.msra.mxu0 0.0
    %2352 = vmatpush.msra.mxu0 0.0
    %2353 = vmatpush.msra.mxu0 0.0
    %2354 = vmatpush.msra.mxu0 0.0
    %2355 = vmatpush.msra.mxu0 0.0
    %2356 = vmatpush.msra.mxu0 0.0
    %2357 = vmatpush.msra.mxu0 0.0
    %2358 = vmatpush.msra.mxu0 0.0
    %2359 = vmatpush.msra.mxu0 0.0
    %2360 = vmatpush.msra.mxu0 0.0
    %2361 = vmatpush.msra.mxu0 0.0
    %2362 = vmatpush.msra.mxu0 0.0
    %2363 = vmatpush.msra.mxu0 %v2283
    %2364 = vmatpush.msra.mxu0 %v2282
    %2365 = vmatpush.msra.mxu0 %v2281
    %2366 = vmatpush.msra.mxu0 %v2280
    %2367 = vmatmul.f32.gmra.mxu0 %v2306
    %v2368 = vpop.f32.mrf.mxu0
    %v2369 = vadd.f32 %v2299, %v2368
    %2370 = vdwg.mxu0
    %2371 = vmatpush.msra.mxu0 0.0
    %2372 = vmatpush.msra.mxu0 0.0
    %2373 = vmatpush.msra.mxu0 0.0
    %2374 = vmatpush.msra.mxu0 0.0
    %2375 = vmatpush.msra.mxu0 0.0
    %2376 = vmatpush.msra.mxu0 0.0
    %2377 = vmatpush.msra.mxu0 0.0
    %2378 = vmatpush.msra.mxu0 0.0
    %2379 = vmatpush.msra.mxu0 0.0
    %2380 = vmatpush.msra.mxu0 0.0
    %2381 = vmatpush.msra.mxu0 0.0
    %2382 = vmatpush.msra.mxu0 0.0
    %2383 = vmatpush.msra.mxu0 %v2287
    %2384 = vmatpush.msra.mxu0 %v2286
    %2385 = vmatpush.msra.mxu0 %v2285
    %2386 = vmatpush.msra.mxu0 %v2284
    %2387 = vmatmul.f32.gmra.mxu0 %v2329
    %v2388 = vpop.f32.mrf.mxu0
    %v2389 = vadd.f32 %v2300, %v2388
    %2390 = vdwg.mxu0
    %2392 = vrot.lane.b32.xlu0 %v2326, 112
    %v2393 = vpop.permute.xlu0 %2392
    %v2394 = vsel %vm217, %v2326, 0
    %v2396 = vsel %vm217, %v2393, 0
    %2398 = vmatpush.xpose.msra.mxu0 0.0
    %2399 = vmatpush.xpose.msra.mxu0 0.0
    %2400 = vmatpush.xpose.msra.mxu0 0.0
    %2401 = vmatpush.xpose.msra.mxu0 0.0
    %2402 = vmatpush.xpose.msra.mxu0 0.0
    %2403 = vmatpush.xpose.msra.mxu0 0.0
    %2404 = vmatpush.xpose.msra.mxu0 0.0
    %2405 = vmatpush.xpose.msra.mxu0 0.0
    %2406 = vmatpush.xpose.msra.mxu0 0.0
    %2407 = vmatpush.xpose.msra.mxu0 0.0
    %2408 = vmatpush.xpose.msra.mxu0 0.0
    %2409 = vmatpush.xpose.msra.mxu0 0.0
    %2410 = vmatpush.xpose.msra.mxu0 0.0
    %2411 = vmatpush.xpose.msra.mxu0 0.0
    %2412 = vmatpush.xpose.msra.mxu0 0.0
    %2413 = vmatpush.xpose.msra.mxu0 %v2396
    %2414 = vmatmul.f32.gmra.mxu0 %v2394
    %v2415 = vpop.f32.mrf.mxu0
    %v2416 = vadd.f32 0.0, %v2415
    %2417 = vdwg.mxu0
    %2419 = vrot.lane.b32.xlu0 %v2349, 112
    %v2420 = vpop.permute.xlu0 %2419
    %v2421 = vsel %vm217, %v2349, 0
    %v2423 = vsel %vm217, %v2420, 0
    %2425 = vmatpush.xpose.msra.mxu0 0.0
    %2426 = vmatpush.xpose.msra.mxu0 0.0
    %2427 = vmatpush.xpose.msra.mxu0 0.0
    %2428 = vmatpush.xpose.msra.mxu0 0.0
    %2429 = vmatpush.xpose.msra.mxu0 0.0
    %2430 = vmatpush.xpose.msra.mxu0 0.0
    %2431 = vmatpush.xpose.msra.mxu0 0.0
    %2432 = vmatpush.xpose.msra.mxu0 0.0
    %2433 = vmatpush.xpose.msra.mxu0 0.0
    %2434 = vmatpush.xpose.msra.mxu0 0.0
    %2435 = vmatpush.xpose.msra.mxu0 0.0
    %2436 = vmatpush.xpose.msra.mxu0 0.0
    %2437 = vmatpush.xpose.msra.mxu0 0.0
    %2438 = vmatpush.xpose.msra.mxu0 0.0
    %2439 = vmatpush.xpose.msra.mxu0 0.0
    %2440 = vmatpush.xpose.msra.mxu0 %v2423
    %2441 = vmatmul.f32.gmra.mxu0 %v2421
    %v2442 = vpop.f32.mrf.mxu0
    %v2443 = vadd.f32 0.0, %v2442
    %2444 = vdwg.mxu0
    %2446 = vrot.lane.b32.xlu0 %v2369, 112
    %v2447 = vpop.permute.xlu0 %2446
    %v2448 = vsel %vm217, %v2369, 0
    %v2450 = vsel %vm217, %v2447, 0
    %2452 = vmatpush.xpose.msra.mxu0 0.0
    %2453 = vmatpush.xpose.msra.mxu0 0.0
    %2454 = vmatpush.xpose.msra.mxu0 0.0
    %2455 = vmatpush.xpose.msra.mxu0 0.0
    %2456 = vmatpush.xpose.msra.mxu0 0.0
    %2457 = vmatpush.xpose.msra.mxu0 0.0
    %2458 = vmatpush.xpose.msra.mxu0 0.0
    %2459 = vmatpush.xpose.msra.mxu0 0.0
    %2460 = vmatpush.xpose.msra.mxu0 0.0
    %2461 = vmatpush.xpose.msra.mxu0 0.0
    %2462 = vmatpush.xpose.msra.mxu0 0.0
    %2463 = vmatpush.xpose.msra.mxu0 0.0
    %2464 = vmatpush.xpose.msra.mxu0 0.0
    %2465 = vmatpush.xpose.msra.mxu0 0.0
    %2466 = vmatpush.xpose.msra.mxu0 0.0
    %2467 = vmatpush.xpose.msra.mxu0 %v2450
    %2468 = vmatmul.f32.gmra.mxu0 %v2448
    %v2469 = vpop.f32.mrf.mxu0
    %v2470 = vadd.f32 0.0, %v2469
    %2471 = vdwg.mxu0
    %2473 = vrot.lane.b32.xlu0 %v2389, 112
    %v2474 = vpop.permute.xlu0 %2473
    %v2475 = vsel %vm217, %v2389, 0
    %v2477 = vsel %vm217, %v2474, 0
    %2479 = vmatpush.xpose.msra.mxu0 0.0
    %2480 = vmatpush.xpose.msra.mxu0 0.0
    %2481 = vmatpush.xpose.msra.mxu0 0.0
    %2482 = vmatpush.xpose.msra.mxu0 0.0
    %2483 = vmatpush.xpose.msra.mxu0 0.0
    %2484 = vmatpush.xpose.msra.mxu0 0.0
    %2485 = vmatpush.xpose.msra.mxu0 0.0
    %2486 = vmatpush.xpose.msra.mxu0 0.0
    %2487 = vmatpush.xpose.msra.mxu0 0.0
    %2488 = vmatpush.xpose.msra.mxu0 0.0
    %2489 = vmatpush.xpose.msra.mxu0 0.0
    %2490 = vmatpush.xpose.msra.mxu0 0.0
    %2491 = vmatpush.xpose.msra.mxu0 0.0
    %2492 = vmatpush.xpose.msra.mxu0 0.0
    %2493 = vmatpush.xpose.msra.mxu0 0.0
    %2494 = vmatpush.xpose.msra.mxu0 %v2477
    %2495 = vmatmul.f32.gmra.mxu0 %v2475
    %v2496 = vpop.f32.mrf.mxu0
    %v2497 = vadd.f32 0.0, %v2496
    %2498 = vdwg.mxu0
    %v2499 = vmul.f32 %v2416, 0.25
    %v2500 = vmul.f32 %v2443, 0.25
    %v2501 = vmul.f32 %v2470, 0.25
    %v2502 = vmul.f32 %v2497, 0.25
    %v2503 = vadd.f32 %v2499, %v1781
    %v2504 = vadd.f32 %v2500, %v1782
    %v2505 = vadd.f32 %v2501, %v1783
    %v2506 = vadd.f32 %v2502, %v1784
    %v2507 = vsel %vm343, %v2503, -inf
    %2508 = vmax.xlane.f32.xlu0 %v2507
    %v2509 = vpop.xlane.xlu0 %2508
    %v2510 = vsel %vm343, %v2504, -inf
    %2511 = vmax.xlane.f32.xlu0 %v2510
    %v2512 = vpop.xlane.xlu0 %2511
    %v2513 = vsel %vm343, %v2505, -inf
    %2514 = vmax.xlane.f32.xlu0 %v2513
    %v2515 = vpop.xlane.xlu0 %2514
    %v2516 = vsel %vm343, %v2506, -inf
    %2517 = vmax.xlane.f32.xlu0 %v2516
    %v2518 = vpop.xlane.xlu0 %2517
    %v2519 = vsub.f32 %v2503, %v2509
    %v2520 = vsub.f32 %v2504, %v2512
    %v2521 = vsub.f32 %v2505, %v2515
    %v2522 = vsub.f32 %v2506, %v2518
    %v2523 = vmul.f32 %v2519, 1.442695
    %v2524 = vpow.pop %v2523
    %v2525 = vmul.f32 %v2520, 1.442695
    %v2526 = vpow.pop %v2525
    %v2527 = vmul.f32 %v2521, 1.442695
    %v2528 = vpow.pop %v2527
    %v2529 = vmul.f32 %v2522, 1.442695
    %v2530 = vpow.pop %v2529
    %v2531 = vsel %vm343, %v2524, 0.0
    %2532 = vadd.xlane.f32.xlu0 %v2531
    %v2533 = vpop.xlane.xlu0 %2532
    %v2534 = vsel %vm343, %v2526, 0.0
    %2535 = vadd.xlane.f32.xlu0 %v2534
    %v2536 = vpop.xlane.xlu0 %2535
    %v2537 = vsel %vm343, %v2528, 0.0
    %2538 = vadd.xlane.f32.xlu0 %v2537
    %v2539 = vpop.xlane.xlu0 %2538
    %v2540 = vsel %vm343, %v2530, 0.0
    %2541 = vadd.xlane.f32.xlu0 %v2540
    %v2542 = vpop.xlane.xlu0 %2541
    %v2543 = vrcp.pop %v2533
    %v2544 = vrcp.pop %v2536
    %v2545 = vrcp.pop %v2539
    %v2546 = vrcp.pop %v2542
    %v2547 = vmul.f32 %v2524, %v2543
    %v2548 = vmul.f32 %v2526, %v2544
    %v2549 = vmul.f32 %v2528, %v2545
    %v2550 = vmul.f32 %v2530, %v2546
    %2551 = vrot.lane.b32.xlu0 %v2326, 96
    %v2552 = vpop.permute.xlu0 %2551
    %v2555 = vsel %vm343, %v2547, 0
    %2557 = vmatpush.msra.mxu0 0.0
    %2558 = vmatpush.msra.mxu0 0.0
    %2559 = vmatpush.msra.mxu0 0.0
    %2560 = vmatpush.msra.mxu0 0.0
    %2561 = vmatpush.msra.mxu0 0.0
    %2562 = vmatpush.msra.mxu0 0.0
    %2563 = vmatpush.msra.mxu0 0.0
    %2564 = vmatpush.msra.mxu0 0.0
    %2565 = vmatpush.msra.mxu0 0.0
    %2566 = vmatpush.msra.mxu0 0.0
    %2567 = vmatpush.msra.mxu0 0.0
    %2568 = vmatpush.msra.mxu0 0.0
    %2569 = vmatpush.msra.mxu0 0.0
    %2570 = vmatpush.msra.mxu0 0.0
    %2571 = vmatpush.msra.mxu0 0.0
    %2572 = vmatpush.msra.mxu0 %v2552
    %2573 = vmatmul.f32.gmra.mxu0 %v2555
    %v2574 = vpop.f32.mrf.mxu0
    %v2575 = vadd.f32 0.0, %v2574
    %2576 = vdwg.mxu0
    %2577 = vrot.lane.b32.xlu0 %v2349, 96
    %v2578 = vpop.permute.xlu0 %2577
    %v2581 = vsel %vm343, %v2548, 0
    %2583 = vmatpush.msra.mxu0 0.0
    %2584 = vmatpush.msra.mxu0 0.0
    %2585 = vmatpush.msra.mxu0 0.0
    %2586 = vmatpush.msra.mxu0 0.0
    %2587 = vmatpush.msra.mxu0 0.0
    %2588 = vmatpush.msra.mxu0 0.0
    %2589 = vmatpush.msra.mxu0 0.0
    %2590 = vmatpush.msra.mxu0 0.0
    %2591 = vmatpush.msra.mxu0 0.0
    %2592 = vmatpush.msra.mxu0 0.0
    %2593 = vmatpush.msra.mxu0 0.0
    %2594 = vmatpush.msra.mxu0 0.0
    %2595 = vmatpush.msra.mxu0 0.0
    %2596 = vmatpush.msra.mxu0 0.0
    %2597 = vmatpush.msra.mxu0 0.0
    %2598 = vmatpush.msra.mxu0 %v2578
    %2599 = vmatmul.f32.gmra.mxu0 %v2581
    %v2600 = vpop.f32.mrf.mxu0
    %v2601 = vadd.f32 0.0, %v2600
    %2602 = vdwg.mxu0
    %2603 = vrot.lane.b32.xlu0 %v2369, 96
    %v2604 = vpop.permute.xlu0 %2603
    %v2607 = vsel %vm343, %v2549, 0
    %2609 = vmatpush.msra.mxu0 0.0
    %2610 = vmatpush.msra.mxu0 0.0
    %2611 = vmatpush.msra.mxu0 0.0
    %2612 = vmatpush.msra.mxu0 0.0
    %2613 = vmatpush.msra.mxu0 0.0
    %2614 = vmatpush.msra.mxu0 0.0
    %2615 = vmatpush.msra.mxu0 0.0
    %2616 = vmatpush.msra.mxu0 0.0
    %2617 = vmatpush.msra.mxu0 0.0
    %2618 = vmatpush.msra.mxu0 0.0
    %2619 = vmatpush.msra.mxu0 0.0
    %2620 = vmatpush.msra.mxu0 0.0
    %2621 = vmatpush.msra.mxu0 0.0
    %2622 = vmatpush.msra.mxu0 0.0
    %2623 = vmatpush.msra.mxu0 0.0
    %2624 = vmatpush.msra.mxu0 %v2604
    %2625 = vmatmul.f32.gmra.mxu0 %v2607
    %v2626 = vpop.f32.mrf.mxu0
    %v2627 = vadd.f32 0.0, %v2626
    %2628 = vdwg.mxu0
    %2629 = vrot.lane.b32.xlu0 %v2389, 96
    %v2630 = vpop.permute.xlu0 %2629
    %v2633 = vsel %vm343, %v2550, 0
    %2635 = vmatpush.msra.mxu0 0.0
    %2636 = vmatpush.msra.mxu0 0.0
    %2637 = vmatpush.msra.mxu0 0.0
    %2638 = vmatpush.msra.mxu0 0.0
    %2639 = vmatpush.msra.mxu0 0.0
    %2640 = vmatpush.msra.mxu0 0.0
    %2641 = vmatpush.msra.mxu0 0.0
    %2642 = vmatpush.msra.mxu0 0.0
    %2643 = vmatpush.msra.mxu0 0.0
    %2644 = vmatpush.msra.mxu0 0.0
    %2645 = vmatpush.msra.mxu0 0.0
    %2646 = vmatpush.msra.mxu0 0.0
    %2647 = vmatpush.msra.mxu0 0.0
    %2648 = vmatpush.msra.mxu0 0.0
    %2649 = vmatpush.msra.mxu0 0.0
    %2650 = vmatpush.msra.mxu0 %v2630
    %2651 = vmatmul.f32.gmra.mxu0 %v2633
    %v2652 = vpop.f32.mrf.mxu0
    %v2653 = vadd.f32 0.0, %v2652
    %2654 = vdwg.mxu0
    %s2655 = scalar_lea.vmem %s8, 192
    %v2656 = vld [vmem:[%s2655] sm:$0xff]
    %v2657 = vld [vmem:[%s2655 + $0x8] sm:$0xff]
    %v2658 = vld [vmem:[%s2655 + $0x10] sm:$0xff]
    %v2659 = vld [vmem:[%s2655 + $0x18] sm:$0xff]
    %v2660 = vld [vmem:[%s2655 + $0x20] sm:$0xff]
    %v2661 = vld [vmem:[%s2655 + $0x28] sm:$0xff]
    %v2662 = vld [vmem:[%s2655 + $0x30] sm:$0xff]
    %v2663 = vld [vmem:[%s2655 + $0x38] sm:$0xff]
    %v2665 = vsel %vm217, %v2575, 0
    %2667 = vmatpush.msra.mxu0 0.0
    %2668 = vmatpush.msra.mxu0 0.0
    %2669 = vmatpush.msra.mxu0 0.0
    %2670 = vmatpush.msra.mxu0 0.0
    %2671 = vmatpush.msra.mxu0 0.0
    %2672 = vmatpush.msra.mxu0 0.0
    %2673 = vmatpush.msra.mxu0 0.0
    %2674 = vmatpush.msra.mxu0 0.0
    %2675 = vmatpush.msra.mxu0 0.0
    %2676 = vmatpush.msra.mxu0 0.0
    %2677 = vmatpush.msra.mxu0 0.0
    %2678 = vmatpush.msra.mxu0 0.0
    %2679 = vmatpush.msra.mxu0 0.0
    %2680 = vmatpush.msra.mxu0 0.0
    %2681 = vmatpush.msra.mxu0 %v2657
    %2682 = vmatpush.msra.mxu0 %v2656
    %2683 = vmatmul.f32.gmra.mxu0 %v2665
    %v2684 = vpop.f32.mrf.mxu0
    %v2685 = vadd.f32 0.0, %v2684
    %2686 = vdwg.mxu0
    %v2688 = vsel %vm217, %v2601, 0
    %2690 = vmatpush.msra.mxu0 0.0
    %2691 = vmatpush.msra.mxu0 0.0
    %2692 = vmatpush.msra.mxu0 0.0
    %2693 = vmatpush.msra.mxu0 0.0
    %2694 = vmatpush.msra.mxu0 0.0
    %2695 = vmatpush.msra.mxu0 0.0
    %2696 = vmatpush.msra.mxu0 0.0
    %2697 = vmatpush.msra.mxu0 0.0
    %2698 = vmatpush.msra.mxu0 0.0
    %2699 = vmatpush.msra.mxu0 0.0
    %2700 = vmatpush.msra.mxu0 0.0
    %2701 = vmatpush.msra.mxu0 0.0
    %2702 = vmatpush.msra.mxu0 0.0
    %2703 = vmatpush.msra.mxu0 0.0
    %2704 = vmatpush.msra.mxu0 %v2659
    %2705 = vmatpush.msra.mxu0 %v2658
    %2706 = vmatmul.f32.gmra.mxu0 %v2688
    %v2707 = vpop.f32.mrf.mxu0
    %v2708 = vadd.f32 0.0, %v2707
    %2709 = vdwg.mxu0
    %v2711 = vsel %vm217, %v2627, 0
    %2713 = vmatpush.msra.mxu0 0.0
    %2714 = vmatpush.msra.mxu0 0.0
    %2715 = vmatpush.msra.mxu0 0.0
    %2716 = vmatpush.msra.mxu0 0.0
    %2717 = vmatpush.msra.mxu0 0.0
    %2718 = vmatpush.msra.mxu0 0.0
    %2719 = vmatpush.msra.mxu0 0.0
    %2720 = vmatpush.msra.mxu0 0.0
    %2721 = vmatpush.msra.mxu0 0.0
    %2722 = vmatpush.msra.mxu0 0.0
    %2723 = vmatpush.msra.mxu0 0.0
    %2724 = vmatpush.msra.mxu0 0.0
    %2725 = vmatpush.msra.mxu0 0.0
    %2726 = vmatpush.msra.mxu0 0.0
    %2727 = vmatpush.msra.mxu0 %v2661
    %2728 = vmatpush.msra.mxu0 %v2660
    %2729 = vmatmul.f32.gmra.mxu0 %v2711
    %v2730 = vpop.f32.mrf.mxu0
    %v2731 = vadd.f32 0.0, %v2730
    %2732 = vdwg.mxu0
    %v2734 = vsel %vm217, %v2653, 0
    %2736 = vmatpush.msra.mxu0 0.0
    %2737 = vmatpush.msra.mxu0 0.0
    %2738 = vmatpush.msra.mxu0 0.0
    %2739 = vmatpush.msra.mxu0 0.0
    %2740 = vmatpush.msra.mxu0 0.0
    %2741 = vmatpush.msra.mxu0 0.0
    %2742 = vmatpush.msra.mxu0 0.0
    %2743 = vmatpush.msra.mxu0 0.0
    %2744 = vmatpush.msra.mxu0 0.0
    %2745 = vmatpush.msra.mxu0 0.0
    %2746 = vmatpush.msra.mxu0 0.0
    %2747 = vmatpush.msra.mxu0 0.0
    %2748 = vmatpush.msra.mxu0 0.0
    %2749 = vmatpush.msra.mxu0 0.0
    %2750 = vmatpush.msra.mxu0 %v2663
    %2751 = vmatpush.msra.mxu0 %v2662
    %2752 = vmatmul.f32.gmra.mxu0 %v2734
    %v2753 = vpop.f32.mrf.mxu0
    %v2754 = vadd.f32 0.0, %v2753
    %2755 = vdwg.mxu0
    %v2756 = vadd.f32 %v2685, %v2731
    %v2757 = vadd.f32 %v2708, %v2754
    %s2758 = scalar_lea.vmem %s9, 3
    %v2759 = vld [vmem:[%s2758] sm:$0x1]
    %v2761 = vperm.slane %v2759, 0
    %v2763 = vadd.f32 %v2756, %v2761
    %v2764 = vadd.f32 %v2757, %v2761
    %v2765 = vadd.f32 %v2269, %v2763
    %v2766 = vadd.f32 %v2270, %v2764
    %s2767 = scalar_lea.vmem %s10, 3
    %v2768 = vld [vmem:[%s2767] sm:$0x1]
    %s2769 = scalar_lea.vmem %s11, 3
    %v2770 = vld [vmem:[%s2769] sm:$0x1]
    %v2771 = vsel %vm127, %v2765, 0.0
    %2772 = vadd.xlane.f32.xlu0 %v2771
    %v2773 = vpop.xlane.xlu0 %2772
    %v2774 = vsel %vm127, %v2766, 0.0
    %2775 = vadd.xlane.f32.xlu0 %v2774
    %v2776 = vpop.xlane.xlu0 %2775
    %v2777 = vmul.f32 %v2773, %v616
    %v2778 = vmul.f32 %v2776, %v616
    %v2779 = vsub.f32 %v2765, %v2777
    %v2780 = vsub.f32 %v2766, %v2778
    %v2781 = vmul.f32 %v2779, %v2779
    %v2782 = vmul.f32 %v2780, %v2780
    %v2783 = vsel %vm127, %v2781, 0.0
    %2784 = vadd.xlane.f32.xlu0 %v2783
    %v2785 = vpop.xlane.xlu0 %2784
    %v2786 = vsel %vm127, %v2782, 0.0
    %2787 = vadd.xlane.f32.xlu0 %v2786
    %v2788 = vpop.xlane.xlu0 %2787
    %v2789 = vmul.f32 %v2785, %v616
    %v2790 = vmul.f32 %v2788, %v616
    %v2791 = vadd.f32 %v2789, 1e-12
    %v2792 = vadd.f32 %v2790, 1e-12
    %v2793 = vrsqrt.pop %v2791
    %v2794 = vmul.f32 %v2793, %v2791
    %v2795 = vmul.f32 %v2794, %v2793
    %v2796 = vmul.f32 0.5, %v2795
    %v2797 = vsub.f32 1.5, %v2796
    %v2798 = vmul.f32 %v2793, %v2797
    %vm2799 = vweird.f32 %v2791
    %vm2800 = vweird.f32 %v2793
    %vm2801 = vmor %vm2799, %vm2800
    %v2802 = vsel %vm2801, %v2793, %v2798
    %v2803 = vrsqrt.pop %v2792
    %v2804 = vmul.f32 %v2803, %v2792
    %v2805 = vmul.f32 %v2804, %v2803
    %v2806 = vmul.f32 0.5, %v2805
    %v2807 = vsub.f32 1.5, %v2806
    %v2808 = vmul.f32 %v2803, %v2807
    %vm2809 = vweird.f32 %v2792
    %vm2810 = vweird.f32 %v2803
    %vm2811 = vmor %vm2809, %vm2810
    %v2812 = vsel %vm2811, %v2803, %v2808
    %v2813 = vmul.f32 %v2779, %v2802
    %v2814 = vmul.f32 %v2780, %v2812
    %v2816 = vperm.slane %v2768, 0
    %v2818 = vmul.f32 %v2813, %v2816
    %v2819 = vmul.f32 %v2814, %v2816
    %v2821 = vperm.slane %v2770, 0
    %v2823 = vadd.f32 %v2818, %v2821
    %v2824 = vadd.f32 %v2819, %v2821
    %s2825 = scalar_lea.vmem %s12, 96
    %v2826 = vld [vmem:[%s2825] sm:$0xff]
    %v2827 = vld [vmem:[%s2825 + $0x8] sm:$0xff]
    %v2828 = vld [vmem:[%s2825 + $0x10] sm:$0xff]
    %v2829 = vld [vmem:[%s2825 + $0x18] sm:$0xff]
    %s2830 = scalar_lea.vmem %s13, 3
    %v2831 = vld [vmem:[%s2830] sm:$0x1]
    %v2833 = vperm.slane %v2831, 0
    %v2836 = vsel %vm127, %v2823, 0
    %v2839 = vsel %vm127, %v2824, 0
    %2841 = vmatpush.msra.mxu0 0.0
    %2842 = vmatpush.msra.mxu0 0.0
    %2843 = vmatpush.msra.mxu0 0.0
    %2844 = vmatpush.msra.mxu0 0.0
    %2845 = vmatpush.msra.mxu0 0.0
    %2846 = vmatpush.msra.mxu0 0.0
    %2847 = vmatpush.msra.mxu0 0.0
    %2848 = vmatpush.msra.mxu0 0.0
    %2849 = vmatpush.msra.mxu0 0.0
    %2850 = vmatpush.msra.mxu0 0.0
    %2851 = vmatpush.msra.mxu0 0.0
    %2852 = vmatpush.msra.mxu0 0.0
    %2853 = vmatpush.msra.mxu0 %v2829
    %2854 = vmatpush.msra.mxu0 %v2828
    %2855 = vmatpush.msra.mxu0 %v2827
    %2856 = vmatpush.msra.mxu0 %v2826
    %2857 = vmatmul.f32.gmra.mxu0 %v2836
    %v2858 = vpop.f32.mrf.mxu0
    %v2859 = vadd.f32 %v2833, %v2858
    %2860 = vmatmul.f32.gmra.mxu0 %v2839
    %v2861 = vpop.f32.mrf.mxu0
    %v2862 = vadd.f32 %v2833, %v2861
    %2863 = vdwg.mxu0
    %v2864 = vmul.f32 %v2859, 0.5
    %v2865 = vmul.f32 %v2862, 0.5
    %v2866 = vmul.f32 %v2859, 0.044715
    %v2867 = vmul.f32 %v2862, 0.044715
    %v2868 = vmul.f32 %v2866, %v2859
    %v2869 = vmul.f32 %v2867, %v2862
    %v2870 = vmul.f32 %v2868, %v2859
    %v2871 = vmul.f32 %v2869, %v2862
    %v2872 = vadd.f32 %v2859, %v2870
    %v2873 = vadd.f32 %v2862, %v2871
    %v2874 = vmul.f32 %v2872, 0.7978846
    %v2875 = vmul.f32 %v2873, 0.7978846
    %v2876 = vtanh.pop %v2874
    %v2877 = vtanh.pop %v2875
    %v2878 = vadd.f32 %v2876, 1.0
    %v2879 = vadd.f32 %v2877, 1.0
    %v2880 = vmul.f32 %v2864, %v2878
    %v2881 = vmul.f32 %v2865, %v2879
    %s2882 = scalar_lea.vmem %s14, 192
    %v2883 = vld [vmem:[%s2882] sm:$0xff]
    %v2884 = vld [vmem:[%s2882 + $0x8] sm:$0xff]
    %v2885 = vld [vmem:[%s2882 + $0x10] sm:$0xff]
    %v2886 = vld [vmem:[%s2882 + $0x18] sm:$0xff]
    %v2887 = vld [vmem:[%s2882 + $0x20] sm:$0xff]
    %v2888 = vld [vmem:[%s2882 + $0x28] sm:$0xff]
    %v2889 = vld [vmem:[%s2882 + $0x30] sm:$0xff]
    %v2890 = vld [vmem:[%s2882 + $0x38] sm:$0xff]
    %s2891 = scalar_lea.vmem %s15, 3
    %v2892 = vld [vmem:[%s2891] sm:$0x1]
    %v2894 = vperm.slane %v2892, 0
    %v2897 = vsel %vm732, %v2880, 0
    %v2900 = vsel %vm732, %v2881, 0
    %2902 = vmatpush.msra.mxu0 0.0
    %2903 = vmatpush.msra.mxu0 0.0
    %2904 = vmatpush.msra.mxu0 0.0
    %2905 = vmatpush.msra.mxu0 0.0
    %2906 = vmatpush.msra.mxu0 0.0
    %2907 = vmatpush.msra.mxu0 0.0
    %2908 = vmatpush.msra.mxu0 0.0
    %2909 = vmatpush.msra.mxu0 0.0
    %2910 = vmatpush.msra.mxu0 %v2890
    %2911 = vmatpush.msra.mxu0 %v2889
    %2912 = vmatpush.msra.mxu0 %v2888
    %2913 = vmatpush.msra.mxu0 %v2887
    %2914 = vmatpush.msra.mxu0 %v2886
    %2915 = vmatpush.msra.mxu0 %v2885
    %2916 = vmatpush.msra.mxu0 %v2884
    %2917 = vmatpush.msra.mxu0 %v2883
    %2918 = vmatmul.f32.gmra.mxu0 %v2897
    %v2919 = vpop.f32.mrf.mxu0
    %v2920 = vadd.f32 %v2894, %v2919
    %2921 = vmatmul.f32.gmra.mxu0 %v2900
    %v2922 = vpop.f32.mrf.mxu0
    %v2923 = vadd.f32 %v2894, %v2922
    %2924 = vdwg.mxu0
    %v2925 = vadd.f32 %v2823, %v2920
    %v2926 = vadd.f32 %v2824, %v2923
    %s2927 = scalar_lea.vmem %s16, 3
    %v2928 = vld [vmem:[%s2927] sm:$0x1]
    %s2929 = scalar_lea.vmem %s17, 3
    %v2930 = vld [vmem:[%s2929] sm:$0x1]
    %v2931 = vsel %vm127, %v2925, 0.0
    %2932 = vadd.xlane.f32.xlu0 %v2931
    %v2933 = vpop.xlane.xlu0 %2932
    %v2934 = vsel %vm127, %v2926, 0.0
    %2935 = vadd.xlane.f32.xlu0 %v2934
    %v2936 = vpop.xlane.xlu0 %2935
    %v2937 = vmul.f32 %v2933, %v616
    %v2938 = vmul.f32 %v2936, %v616
    %v2939 = vsub.f32 %v2925, %v2937
    %v2940 = vsub.f32 %v2926, %v2938
    %v2941 = vmul.f32 %v2939, %v2939
    %v2942 = vmul.f32 %v2940, %v2940
    %v2943 = vsel %vm127, %v2941, 0.0
    %2944 = vadd.xlane.f32.xlu0 %v2943
    %v2945 = vpop.xlane.xlu0 %2944
    %v2946 = vsel %vm127, %v2942, 0.0
    %2947 = vadd.xlane.f32.xlu0 %v2946
    %v2948 = vpop.xlane.xlu0 %2947
    %v2949 = vmul.f32 %v2945, %v616
    %v2950 = vmul.f32 %v2948, %v616
    %v2951 = vadd.f32 %v2949, 1e-12
    %v2952 = vadd.f32 %v2950, 1e-12
    %v2953 = vrsqrt.pop %v2951
    %v2954 = vmul.f32 %v2953, %v2951
    %v2955 = vmul.f32 %v2954, %v2953
    %v2956 = vmul.f32 0.5, %v2955
    %v2957 = vsub.f32 1.5, %v2956
    %v2958 = vmul.f32 %v2953, %v2957
    %vm2959 = vweird.f32 %v2951
    %vm2960 = vweird.f32 %v2953
    %vm2961 = vmor %vm2959, %vm2960
    %v2962 = vsel %vm2961, %v2953, %v2958
    %v2963 = vrsqrt.pop %v2952
    %v2964 = vmul.f32 %v2963, %v2952
    %v2965 = vmul.f32 %v2964, %v2963
    %v2966 = vmul.f32 0.5, %v2965
    %v2967 = vsub.f32 1.5, %v2966
    %v2968 = vmul.f32 %v2963, %v2967
    %vm2969 = vweird.f32 %v2952
    %vm2970 = vweird.f32 %v2963
    %vm2971 = vmor %vm2969, %vm2970
    %v2972 = vsel %vm2971, %v2963, %v2968
    %v2973 = vmul.f32 %v2939, %v2962
    %v2974 = vmul.f32 %v2940, %v2972
    %v2976 = vperm.slane %v2928, 0
    %v2978 = vmul.f32 %v2973, %v2976
    %v2979 = vmul.f32 %v2974, %v2976
    %v2981 = vperm.slane %v2930, 0
    %v2983 = vadd.f32 %v2978, %v2981
    %v2984 = vadd.f32 %v2979, %v2981
    %v2986 = vrot.slane %v2984, 7
    %v2988 = vsel %vm1537, %v2983, %v2986
    %v2989 = vld [vmem:[%s4] sm:$0x3]
    %v2990 = vld [vmem:[%s5] sm:$0x3]
    %v2991 = vld [vmem:[%s19] sm:$0x1]
    %v2992 = vld [vmem:[%s18] sm:$0xff]
    %v2993 = vld [vmem:[%s18 + $0x8] sm:$0xff]
    %v2994 = vld [vmem:[%s18 + $0x10] sm:$0xff]
    %v2995 = vld [vmem:[%s18 + $0x18] sm:$0xff]
    %v2997 = vsel %vm127, %v2989, 0
    %2999 = vmatpush.msra.mxu0 0.0
    %3000 = vmatpush.msra.mxu0 0.0
    %3001 = vmatpush.msra.mxu0 0.0
    %3002 = vmatpush.msra.mxu0 0.0
    %3003 = vmatpush.msra.mxu0 0.0
    %3004 = vmatpush.msra.mxu0 0.0
    %3005 = vmatpush.msra.mxu0 0.0
    %3006 = vmatpush.msra.mxu0 0.0
    %3007 = vmatpush.msra.mxu0 0.0
    %3008 = vmatpush.msra.mxu0 0.0
    %3009 = vmatpush.msra.mxu0 0.0
    %3010 = vmatpush.msra.mxu0 0.0
    %3011 = vmatpush.msra.mxu0 %v2995
    %3012 = vmatpush.msra.mxu0 %v2994
    %3013 = vmatpush.msra.mxu0 %v2993
    %3014 = vmatpush.msra.mxu0 %v2992
    %3015 = vmatmul.f32.gmra.mxu0 %v2997
    %v3016 = vpop.f32.mrf.mxu0
    %v3017 = vadd.f32 0.0, %v3016
    %3018 = vdwg.mxu0
    %v3020 = vperm.slane %v2991, 0
    %v3022 = vadd.f32 %v3020, %v3017
    %s3023 = scalar_lea.vmem %s18, 32
    %v3024 = vld [vmem:[%s3023] sm:$0xff]
    %v3025 = vld [vmem:[%s3023 + $0x8] sm:$0xff]
    %v3026 = vld [vmem:[%s3023 + $0x10] sm:$0xff]
    %v3027 = vld [vmem:[%s3023 + $0x18] sm:$0xff]
    %v3029 = vsel %vm127, %v2990, 0
    %3031 = vmatpush.msra.mxu0 0.0
    %3032 = vmatpush.msra.mxu0 0.0
    %3033 = vmatpush.msra.mxu0 0.0
    %3034 = vmatpush.msra.mxu0 0.0
    %3035 = vmatpush.msra.mxu0 0.0
    %3036 = vmatpush.msra.mxu0 0.0
    %3037 = vmatpush.msra.mxu0 0.0
    %3038 = vmatpush.msra.mxu0 0.0
    %3039 = vmatpush.msra.mxu0 0.0
    %3040 = vmatpush.msra.mxu0 0.0
    %3041 = vmatpush.msra.mxu0 0.0
    %3042 = vmatpush.msra.mxu0 0.0
    %3043 = vmatpush.msra.mxu0 %v3027
    %3044 = vmatpush.msra.mxu0 %v3026
    %3045 = vmatpush.msra.mxu0 %v3025
    %3046 = vmatpush.msra.mxu0 %v3024
    %3047 = vmatmul.f32.gmra.mxu0 %v3029
    %v3048 = vpop.f32.mrf.mxu0
    %v3049 = vadd.f32 0.0, %v3048
    %3050 = vdwg.mxu0
    %v3051 = vadd.f32 %v3022, %v3049
    %s3052 = scalar_lea.vmem %s18, 64
    %v3053 = vld [vmem:[%s3052] sm:$0xff]
    %v3054 = vld [vmem:[%s3052 + $0x8] sm:$0xff]
    %v3055 = vld [vmem:[%s3052 + $0x10] sm:$0xff]
    %v3056 = vld [vmem:[%s3052 + $0x18] sm:$0xff]
    %v3058 = vsel %vm127, %v1538, 0
    %3060 = vmatpush.msra.mxu0 0.0
    %3061 = vmatpush.msra.mxu0 0.0
    %3062 = vmatpush.msra.mxu0 0.0
    %3063 = vmatpush.msra.mxu0 0.0
    %3064 = vmatpush.msra.mxu0 0.0
    %3065 = vmatpush.msra.mxu0 0.0
    %3066 = vmatpush.msra.mxu0 0.0
    %3067 = vmatpush.msra.mxu0 0.0
    %3068 = vmatpush.msra.mxu0 0.0
    %3069 = vmatpush.msra.mxu0 0.0
    %3070 = vmatpush.msra.mxu0 0.0
    %3071 = vmatpush.msra.mxu0 0.0
    %3072 = vmatpush.msra.mxu0 %v3056
    %3073 = vmatpush.msra.mxu0 %v3055
    %3074 = vmatpush.msra.mxu0 %v3054
    %3075 = vmatpush.msra.mxu0 %v3053
    %3076 = vmatmul.f32.gmra.mxu0 %v3058
    %v3077 = vpop.f32.mrf.mxu0
    %v3078 = vadd.f32 0.0, %v3077
    %3079 = vdwg.mxu0
    %v3080 = vadd.f32 %v3051, %v3078
    %s3081 = scalar_lea.vmem %s18, 96
    %v3082 = vld [vmem:[%s3081] sm:$0xff]
    %v3083 = vld [vmem:[%s3081 + $0x8] sm:$0xff]
    %v3084 = vld [vmem:[%s3081 + $0x10] sm:$0xff]
    %v3085 = vld [vmem:[%s3081 + $0x18] sm:$0xff]
    %v3087 = vsel %vm127, %v2988, 0
    %3089 = vmatpush.msra.mxu0 0.0
    %3090 = vmatpush.msra.mxu0 0.0
    %3091 = vmatpush.msra.mxu0 0.0
    %3092 = vmatpush.msra.mxu0 0.0
    %3093 = vmatpush.msra.mxu0 0.0
    %3094 = vmatpush.msra.mxu0 0.0
    %3095 = vmatpush.msra.mxu0 0.0
    %3096 = vmatpush.msra.mxu0 0.0
    %3097 = vmatpush.msra.mxu0 0.0
    %3098 = vmatpush.msra.mxu0 0.0
    %3099 = vmatpush.msra.mxu0 0.0
    %3100 = vmatpush.msra.mxu0 0.0
    %3101 = vmatpush.msra.mxu0 %v3085
    %3102 = vmatpush.msra.mxu0 %v3084
    %3103 = vmatpush.msra.mxu0 %v3083
    %3104 = vmatpush.msra.mxu0 %v3082
    %3105 = vmatmul.f32.gmra.mxu0 %v3087
    %v3106 = vpop.f32.mrf.mxu0
    %v3107 = vadd.f32 0.0, %v3106
    %3108 = vdwg.mxu0
    %v3109 = vadd.f32 %v3080, %v3107
    %v3110 = vmax.f32 %v3109, 0.0
    %v3111 = vld [vmem:[%s20] sm:$0xff]
    %v3112 = vld [vmem:[%s20 + $0x8] sm:$0xff]
    %v3113 = vld [vmem:[%s20 + $0x10] sm:$0xff]
    %v3114 = vld [vmem:[%s20 + $0x18] sm:$0xff]
    %v3115 = vld [vmem:[%s20 + $0x20] sm:$0xff]
    %v3116 = vld [vmem:[%s20 + $0x28] sm:$0xff]
    %v3117 = vld [vmem:[%s20 + $0x30] sm:$0xff]
    %v3118 = vld [vmem:[%s20 + $0x38] sm:$0xff]
    %v3119 = vld [vmem:[#allocation2] sm:$0x1]
    %v3121 = vperm.slane %v3119, 0
    %v3124 = vsel %vm732, %v3110, 0
    %3126 = vmatpush.msra.mxu0 0.0
    %3127 = vmatpush.msra.mxu0 0.0
    %3128 = vmatpush.msra.mxu0 0.0
    %3129 = vmatpush.msra.mxu0 0.0
    %3130 = vmatpush.msra.mxu0 0.0
    %3131 = vmatpush.msra.mxu0 0.0
    %3132 = vmatpush.msra.mxu0 0.0
    %3133 = vmatpush.msra.mxu0 0.0
    %3134 = vmatpush.msra.mxu0 %v3118
    %3135 = vmatpush.msra.mxu0 %v3117
    %3136 = vmatpush.msra.mxu0 %v3116
    %3137 = vmatpush.msra.mxu0 %v3115
    %3138 = vmatpush.msra.mxu0 %v3114
    %3139 = vmatpush.msra.mxu0 %v3113
    %3140 = vmatpush.msra.mxu0 %v3112
    %3141 = vmatpush.msra.mxu0 %v3111
    %3142 = vmatmul.f32.gmra.mxu0 %v3124
    %v3143 = vpop.f32.mrf.mxu0
    %v3144 = vadd.f32 %v3121, %v3143
    %3145 = vdwg.mxu0
    %v3146 = vsub.f32 0.0, %v3144
    %v3147 = vmul.f32 %v3146, 1.442695
    %v3148 = vpow.pop %v3147
    %v3149 = vadd.f32 %v3148, 1.0
    %v3150 = vrcp.pop %v3149
    %v3151 = vmul.f32 %v3149, %v3150
    %v3152 = vsub.f32 1.0, %v3151
    %v3153 = vmul.f32 %v3150, %v3152
    %v3154 = vadd.f32 %v3150, %v3153
    %vm3155 = vweird.f32 %v3149
    %vm3156 = vweird.f32 %v3150
    %vm3157 = vmor %vm3155, %vm3156
    %v3158 = vsel %vm3157, %v3150, %v3154
    %v3159 = vand.u32 2147483647, %v3149
    %vm3160 = vcmp.eq.f32.partialorder %v3159, 8.507059e+37
    %v3161 = vand.u32 %v3149, 2147483648
    %v3162 = vor.u32 1.1754944e-38, %v3161
    %v3163 = vsel %vm3160, %v3162, %v3158
    %v3164 = vmul.f32 1.0, %v3163
    %vm3165 = vcmask 1024
    %3166 = vst.msk [vmem:[%s22] sm:$0x3] %vm3165, %v3164
    // Predicated region
    $region94: #{epitope_mhc_bert_forward.1} parent=1 // pred_check
      _
    $region95: #{epitope_mhc_bert_forward.1} parent=1 // pred_check_branch
      %3168 = sbr.rel (0) target = $region97
    $region96: #{epitope_mhc_bert_forward.1} parent=1 // pred_region
      _
    $region97: #{epitope_mhc_bert_forward.1} parent=1 // pred_fallthru
      _
    // Predicated region
    $region98: #{epitope_mhc_bert_forward.1} parent=1 // pred_check
      _
    $region99: #{epitope_mhc_bert_forward.1} parent=1 // pred_check_branch
      %3170 = sbr.rel (0) target = $region101
    $region100: #{epitope_mhc_bert_forward.1} parent=1 // pred_region
      _
    $region101: #{epitope_mhc_bert_forward.1} parent=1 // pred_fallthru
      _
    %3171 = vsyncpa [#allocation4], 1

</llo_original>
